<compile_context>
chip_gen: v7x
topology: tpu7x:2x2x1
jax: 0.10.0
libtpu: 0.0.40
codegen_flags: <defaults>
</compile_context>

<pallas_src>
import functools
import math

import jax
import jax.numpy as jnp
from jax import lax
from jax.experimental import pallas as pl
from jax.experimental.pallas import tpu as pltpu


C_IN, C_MID, C_OUT = 3, 16, 3

# Tap enumeration: t = 3*(dh+1) + (dw+1); the centre tap is t == 4.
_TAPS = [(dh, dw) for dh in (-1, 0, 1) for dw in (-1, 0, 1)]


def _mask_row(t):
    # The masks input has 8 rows (centre tap needs no mask / no padding).
    return t if t < 4 else t - 1


def adversary_kernel(x_ref, w1_ref, b1_ref, scale_ref, shift_ref,
                     w2_ref, b2_ref, masks_ref, out_ref, stack_ref,
                     *, l1_max, W, ghw, n_groups):
    GHW = ghw
    offs = [dh * W + dw for dh, dw in _TAPS]

    # Small parameters, loaded once per grid step (a handful of vregs).
    w1_all = w1_ref[...]           # (C_MID, 27)  f32
    w2_all = w2_ref[...]           # (27, C_MID)  bf16
    b1 = b1_ref[...]               # (C_MID, 1)
    scale = scale_ref[...]         # (C_MID, 1)
    shift = shift_ref[...]         # (C_MID, 1)
    b2 = b2_ref[...]               # (C_OUT, 1)

    def group_body(g, carry):
        base = pl.multiple_of(g * GHW, 128)
        xg = x_ref[:, pl.ds(base, GHW)]                      # (C_IN, GHW)

        # ---- conv1: stage the 27-row tap stack in VMEM (3-row pieces need no
        # in-register sublane placement), then one fused K=27 MXU matmul.
        for t in range(9):
            xs = xg if offs[t] == 0 else pltpu.roll(xg, (-offs[t]) % GHW, axis=1)
            if t != 4:
                xs = xs * masks_ref[pl.ds(_mask_row(t), 1), :]
            stack_ref[pl.ds(3 * t, 3), :] = xs
        x_stack = stack_ref[...]                             # (27, GHW)
        y1 = jnp.dot(w1_all, x_stack,
                     preferred_element_type=jnp.float32)     # (C_MID, GHW)
        y1 = jnp.tanh(y1 + b1)
        y1 = y1 * scale + shift                              # BatchNorm3d (eval, folded)
        y1 = y1.astype(jnp.bfloat16)                         # bf16 MXU operand

        # ---- conv2: one fused matmul (y1 streams through the MXU once), then
        # per-tap 3-row extract -> roll -> mask -> accumulate.
        z_all = jnp.dot(w2_all, y1,
                        preferred_element_type=jnp.float32)  # (27, GHW)
        acc2 = z_all[12:15, :]                               # centre tap (t == 4)
        for t in range(9):
            if t == 4:
                continue
            z = pltpu.roll(z_all[3 * t:3 * t + 3, :], (-offs[t]) % GHW, axis=1)
            acc2 = acc2 + z * masks_ref[pl.ds(_mask_row(t), 1), :]
        y2 = jnp.tanh(acc2 + b2)

        # Residual with bounded distortion; lane-dense store.
        out_ref[:, pl.ds(base, GHW)] = (xg + l1_max * y2).astype(out_ref.dtype)
        return carry

    unroll = 2 if (n_groups > 1 and n_groups % 2 == 0) else 1
    lax.fori_loop(0, n_groups, group_body, 0, unroll=unroll)


def _choose_tiling(N, L, HW, *, target_group_lanes, block_budget_bytes):
    """G = frames per inner compute group, FB = frames per grid block."""
    # G bounds the vreg working set (GHW = G*HW lanes ~ target_group_lanes).
    g0 = max(1, min(L, target_group_lanes // max(HW, 1)))
    G = max(d for d in range(1, g0 + 1) if L % d == 0)
    # FB must be a multiple of G, divide L (no HBM pad/slice passes) and fit
    # the double-buffered in+out VMEM budget: 2*2*(C_IN*FB*HW*4) bytes.
    fb_max = max(G, block_budget_bytes // (4 * 2 * 2 * C_IN * HW))
    cands = [d for d in range(G, L + 1, G) if L % d == 0 and d <= fb_max]
    FB = max(cands) if cands else G
    # Prefer >= 2 grid blocks so both v7x TensorCores get work.
    if N * (L // FB) < 2:
        smaller = [d for d in cands if N * (L // d) >= 2]
        if smaller:
            FB = max(smaller)
    return G, FB


def _make_masks(H, W, G):
    """(8, G*H*W) f32 border masks == exact replacement for conv zero-padding."""
    HW = H * W
    pos = jnp.arange(G * HW, dtype=jnp.int32)
    col = pos % W
    row = (pos // W) % H
    rows = []
    for dh, dw in _TAPS:
        if dh == 0 and dw == 0:
            continue
        m = jnp.ones((G * HW,), dtype=bool)
        if dh == -1:
            m = m & (row >= 1)
        if dh == 1:
            m = m & (row <= H - 2)
        if dw == -1:
            m = m & (col >= 1)
        if dw == 1:
            m = m & (col <= W - 2)
        rows.append(m)
    return jnp.stack(rows, axis=0).astype(jnp.float32)


def adversary_forward(frames, params, *, l1_max=0.05,
                      target_group_lanes=512,
                      block_budget_bytes=8 * 1024 * 1024):
    """frames: (N, 3, L, H, W) float32 -> (N, 3, L, H, W) float32."""
    w1, b1, scale, shift, w2, b2 = params
    N, C, L, H, W = frames.shape
    assert C == C_IN
    HW = H * W
    assert HW % 128 == 0, "H*W must be a multiple of 128 for this layout"

    G, FB = _choose_tiling(N, L, HW,
                           target_group_lanes=target_group_lanes,
                           block_budget_bytes=block_budget_bytes)
    GHW = G * HW
    n_groups = FB // G

    # Fused tap-major weights: conv1 (C_MID, 9*C_IN), conv2 (9*C_OUT, C_MID).
    w1_all = jnp.transpose(w1.reshape(9, C_IN, C_MID), (2, 0, 1)).reshape(C_MID, 9 * C_IN)
    w2_all = jnp.transpose(w2.reshape(9, C_MID, C_OUT), (0, 2, 1)).reshape(9 * C_OUT, C_MID)
    w2_all = w2_all.astype(jnp.bfloat16)   # bf16 MXU operand (matches DEFAULT path)
    b1c = b1.reshape(C_MID, 1)
    sc = scale.reshape(C_MID, 1)
    sh = shift.reshape(C_MID, 1)
    b2c = b2.reshape(C_OUT, 1)
    masks = _make_masks(H, W, G)           # (8, GHW) f32

    # Free metadata reshape (trailing dims contiguous); FB divides L => no pad.
    x = frames.reshape(N, C, L * HW)

    kernel = functools.partial(adversary_kernel, l1_max=l1_max, W=W,
                               ghw=GHW, n_groups=n_groups)

    out = pl.pallas_call(
        kernel,
        out_shape=jax.ShapeDtypeStruct((N, C_OUT, L * HW), frames.dtype),
        grid=(N, L // FB),
        in_specs=[
            pl.BlockSpec((None, C_IN, FB * HW), lambda n, lb: (n, 0, lb)),
            pl.BlockSpec((C_MID, 9 * C_IN), lambda n, lb: (0, 0)),
            pl.BlockSpec((C_MID, 1), lambda n, lb: (0, 0)),
            pl.BlockSpec((C_MID, 1), lambda n, lb: (0, 0)),
            pl.BlockSpec((C_MID, 1), lambda n, lb: (0, 0)),
            pl.BlockSpec((9 * C_OUT, C_MID), lambda n, lb: (0, 0)),
            pl.BlockSpec((C_OUT, 1), lambda n, lb: (0, 0)),
            pl.BlockSpec((8, GHW), lambda n, lb: (0, 0)),
        ],
        out_specs=pl.BlockSpec((None, C_OUT, FB * HW), lambda n, lb: (n, 0, lb)),
        scratch_shapes=[pltpu.VMEM((9 * C_IN, GHW), jnp.float32)],
        compiler_params=pltpu.CompilerParams(
            dimension_semantics=("parallel", "parallel"),
            vmem_limit_bytes=32 * 1024 * 1024),
    )(x, w1_all, b1c, sc, sh, w2_all, b2c, masks)

    return out.reshape(N, C_OUT, L, H, W)


def reference_forward(frames, params, *, l1_max=0.05):
    """Pure-JAX reference (lax.conv, HIGHEST precision) for validation."""
    w1, b1, scale, shift, w2, b2 = params
    N, C, L, H, W = frames.shape
    x = jnp.transpose(frames, (0, 2, 3, 4, 1)).reshape(N * L, H, W, C)
    dn = ('NHWC', 'HWIO', 'NHWC')
    y = lax.conv_general_dilated(x, w1, (1, 1), 'SAME', dimension_numbers=dn,
                                 precision=lax.Precision.HIGHEST)
    y = jnp.tanh(y + b1.reshape(1, 1, 1, -1))
    y = y * scale.reshape(1, 1, 1, -1) + shift.reshape(1, 1, 1, -1)
    y = lax.conv_general_dilated(y, w2, (1, 1), 'SAME', dimension_numbers=dn,
                                 precision=lax.Precision.HIGHEST)
    y = jnp.tanh(y + b2.reshape(1, 1, 1, -1))
    out = x + l1_max * y
    return out.reshape(N, L, H, W, C).transpose(0, 4, 1, 2, 3)


def init_params(key):
    """Deterministic synthetic parameters (shapes match nn.Conv3d/BatchNorm3d)."""
    ks = jax.random.split(key, 8)
    w1 = 0.2 * jax.random.normal(ks[0], (3, 3, C_IN, C_MID), jnp.float32)
    b1 = 0.1 * jax.random.normal(ks[1], (C_MID,), jnp.float32)
    gamma = 1.0 + 0.1 * jax.random.normal(ks[2], (C_MID,), jnp.float32)
    beta = 0.1 * jax.random.normal(ks[3], (C_MID,), jnp.float32)
    run_mean = 0.1 * jax.random.normal(ks[4], (C_MID,), jnp.float32)
    run_var = jax.random.uniform(ks[5], (C_MID,), jnp.float32, 0.5, 1.5)
    w2 = 0.2 * jax.random.normal(ks[6], (3, 3, C_MID, C_OUT), jnp.float32)
    b2 = 0.1 * jax.random.normal(ks[7], (C_OUT,), jnp.float32)
    # Fold BN (eval mode) into per-channel affine.
    eps = 1e-5
    inv = gamma / jnp.sqrt(run_var + eps)
    scale = inv
    shift = beta - run_mean * inv
    return (w1, b1, scale, shift, w2, b2)


if __name__ == "__main__":
    key = jax.random.PRNGKey(0)
    k_frames, k_params = jax.random.split(key)

    N, L, H, W = 2, 4, 16, 16
    frames = jax.random.uniform(k_frames, (N, 3, L, H, W), jnp.float32)
    params = init_params(k_params)

    out = jax.block_until_ready(adversary_forward(frames, params, l1_max=0.05))
    ref = jax.block_until_ready(reference_forward(frames, params, l1_max=0.05))

    assert out.shape == frames.shape and out.dtype == frames.dtype
    err = float(jnp.max(jnp.abs(out - ref)))
    # Kernel matmuls use bf16 MXU operands / DEFAULT precision with f32
    # accumulation; the reference runs at HIGHEST, so allow a small bf16-level
    # discrepancy (the conv-stack error is further scaled by l1_max=0.05).
    assert err < 5e-3, err

    print("KERNEL_OK")
</pallas_src>

<mosaic_0001>
module attributes {stable_mosaic.version = 11 : i64} {
  func.func @adversary_kernel(%arg0: i32, %arg1: i32, %arg2: memref<1x3x1024xf32, #tpu.memory_space<vmem>>, %arg3: memref<16x27xf32, #tpu.memory_space<vmem>>, %arg4: memref<16x1xf32, #tpu.memory_space<vmem>>, %arg5: memref<16x1xf32, #tpu.memory_space<vmem>>, %arg6: memref<16x1xf32, #tpu.memory_space<vmem>>, %arg7: memref<27x16xbf16, #tpu.memory_space<vmem>>, %arg8: memref<3x1xf32, #tpu.memory_space<vmem>>, %arg9: memref<8x512xf32, #tpu.memory_space<vmem>>, %arg10: memref<1x3x1024xf32, #tpu.memory_space<vmem>>, %arg11: memref<27x512xf32, #tpu.memory_space<vmem>>) attributes {dimension_semantics = [#tpu.dimension_semantics<parallel>, #tpu.dimension_semantics<parallel>], iteration_bounds = array<i64: 2, 1>, scalar_prefetch = 0 : i64, scratch_operands = 1 : i64, tpu.core_type = #tpu.core_type<tc>, window_params = [{transform_indices = @transform_0, window_bounds = array<i64: 1, 3, 1024>}, {pipeline_mode = #tpu.pipeline_mode<synchronous>, transform_indices = @transform_1, window_bounds = array<i64: 16, 27>}, {pipeline_mode = #tpu.pipeline_mode<synchronous>, transform_indices = @transform_2, window_bounds = array<i64: 16, 1>}, {pipeline_mode = #tpu.pipeline_mode<synchronous>, transform_indices = @transform_3, window_bounds = array<i64: 16, 1>}, {pipeline_mode = #tpu.pipeline_mode<synchronous>, transform_indices = @transform_4, window_bounds = array<i64: 16, 1>}, {pipeline_mode = #tpu.pipeline_mode<synchronous>, transform_indices = @transform_5, window_bounds = array<i64: 27, 16>}, {pipeline_mode = #tpu.pipeline_mode<synchronous>, transform_indices = @transform_6, window_bounds = array<i64: 3, 1>}, {pipeline_mode = #tpu.pipeline_mode<synchronous>, transform_indices = @transform_7, window_bounds = array<i64: 8, 512>}, {transform_indices = @transform_8, window_bounds = array<i64: 1, 3, 1024>}]} {
    %c0 = arith.constant 0 : index
    %c0_0 = arith.constant 0 : index
    %0 = vector.load %arg3[%c0, %c0_0] : memref<16x27xf32, #tpu.memory_space<vmem>>, vector<16x27xf32>
    %c0_1 = arith.constant 0 : index
    %c0_2 = arith.constant 0 : index
    %1 = vector.load %arg7[%c0_1, %c0_2] : memref<27x16xbf16, #tpu.memory_space<vmem>>, vector<27x16xbf16>
    %c0_3 = arith.constant 0 : index
    %c0_4 = arith.constant 0 : index
    %2 = vector.load %arg4[%c0_3, %c0_4] : memref<16x1xf32, #tpu.memory_space<vmem>>, vector<16x1xf32>
    %c0_5 = arith.constant 0 : index
    %c0_6 = arith.constant 0 : index
    %3 = vector.load %arg5[%c0_5, %c0_6] : memref<16x1xf32, #tpu.memory_space<vmem>>, vector<16x1xf32>
    %c0_7 = arith.constant 0 : index
    %c0_8 = arith.constant 0 : index
    %4 = vector.load %arg6[%c0_7, %c0_8] : memref<16x1xf32, #tpu.memory_space<vmem>>, vector<16x1xf32>
    %c0_9 = arith.constant 0 : index
    %c0_10 = arith.constant 0 : index
    %5 = vector.load %arg8[%c0_9, %c0_10] : memref<3x1xf32, #tpu.memory_space<vmem>>, vector<3x1xf32>
    %c0_i32 = arith.constant 0 : i32
    %c512_i32 = arith.constant 512 : i32
    %6 = arith.muli %c0_i32, %c512_i32 : i32
    %7 = tpu.assume_multiple %6, 128 : i32
    %c0_11 = arith.constant 0 : index
    %c0_12 = arith.constant 0 : index
    %8 = arith.index_cast %7 : i32 to index
    %9 = vector.load %arg2[%c0_11, %c0_12, %8] : memref<1x3x1024xf32, #tpu.memory_space<vmem>>, vector<1x3x512xf32>
    %10 = vector.shape_cast %9 : vector<1x3x512xf32> to vector<3x512xf32>
    %c17_i32 = arith.constant 17 : i32
    %11 = tpu.dynamic_rotate %10 by %c17_i32 dim 1 : vector<3x512xf32>, i32 -> vector<3x512xf32>
    %c0_13 = arith.constant 0 : index
    %c0_14 = arith.constant 0 : index
    %12 = vector.load %arg9[%c0_13, %c0_14] : memref<8x512xf32, #tpu.memory_space<vmem>>, vector<1x512xf32>
    %13 = vector.broadcast %12 : vector<1x512xf32> to vector<3x512xf32>
    %14 = arith.mulf %11, %13 : vector<3x512xf32>
    %c0_15 = arith.constant 0 : index
    %c0_16 = arith.constant 0 : index
    %15 = vector.load %arg11[%c0_15, %c0_16] : memref<27x512xf32, #tpu.memory_space<vmem>>, vector<3x512xf32>
    tpu.vector_store %arg11[%c0_15, %c0_16], %14 {strides = array<i32>} : memref<27x512xf32, #tpu.memory_space<vmem>>, vector<3x512xf32>,
    %c16_i32 = arith.constant 16 : i32
    %16 = tpu.dynamic_rotate %10 by %c16_i32 dim 1 : vector<3x512xf32>, i32 -> vector<3x512xf32>
    %c1 = arith.constant 1 : index
    %c0_17 = arith.constant 0 : index
    %17 = vector.load %arg9[%c1, %c0_17] : memref<8x512xf32, #tpu.memory_space<vmem>>, vector<1x512xf32>
    %18 = vector.broadcast %17 : vector<1x512xf32> to vector<3x512xf32>
    %19 = arith.mulf %16, %18 : vector<3x512xf32>
    %c3 = arith.constant 3 : index
    %c0_18 = arith.constant 0 : index
    %20 = vector.load %arg11[%c3, %c0_18] : memref<27x512xf32, #tpu.memory_space<vmem>>, vector<3x512xf32>
    tpu.vector_store %arg11[%c3, %c0_18], %19 {strides = array<i32>} : memref<27x512xf32, #tpu.memory_space<vmem>>, vector<3x512xf32>,
    %c15_i32 = arith.constant 15 : i32
    %21 = tpu.dynamic_rotate %10 by %c15_i32 dim 1 : vector<3x512xf32>, i32 -> vector<3x512xf32>
    %c2 = arith.constant 2 : index
    %c0_19 = arith.constant 0 : index
    %22 = vector.load %arg9[%c2, %c0_19] : memref<8x512xf32, #tpu.memory_space<vmem>>, vector<1x512xf32>
    %23 = vector.broadcast %22 : vector<1x512xf32> to vector<3x512xf32>
    %24 = arith.mulf %21, %23 : vector<3x512xf32>
    %c6 = arith.constant 6 : index
    %c0_20 = arith.constant 0 : index
    %25 = vector.load %arg11[%c6, %c0_20] : memref<27x512xf32, #tpu.memory_space<vmem>>, vector<3x512xf32>
    tpu.vector_store %arg11[%c6, %c0_20], %24 {strides = array<i32>} : memref<27x512xf32, #tpu.memory_space<vmem>>, vector<3x512xf32>,
    %c1_i32 = arith.constant 1 : i32
    %26 = tpu.dynamic_rotate %10 by %c1_i32 dim 1 : vector<3x512xf32>, i32 -> vector<3x512xf32>
    %c3_21 = arith.constant 3 : index
    %c0_22 = arith.constant 0 : index
    %27 = vector.load %arg9[%c3_21, %c0_22] : memref<8x512xf32, #tpu.memory_space<vmem>>, vector<1x512xf32>
    %28 = vector.broadcast %27 : vector<1x512xf32> to vector<3x512xf32>
    %29 = arith.mulf %26, %28 : vector<3x512xf32>
    %c9 = arith.constant 9 : index
    %c0_23 = arith.constant 0 : index
    %30 = vector.load %arg11[%c9, %c0_23] : memref<27x512xf32, #tpu.memory_space<vmem>>, vector<3x512xf32>
    tpu.vector_store %arg11[%c9, %c0_23], %29 {strides = array<i32>} : memref<27x512xf32, #tpu.memory_space<vmem>>, vector<3x512xf32>,
    %c12 = arith.constant 12 : index
    %c0_24 = arith.constant 0 : index
    %31 = vector.load %arg11[%c12, %c0_24] : memref<27x512xf32, #tpu.memory_space<vmem>>, vector<3x512xf32>
    tpu.vector_store %arg11[%c12, %c0_24], %10 {strides = array<i32>} : memref<27x512xf32, #tpu.memory_space<vmem>>, vector<3x512xf32>,
    %c511_i32 = arith.constant 511 : i32
    %32 = tpu.dynamic_rotate %10 by %c511_i32 dim 1 : vector<3x512xf32>, i32 -> vector<3x512xf32>
    %c4 = arith.constant 4 : index
    %c0_25 = arith.constant 0 : index
    %33 = vector.load %arg9[%c4, %c0_25] : memref<8x512xf32, #tpu.memory_space<vmem>>, vector<1x512xf32>
    %34 = vector.broadcast %33 : vector<1x512xf32> to vector<3x512xf32>
    %35 = arith.mulf %32, %34 : vector<3x512xf32>
    %c15 = arith.constant 15 : index
    %c0_26 = arith.constant 0 : index
    %36 = vector.load %arg11[%c15, %c0_26] : memref<27x512xf32, #tpu.memory_space<vmem>>, vector<3x512xf32>
    tpu.vector_store %arg11[%c15, %c0_26], %35 {strides = array<i32>} : memref<27x512xf32, #tpu.memory_space<vmem>>, vector<3x512xf32>,
    %c497_i32 = arith.constant 497 : i32
    %37 = tpu.dynamic_rotate %10 by %c497_i32 dim 1 : vector<3x512xf32>, i32 -> vector<3x512xf32>
    %c5 = arith.constant 5 : index
    %c0_27 = arith.constant 0 : index
    %38 = vector.load %arg9[%c5, %c0_27] : memref<8x512xf32, #tpu.memory_space<vmem>>, vector<1x512xf32>
    %39 = vector.broadcast %38 : vector<1x512xf32> to vector<3x512xf32>
    %40 = arith.mulf %37, %39 : vector<3x512xf32>
    %c18 = arith.constant 18 : index
    %c0_28 = arith.constant 0 : index
    %41 = vector.load %arg11[%c18, %c0_28] : memref<27x512xf32, #tpu.memory_space<vmem>>, vector<3x512xf32>
    tpu.vector_store %arg11[%c18, %c0_28], %40 {strides = array<i32>} : memref<27x512xf32, #tpu.memory_space<vmem>>, vector<3x512xf32>,
    %c496_i32 = arith.constant 496 : i32
    %42 = tpu.dynamic_rotate %10 by %c496_i32 dim 1 : vector<3x512xf32>, i32 -> vector<3x512xf32>
    %c6_29 = arith.constant 6 : index
    %c0_30 = arith.constant 0 : index
    %43 = vector.load %arg9[%c6_29, %c0_30] : memref<8x512xf32, #tpu.memory_space<vmem>>, vector<1x512xf32>
    %44 = vector.broadcast %43 : vector<1x512xf32> to vector<3x512xf32>
    %45 = arith.mulf %42, %44 : vector<3x512xf32>
    %c21 = arith.constant 21 : index
    %c0_31 = arith.constant 0 : index
    %46 = vector.load %arg11[%c21, %c0_31] : memref<27x512xf32, #tpu.memory_space<vmem>>, vector<3x512xf32>
    tpu.vector_store %arg11[%c21, %c0_31], %45 {strides = array<i32>} : memref<27x512xf32, #tpu.memory_space<vmem>>, vector<3x512xf32>,
    %c495_i32 = arith.constant 495 : i32
    %47 = tpu.dynamic_rotate %10 by %c495_i32 dim 1 : vector<3x512xf32>, i32 -> vector<3x512xf32>
    %c7 = arith.constant 7 : index
    %c0_32 = arith.constant 0 : index
    %48 = vector.load %arg9[%c7, %c0_32] : memref<8x512xf32, #tpu.memory_space<vmem>>, vector<1x512xf32>
    %49 = vector.broadcast %48 : vector<1x512xf32> to vector<3x512xf32>
    %50 = arith.mulf %47, %49 : vector<3x512xf32>
    %c24 = arith.constant 24 : index
    %c0_33 = arith.constant 0 : index
    %51 = vector.load %arg11[%c24, %c0_33] : memref<27x512xf32, #tpu.memory_space<vmem>>, vector<3x512xf32>
    tpu.vector_store %arg11[%c24, %c0_33], %50 {strides = array<i32>} : memref<27x512xf32, #tpu.memory_space<vmem>>, vector<3x512xf32>,
    %c0_34 = arith.constant 0 : index
    %c0_35 = arith.constant 0 : index
    %52 = vector.load %arg11[%c0_34, %c0_35] : memref<27x512xf32, #tpu.memory_space<vmem>>, vector<27x512xf32>
    %cst = arith.constant dense<0.000000e+00> : vector<16x512xf32>
    %53 = tpu.matmul %0, %52, %cst {dimension_numbers = #tpu.dot_dimension_numbers<[1], [0], [0], [1], [0, 0, 1, 1], [], []>} : vector<16x27xf32>, vector<27x512xf32>, vector<16x512xf32> -> vector<16x512xf32>
    %54 = vector.broadcast %2 : vector<16x1xf32> to vector<16x512xf32>
    %55 = arith.addf %53, %54 : vector<16x512xf32>
    %56 = math.tanh %55 : vector<16x512xf32>
    %57 = vector.broadcast %3 : vector<16x1xf32> to vector<16x512xf32>
    %58 = arith.mulf %56, %57 : vector<16x512xf32>
    %59 = vector.broadcast %4 : vector<16x1xf32> to vector<16x512xf32>
    %60 = arith.addf %58, %59 : vector<16x512xf32>
    %61 = arith.truncf %60 : vector<16x512xf32> to vector<16x512xbf16>
    %cst_36 = arith.constant dense<0.000000e+00> : vector<27x512xf32>
    %62 = tpu.matmul %1, %61, %cst_36 {dimension_numbers = #tpu.dot_dimension_numbers<[1], [0], [0], [1], [0, 0, 1, 1], [], []>} : vector<27x16xbf16>, vector<16x512xbf16>, vector<27x512xf32> -> vector<27x512xf32>
    %63 = vector.extract_strided_slice %62 {offsets = [12, 0], sizes = [3, 512], strides = [1, 1]} : vector<27x512xf32> to vector<3x512xf32>
    %64 = vector.extract_strided_slice %62 {offsets = [0, 0], sizes = [3, 512], strides = [1, 1]} : vector<27x512xf32> to vector<3x512xf32>
    %c17_i32_37 = arith.constant 17 : i32
    %65 = tpu.dynamic_rotate %64 by %c17_i32_37 dim 1 : vector<3x512xf32>, i32 -> vector<3x512xf32>
    %c0_38 = arith.constant 0 : index
    %c0_39 = arith.constant 0 : index
    %66 = vector.load %arg9[%c0_38, %c0_39] : memref<8x512xf32, #tpu.memory_space<vmem>>, vector<1x512xf32>
    %67 = vector.broadcast %66 : vector<1x512xf32> to vector<3x512xf32>
    %68 = arith.mulf %65, %67 : vector<3x512xf32>
    %69 = arith.addf %63, %68 : vector<3x512xf32>
    %70 = vector.extract_strided_slice %62 {offsets = [3, 0], sizes = [3, 512], strides = [1, 1]} : vector<27x512xf32> to vector<3x512xf32>
    %c16_i32_40 = arith.constant 16 : i32
    %71 = tpu.dynamic_rotate %70 by %c16_i32_40 dim 1 : vector<3x512xf32>, i32 -> vector<3x512xf32>
    %c1_41 = arith.constant 1 : index
    %c0_42 = arith.constant 0 : index
    %72 = vector.load %arg9[%c1_41, %c0_42] : memref<8x512xf32, #tpu.memory_space<vmem>>, vector<1x512xf32>
    %73 = vector.broadcast %72 : vector<1x512xf32> to vector<3x512xf32>
    %74 = arith.mulf %71, %73 : vector<3x512xf32>
    %75 = arith.addf %69, %74 : vector<3x512xf32>
    %76 = vector.extract_strided_slice %62 {offsets = [6, 0], sizes = [3, 512], strides = [1, 1]} : vector<27x512xf32> to vector<3x512xf32>
    %c15_i32_43 = arith.constant 15 : i32
    %77 = tpu.dynamic_rotate %76 by %c15_i32_43 dim 1 : vector<3x512xf32>, i32 -> vector<3x512xf32>
    %c2_44 = arith.constant 2 : index
    %c0_45 = arith.constant 0 : index
    %78 = vector.load %arg9[%c2_44, %c0_45] : memref<8x512xf32, #tpu.memory_space<vmem>>, vector<1x512xf32>
    %79 = vector.broadcast %78 : vector<1x512xf32> to vector<3x512xf32>
    %80 = arith.mulf %77, %79 : vector<3x512xf32>
    %81 = arith.addf %75, %80 : vector<3x512xf32>
    %82 = vector.extract_strided_slice %62 {offsets = [9, 0], sizes = [3, 512], strides = [1, 1]} : vector<27x512xf32> to vector<3x512xf32>
    %c1_i32_46 = arith.constant 1 : i32
    %83 = tpu.dynamic_rotate %82 by %c1_i32_46 dim 1 : vector<3x512xf32>, i32 -> vector<3x512xf32>
    %c3_47 = arith.constant 3 : index
    %c0_48 = arith.constant 0 : index
    %84 = vector.load %arg9[%c3_47, %c0_48] : memref<8x512xf32, #tpu.memory_space<vmem>>, vector<1x512xf32>
    %85 = vector.broadcast %84 : vector<1x512xf32> to vector<3x512xf32>
    %86 = arith.mulf %83, %85 : vector<3x512xf32>
    %87 = arith.addf %81, %86 : vector<3x512xf32>
    %88 = vector.extract_strided_slice %62 {offsets = [15, 0], sizes = [3, 512], strides = [1, 1]} : vector<27x512xf32> to vector<3x512xf32>
    %c511_i32_49 = arith.constant 511 : i32
    %89 = tpu.dynamic_rotate %88 by %c511_i32_49 dim 1 : vector<3x512xf32>, i32 -> vector<3x512xf32>
    %c4_50 = arith.constant 4 : index
    %c0_51 = arith.constant 0 : index
    %90 = vector.load %arg9[%c4_50, %c0_51] : memref<8x512xf32, #tpu.memory_space<vmem>>, vector<1x512xf32>
    %91 = vector.broadcast %90 : vector<1x512xf32> to vector<3x512xf32>
    %92 = arith.mulf %89, %91 : vector<3x512xf32>
    %93 = arith.addf %87, %92 : vector<3x512xf32>
    %94 = vector.extract_strided_slice %62 {offsets = [18, 0], sizes = [3, 512], strides = [1, 1]} : vector<27x512xf32> to vector<3x512xf32>
    %c497_i32_52 = arith.constant 497 : i32
    %95 = tpu.dynamic_rotate %94 by %c497_i32_52 dim 1 : vector<3x512xf32>, i32 -> vector<3x512xf32>
    %c5_53 = arith.constant 5 : index
    %c0_54 = arith.constant 0 : index
    %96 = vector.load %arg9[%c5_53, %c0_54] : memref<8x512xf32, #tpu.memory_space<vmem>>, vector<1x512xf32>
    %97 = vector.broadcast %96 : vector<1x512xf32> to vector<3x512xf32>
    %98 = arith.mulf %95, %97 : vector<3x512xf32>
    %99 = arith.addf %93, %98 : vector<3x512xf32>
    %100 = vector.extract_strided_slice %62 {offsets = [21, 0], sizes = [3, 512], strides = [1, 1]} : vector<27x512xf32> to vector<3x512xf32>
    %c496_i32_55 = arith.constant 496 : i32
    %101 = tpu.dynamic_rotate %100 by %c496_i32_55 dim 1 : vector<3x512xf32>, i32 -> vector<3x512xf32>
    %c6_56 = arith.constant 6 : index
    %c0_57 = arith.constant 0 : index
    %102 = vector.load %arg9[%c6_56, %c0_57] : memref<8x512xf32, #tpu.memory_space<vmem>>, vector<1x512xf32>
    %103 = vector.broadcast %102 : vector<1x512xf32> to vector<3x512xf32>
    %104 = arith.mulf %101, %103 : vector<3x512xf32>
    %105 = arith.addf %99, %104 : vector<3x512xf32>
    %106 = vector.extract_strided_slice %62 {offsets = [24, 0], sizes = [3, 512], strides = [1, 1]} : vector<27x512xf32> to vector<3x512xf32>
    %c495_i32_58 = arith.constant 495 : i32
    %107 = tpu.dynamic_rotate %106 by %c495_i32_58 dim 1 : vector<3x512xf32>, i32 -> vector<3x512xf32>
    %c7_59 = arith.constant 7 : index
    %c0_60 = arith.constant 0 : index
    %108 = vector.load %arg9[%c7_59, %c0_60] : memref<8x512xf32, #tpu.memory_space<vmem>>, vector<1x512xf32>
    %109 = vector.broadcast %108 : vector<1x512xf32> to vector<3x512xf32>
    %110 = arith.mulf %107, %109 : vector<3x512xf32>
    %111 = arith.addf %105, %110 : vector<3x512xf32>
    %112 = vector.broadcast %5 : vector<3x1xf32> to vector<3x512xf32>
    %113 = arith.addf %111, %112 : vector<3x512xf32>
    %114 = math.tanh %113 : vector<3x512xf32>
    %cst_61 = arith.constant 5.000000e-02 : f32
    %115 = vector.broadcast %cst_61 : f32 to vector<3x512xf32>
    %116 = arith.mulf %115, %114 : vector<3x512xf32>
    %117 = arith.addf %10, %116 : vector<3x512xf32>
    %c0_62 = arith.constant 0 : index
    %c0_63 = arith.constant 0 : index
    %118 = arith.index_cast %7 : i32 to index
    %119 = vector.load %arg10[%c0_62, %c0_63, %118] : memref<1x3x1024xf32, #tpu.memory_space<vmem>>, vector<1x3x512xf32>
    %120 = vector.shape_cast %119 : vector<1x3x512xf32> to vector<3x512xf32>
    %121 = vector.shape_cast %117 : vector<3x512xf32> to vector<1x3x512xf32>
    tpu.vector_store %arg10[%c0_62, %c0_63, %118], %121 {strides = array<i32>} : memref<1x3x1024xf32, #tpu.memory_space<vmem>>, vector<1x3x512xf32>,
    %c1_i32_64 = arith.constant 1 : i32
    %c512_i32_65 = arith.constant 512 : i32
    %122 = arith.muli %c1_i32_64, %c512_i32_65 : i32
    %123 = tpu.assume_multiple %122, 128 : i32
    %c0_66 = arith.constant 0 : index
    %c0_67 = arith.constant 0 : index
    %124 = arith.index_cast %123 : i32 to index
    %125 = vector.load %arg2[%c0_66, %c0_67, %124] : memref<1x3x1024xf32, #tpu.memory_space<vmem>>, vector<1x3x512xf32>
    %126 = vector.shape_cast %125 : vector<1x3x512xf32> to vector<3x512xf32>
    %c17_i32_68 = arith.constant 17 : i32
    %127 = tpu.dynamic_rotate %126 by %c17_i32_68 dim 1 : vector<3x512xf32>, i32 -> vector<3x512xf32>
    %c0_69 = arith.constant 0 : index
    %c0_70 = arith.constant 0 : index
    %128 = vector.load %arg9[%c0_69, %c0_70] : memref<8x512xf32, #tpu.memory_space<vmem>>, vector<1x512xf32>
    %129 = vector.broadcast %128 : vector<1x512xf32> to vector<3x512xf32>
    %130 = arith.mulf %127, %129 : vector<3x512xf32>
    %c0_71 = arith.constant 0 : index
    %c0_72 = arith.constant 0 : index
    %131 = vector.load %arg11[%c0_71, %c0_72] : memref<27x512xf32, #tpu.memory_space<vmem>>, vector<3x512xf32>
    tpu.vector_store %arg11[%c0_71, %c0_72], %130 {strides = array<i32>} : memref<27x512xf32, #tpu.memory_space<vmem>>, vector<3x512xf32>,
    %c16_i32_73 = arith.constant 16 : i32
    %132 = tpu.dynamic_rotate %126 by %c16_i32_73 dim 1 : vector<3x512xf32>, i32 -> vector<3x512xf32>
    %c1_74 = arith.constant 1 : index
    %c0_75 = arith.constant 0 : index
    %133 = vector.load %arg9[%c1_74, %c0_75] : memref<8x512xf32, #tpu.memory_space<vmem>>, vector<1x512xf32>
    %134 = vector.broadcast %133 : vector<1x512xf32> to vector<3x512xf32>
    %135 = arith.mulf %132, %134 : vector<3x512xf32>
    %c3_76 = arith.constant 3 : index
    %c0_77 = arith.constant 0 : index
    %136 = vector.load %arg11[%c3_76, %c0_77] : memref<27x512xf32, #tpu.memory_space<vmem>>, vector<3x512xf32>
    tpu.vector_store %arg11[%c3_76, %c0_77], %135 {strides = array<i32>} : memref<27x512xf32, #tpu.memory_space<vmem>>, vector<3x512xf32>,
    %c15_i32_78 = arith.constant 15 : i32
    %137 = tpu.dynamic_rotate %126 by %c15_i32_78 dim 1 : vector<3x512xf32>, i32 -> vector<3x512xf32>
    %c2_79 = arith.constant 2 : index
    %c0_80 = arith.constant 0 : index
    %138 = vector.load %arg9[%c2_79, %c0_80] : memref<8x512xf32, #tpu.memory_space<vmem>>, vector<1x512xf32>
    %139 = vector.broadcast %138 : vector<1x512xf32> to vector<3x512xf32>
    %140 = arith.mulf %137, %139 : vector<3x512xf32>
    %c6_81 = arith.constant 6 : index
    %c0_82 = arith.constant 0 : index
    %141 = vector.load %arg11[%c6_81, %c0_82] : memref<27x512xf32, #tpu.memory_space<vmem>>, vector<3x512xf32>
    tpu.vector_store %arg11[%c6_81, %c0_82], %140 {strides = array<i32>} : memref<27x512xf32, #tpu.memory_space<vmem>>, vector<3x512xf32>,
    %c1_i32_83 = arith.constant 1 : i32
    %142 = tpu.dynamic_rotate %126 by %c1_i32_83 dim 1 : vector<3x512xf32>, i32 -> vector<3x512xf32>
    %c3_84 = arith.constant 3 : index
    %c0_85 = arith.constant 0 : index
    %143 = vector.load %arg9[%c3_84, %c0_85] : memref<8x512xf32, #tpu.memory_space<vmem>>, vector<1x512xf32>
    %144 = vector.broadcast %143 : vector<1x512xf32> to vector<3x512xf32>
    %145 = arith.mulf %142, %144 : vector<3x512xf32>
    %c9_86 = arith.constant 9 : index
    %c0_87 = arith.constant 0 : index
    %146 = vector.load %arg11[%c9_86, %c0_87] : memref<27x512xf32, #tpu.memory_space<vmem>>, vector<3x512xf32>
    tpu.vector_store %arg11[%c9_86, %c0_87], %145 {strides = array<i32>} : memref<27x512xf32, #tpu.memory_space<vmem>>, vector<3x512xf32>,
    %c12_88 = arith.constant 12 : index
    %c0_89 = arith.constant 0 : index
    %147 = vector.load %arg11[%c12_88, %c0_89] : memref<27x512xf32, #tpu.memory_space<vmem>>, vector<3x512xf32>
    tpu.vector_store %arg11[%c12_88, %c0_89], %126 {strides = array<i32>} : memref<27x512xf32, #tpu.memory_space<vmem>>, vector<3x512xf32>,
    %c511_i32_90 = arith.constant 511 : i32
    %148 = tpu.dynamic_rotate %126 by %c511_i32_90 dim 1 : vector<3x512xf32>, i32 -> vector<3x512xf32>
    %c4_91 = arith.constant 4 : index
    %c0_92 = arith.constant 0 : index
    %149 = vector.load %arg9[%c4_91, %c0_92] : memref<8x512xf32, #tpu.memory_space<vmem>>, vector<1x512xf32>
    %150 = vector.broadcast %149 : vector<1x512xf32> to vector<3x512xf32>
    %151 = arith.mulf %148, %150 : vector<3x512xf32>
    %c15_93 = arith.constant 15 : index
    %c0_94 = arith.constant 0 : index
    %152 = vector.load %arg11[%c15_93, %c0_94] : memref<27x512xf32, #tpu.memory_space<vmem>>, vector<3x512xf32>
    tpu.vector_store %arg11[%c15_93, %c0_94], %151 {strides = array<i32>} : memref<27x512xf32, #tpu.memory_space<vmem>>, vector<3x512xf32>,
    %c497_i32_95 = arith.constant 497 : i32
    %153 = tpu.dynamic_rotate %126 by %c497_i32_95 dim 1 : vector<3x512xf32>, i32 -> vector<3x512xf32>
    %c5_96 = arith.constant 5 : index
    %c0_97 = arith.constant 0 : index
    %154 = vector.load %arg9[%c5_96, %c0_97] : memref<8x512xf32, #tpu.memory_space<vmem>>, vector<1x512xf32>
    %155 = vector.broadcast %154 : vector<1x512xf32> to vector<3x512xf32>
    %156 = arith.mulf %153, %155 : vector<3x512xf32>
    %c18_98 = arith.constant 18 : index
    %c0_99 = arith.constant 0 : index
    %157 = vector.load %arg11[%c18_98, %c0_99] : memref<27x512xf32, #tpu.memory_space<vmem>>, vector<3x512xf32>
    tpu.vector_store %arg11[%c18_98, %c0_99], %156 {strides = array<i32>} : memref<27x512xf32, #tpu.memory_space<vmem>>, vector<3x512xf32>,
    %c496_i32_100 = arith.constant 496 : i32
    %158 = tpu.dynamic_rotate %126 by %c496_i32_100 dim 1 : vector<3x512xf32>, i32 -> vector<3x512xf32>
    %c6_101 = arith.constant 6 : index
    %c0_102 = arith.constant 0 : index
    %159 = vector.load %arg9[%c6_101, %c0_102] : memref<8x512xf32, #tpu.memory_space<vmem>>, vector<1x512xf32>
    %160 = vector.broadcast %159 : vector<1x512xf32> to vector<3x512xf32>
    %161 = arith.mulf %158, %160 : vector<3x512xf32>
    %c21_103 = arith.constant 21 : index
    %c0_104 = arith.constant 0 : index
    %162 = vector.load %arg11[%c21_103, %c0_104] : memref<27x512xf32, #tpu.memory_space<vmem>>, vector<3x512xf32>
    tpu.vector_store %arg11[%c21_103, %c0_104], %161 {strides = array<i32>} : memref<27x512xf32, #tpu.memory_space<vmem>>, vector<3x512xf32>,
    %c495_i32_105 = arith.constant 495 : i32
    %163 = tpu.dynamic_rotate %126 by %c495_i32_105 dim 1 : vector<3x512xf32>, i32 -> vector<3x512xf32>
    %c7_106 = arith.constant 7 : index
    %c0_107 = arith.constant 0 : index
    %164 = vector.load %arg9[%c7_106, %c0_107] : memref<8x512xf32, #tpu.memory_space<vmem>>, vector<1x512xf32>
    %165 = vector.broadcast %164 : vector<1x512xf32> to vector<3x512xf32>
    %166 = arith.mulf %163, %165 : vector<3x512xf32>
    %c24_108 = arith.constant 24 : index
    %c0_109 = arith.constant 0 : index
    %167 = vector.load %arg11[%c24_108, %c0_109] : memref<27x512xf32, #tpu.memory_space<vmem>>, vector<3x512xf32>
    tpu.vector_store %arg11[%c24_108, %c0_109], %166 {strides = array<i32>} : memref<27x512xf32, #tpu.memory_space<vmem>>, vector<3x512xf32>,
    %c0_110 = arith.constant 0 : index
    %c0_111 = arith.constant 0 : index
    %168 = vector.load %arg11[%c0_110, %c0_111] : memref<27x512xf32, #tpu.memory_space<vmem>>, vector<27x512xf32>
    %cst_112 = arith.constant dense<0.000000e+00> : vector<16x512xf32>
    %169 = tpu.matmul %0, %168, %cst_112 {dimension_numbers = #tpu.dot_dimension_numbers<[1], [0], [0], [1], [0, 0, 1, 1], [], []>} : vector<16x27xf32>, vector<27x512xf32>, vector<16x512xf32> -> vector<16x512xf32>
    %170 = vector.broadcast %2 : vector<16x1xf32> to vector<16x512xf32>
    %171 = arith.addf %169, %170 : vector<16x512xf32>
    %172 = math.tanh %171 : vector<16x512xf32>
    %173 = vector.broadcast %3 : vector<16x1xf32> to vector<16x512xf32>
    %174 = arith.mulf %172, %173 : vector<16x512xf32>
    %175 = vector.broadcast %4 : vector<16x1xf32> to vector<16x512xf32>
    %176 = arith.addf %174, %175 : vector<16x512xf32>
    %177 = arith.truncf %176 : vector<16x512xf32> to vector<16x512xbf16>
    %cst_113 = arith.constant dense<0.000000e+00> : vector<27x512xf32>
    %178 = tpu.matmul %1, %177, %cst_113 {dimension_numbers = #tpu.dot_dimension_numbers<[1], [0], [0], [1], [0, 0, 1, 1], [], []>} : vector<27x16xbf16>, vector<16x512xbf16>, vector<27x512xf32> -> vector<27x512xf32>
    %179 = vector.extract_strided_slice %178 {offsets = [12, 0], sizes = [3, 512], strides = [1, 1]} : vector<27x512xf32> to vector<3x512xf32>
    %180 = vector.extract_strided_slice %178 {offsets = [0, 0], sizes = [3, 512], strides = [1, 1]} : vector<27x512xf32> to vector<3x512xf32>
    %c17_i32_114 = arith.constant 17 : i32
    %181 = tpu.dynamic_rotate %180 by %c17_i32_114 dim 1 : vector<3x512xf32>, i32 -> vector<3x512xf32>
    %c0_115 = arith.constant 0 : index
    %c0_116 = arith.constant 0 : index
    %182 = vector.load %arg9[%c0_115, %c0_116] : memref<8x512xf32, #tpu.memory_space<vmem>>, vector<1x512xf32>
    %183 = vector.broadcast %182 : vector<1x512xf32> to vector<3x512xf32>
    %184 = arith.mulf %181, %183 : vector<3x512xf32>
    %185 = arith.addf %179, %184 : vector<3x512xf32>
    %186 = vector.extract_strided_slice %178 {offsets = [3, 0], sizes = [3, 512], strides = [1, 1]} : vector<27x512xf32> to vector<3x512xf32>
    %c16_i32_117 = arith.constant 16 : i32
    %187 = tpu.dynamic_rotate %186 by %c16_i32_117 dim 1 : vector<3x512xf32>, i32 -> vector<3x512xf32>
    %c1_118 = arith.constant 1 : index
    %c0_119 = arith.constant 0 : index
    %188 = vector.load %arg9[%c1_118, %c0_119] : memref<8x512xf32, #tpu.memory_space<vmem>>, vector<1x512xf32>
    %189 = vector.broadcast %188 : vector<1x512xf32> to vector<3x512xf32>
    %190 = arith.mulf %187, %189 : vector<3x512xf32>
    %191 = arith.addf %185, %190 : vector<3x512xf32>
    %192 = vector.extract_strided_slice %178 {offsets = [6, 0], sizes = [3, 512], strides = [1, 1]} : vector<27x512xf32> to vector<3x512xf32>
    %c15_i32_120 = arith.constant 15 : i32
    %193 = tpu.dynamic_rotate %192 by %c15_i32_120 dim 1 : vector<3x512xf32>, i32 -> vector<3x512xf32>
    %c2_121 = arith.constant 2 : index
    %c0_122 = arith.constant 0 : index
    %194 = vector.load %arg9[%c2_121, %c0_122] : memref<8x512xf32, #tpu.memory_space<vmem>>, vector<1x512xf32>
    %195 = vector.broadcast %194 : vector<1x512xf32> to vector<3x512xf32>
    %196 = arith.mulf %193, %195 : vector<3x512xf32>
    %197 = arith.addf %191, %196 : vector<3x512xf32>
    %198 = vector.extract_strided_slice %178 {offsets = [9, 0], sizes = [3, 512], strides = [1, 1]} : vector<27x512xf32> to vector<3x512xf32>
    %c1_i32_123 = arith.constant 1 : i32
    %199 = tpu.dynamic_rotate %198 by %c1_i32_123 dim 1 : vector<3x512xf32>, i32 -> vector<3x512xf32>
    %c3_124 = arith.constant 3 : index
    %c0_125 = arith.constant 0 : index
    %200 = vector.load %arg9[%c3_124, %c0_125] : memref<8x512xf32, #tpu.memory_space<vmem>>, vector<1x512xf32>
    %201 = vector.broadcast %200 : vector<1x512xf32> to vector<3x512xf32>
    %202 = arith.mulf %199, %201 : vector<3x512xf32>
    %203 = arith.addf %197, %202 : vector<3x512xf32>
    %204 = vector.extract_strided_slice %178 {offsets = [15, 0], sizes = [3, 512], strides = [1, 1]} : vector<27x512xf32> to vector<3x512xf32>
    %c511_i32_126 = arith.constant 511 : i32
    %205 = tpu.dynamic_rotate %204 by %c511_i32_126 dim 1 : vector<3x512xf32>, i32 -> vector<3x512xf32>
    %c4_127 = arith.constant 4 : index
    %c0_128 = arith.constant 0 : index
    %206 = vector.load %arg9[%c4_127, %c0_128] : memref<8x512xf32, #tpu.memory_space<vmem>>, vector<1x512xf32>
    %207 = vector.broadcast %206 : vector<1x512xf32> to vector<3x512xf32>
    %208 = arith.mulf %205, %207 : vector<3x512xf32>
    %209 = arith.addf %203, %208 : vector<3x512xf32>
    %210 = vector.extract_strided_slice %178 {offsets = [18, 0], sizes = [3, 512], strides = [1, 1]} : vector<27x512xf32> to vector<3x512xf32>
    %c497_i32_129 = arith.constant 497 : i32
    %211 = tpu.dynamic_rotate %210 by %c497_i32_129 dim 1 : vector<3x512xf32>, i32 -> vector<3x512xf32>
    %c5_130 = arith.constant 5 : index
    %c0_131 = arith.constant 0 : index
    %212 = vector.load %arg9[%c5_130, %c0_131] : memref<8x512xf32, #tpu.memory_space<vmem>>, vector<1x512xf32>
    %213 = vector.broadcast %212 : vector<1x512xf32> to vector<3x512xf32>
    %214 = arith.mulf %211, %213 : vector<3x512xf32>
    %215 = arith.addf %209, %214 : vector<3x512xf32>
    %216 = vector.extract_strided_slice %178 {offsets = [21, 0], sizes = [3, 512], strides = [1, 1]} : vector<27x512xf32> to vector<3x512xf32>
    %c496_i32_132 = arith.constant 496 : i32
    %217 = tpu.dynamic_rotate %216 by %c496_i32_132 dim 1 : vector<3x512xf32>, i32 -> vector<3x512xf32>
    %c6_133 = arith.constant 6 : index
    %c0_134 = arith.constant 0 : index
    %218 = vector.load %arg9[%c6_133, %c0_134] : memref<8x512xf32, #tpu.memory_space<vmem>>, vector<1x512xf32>
    %219 = vector.broadcast %218 : vector<1x512xf32> to vector<3x512xf32>
    %220 = arith.mulf %217, %219 : vector<3x512xf32>
    %221 = arith.addf %215, %220 : vector<3x512xf32>
    %222 = vector.extract_strided_slice %178 {offsets = [24, 0], sizes = [3, 512], strides = [1, 1]} : vector<27x512xf32> to vector<3x512xf32>
    %c495_i32_135 = arith.constant 495 : i32
    %223 = tpu.dynamic_rotate %222 by %c495_i32_135 dim 1 : vector<3x512xf32>, i32 -> vector<3x512xf32>
    %c7_136 = arith.constant 7 : index
    %c0_137 = arith.constant 0 : index
    %224 = vector.load %arg9[%c7_136, %c0_137] : memref<8x512xf32, #tpu.memory_space<vmem>>, vector<1x512xf32>
    %225 = vector.broadcast %224 : vector<1x512xf32> to vector<3x512xf32>
    %226 = arith.mulf %223, %225 : vector<3x512xf32>
    %227 = arith.addf %221, %226 : vector<3x512xf32>
    %228 = vector.broadcast %5 : vector<3x1xf32> to vector<3x512xf32>
    %229 = arith.addf %227, %228 : vector<3x512xf32>
    %230 = math.tanh %229 : vector<3x512xf32>
    %cst_138 = arith.constant 5.000000e-02 : f32
    %231 = vector.broadcast %cst_138 : f32 to vector<3x512xf32>
    %232 = arith.mulf %231, %230 : vector<3x512xf32>
    %233 = arith.addf %126, %232 : vector<3x512xf32>
    %c0_139 = arith.constant 0 : index
    %c0_140 = arith.constant 0 : index
    %234 = arith.index_cast %123 : i32 to index
    %235 = vector.load %arg10[%c0_139, %c0_140, %234] : memref<1x3x1024xf32, #tpu.memory_space<vmem>>, vector<1x3x512xf32>
    %236 = vector.shape_cast %235 : vector<1x3x512xf32> to vector<3x512xf32>
    %237 = vector.shape_cast %233 : vector<3x512xf32> to vector<1x3x512xf32>
    tpu.vector_store %arg10[%c0_139, %c0_140, %234], %237 {strides = array<i32>} : memref<1x3x1024xf32, #tpu.memory_space<vmem>>, vector<1x3x512xf32>,
    %c2_i32 = arith.constant 2 : i32
    return
  }
  func.func @transform_0(%arg0: i32, %arg1: i32) -> (i32, i32, i32) {
    %c0_i32 = arith.constant 0 : i32
    %c0_i32_0 = arith.constant 0 : i32
    return %arg0, %c0_i32, %arg1 : i32, i32, i32
  }
  func.func @transform_1(%arg0: i32, %arg1: i32) -> (i32, i32) {
    %c0_i32 = arith.constant 0 : i32
    %c0_i32_0 = arith.constant 0 : i32
    %c0_i32_1 = arith.constant 0 : i32
    return %c0_i32, %c0_i32_0 : i32, i32
  }
  func.func @transform_2(%arg0: i32, %arg1: i32) -> (i32, i32) {
    %c0_i32 = arith.constant 0 : i32
    %c0_i32_0 = arith.constant 0 : i32
    %c0_i32_1 = arith.constant 0 : i32
    return %c0_i32, %c0_i32_0 : i32, i32
  }
  func.func @transform_3(%arg0: i32, %arg1: i32) -> (i32, i32) {
    %c0_i32 = arith.constant 0 : i32
    %c0_i32_0 = arith.constant 0 : i32
    %c0_i32_1 = arith.constant 0 : i32
    return %c0_i32, %c0_i32_0 : i32, i32
  }
  func.func @transform_4(%arg0: i32, %arg1: i32) -> (i32, i32) {
    %c0_i32 = arith.constant 0 : i32
    %c0_i32_0 = arith.constant 0 : i32
    %c0_i32_1 = arith.constant 0 : i32
    return %c0_i32, %c0_i32_0 : i32, i32
  }
  func.func @transform_5(%arg0: i32, %arg1: i32) -> (i32, i32) {
    %c0_i32 = arith.constant 0 : i32
    %c0_i32_0 = arith.constant 0 : i32
    %c0_i32_1 = arith.constant 0 : i32
    return %c0_i32, %c0_i32_0 : i32, i32
  }
  func.func @transform_6(%arg0: i32, %arg1: i32) -> (i32, i32) {
    %c0_i32 = arith.constant 0 : i32
    %c0_i32_0 = arith.constant 0 : i32
    %c0_i32_1 = arith.constant 0 : i32
    return %c0_i32, %c0_i32_0 : i32, i32
  }
  func.func @transform_7(%arg0: i32, %arg1: i32) -> (i32, i32) {
    %c0_i32 = arith.constant 0 : i32
    %c0_i32_0 = arith.constant 0 : i32
    %c0_i32_1 = arith.constant 0 : i32
    return %c0_i32, %c0_i32_0 : i32, i32
  }
  func.func @transform_8(%arg0: i32, %arg1: i32) -> (i32, i32, i32) {
    %c0_i32 = arith.constant 0 : i32
    %c0_i32_0 = arith.constant 0 : i32
    return %arg0, %c0_i32, %arg1 : i32, i32, i32
  }
}

</mosaic_0001>

<llo_original>
// kernel: tpu_custom_call.1
$region0: #{tpu_custom_call.1}
  #allocation0 [shape = 'u32[]', space=smem, size = 0x4, offset = 0x4, fixed_abs, tag = 'smem constant byte address 0x4 - core index']
  #allocation1 [shape = 'u32[144,128]{1,0:T(1,128)}', space=vmem, size = 0x12000, scoped, tag = 'internal scratch']
  #allocation2 [shape = 'f32[27,512]{1,0:T(8,128)}', space=vmem, size = 0x10000, scoped, tag = 'scratch operand']
  %s0 = inlined_call_operand.vmem [shape: f32[2,3,1024], index: 0, kind: input, shape index: {}]
  %s1 = inlined_call_operand.vmem [shape: f32[16,27], index: 1, kind: input, shape index: {}]
  %s2 = inlined_call_operand.vmem [shape: f32[16,1], index: 2, kind: input, shape index: {}]
  %s3 = inlined_call_operand.vmem [shape: f32[16,1], index: 3, kind: input, shape index: {}]
  %s4 = inlined_call_operand.vmem [shape: f32[16,1], index: 4, kind: input, shape index: {}]
  %s5 = inlined_call_operand.vmem [shape: bf16[27,16], index: 5, kind: input, shape index: {}]
  %s6 = inlined_call_operand.vmem [shape: f32[3,1], index: 6, kind: input, shape index: {}]
  %s7 = inlined_call_operand.vmem [shape: f32[8,512], index: 7, kind: input, shape index: {}]
  %s8 = inlined_call_operand.vmem [shape: f32[2,3,1024], index: 8, kind: output, shape index: {}]
  %s9 = sld [smem:[#allocation0]]
  $region65: #{tpu_custom_call.1} parent=0
    _
  %s11 = ssub.s32 1, %s9
  %s12 = scalar_select 0, %s11, %s9
  loop: start=0, step=1, limit=4
  $region2: #{tpu_custom_call.1} parent=0 // loop_pre_header
    _
  $region3: #{tpu_custom_call.1} parent=0 // loop_header
    %s14 = sphi 0, %s18
    %p15 = scmp.ge.s32.totalorder %s14, 4
    %s21 = sphi 0, %s33
    %s22 = sphi 0, %s29
    %s23 = sphi 0, %s21
    %s24 = sphi 0, %s22
    %s25 = sphi 0, %s23
    %s26 = sphi 0, %s24
    %s38 = sphi 0, %s40
    %s41 = sphi 0, %s38
    %s42 = sphi 0, %s41
    %s58 = sphi 0, %s42
    %s62 = sphi 0, %s62
    %s64 = sphi 0, %s62
    %s65 = sphi 0, %s64
    %s79 = sphi 0, %s65
    %s83 = sphi 0, %s83
    %s85 = sphi 0, %s83
    %s86 = sphi 0, %s85
    %s100 = sphi 0, %s86
    %s104 = sphi 0, %s104
    %s106 = sphi 0, %s104
    %s107 = sphi 0, %s106
    %s121 = sphi 0, %s107
    %s125 = sphi 0, %s125
    %s127 = sphi 0, %s125
    %s128 = sphi 0, %s127
    %s142 = sphi 0, %s128
    %s146 = sphi 0, %s146
    %s148 = sphi 0, %s146
    %s149 = sphi 0, %s148
    %s163 = sphi 0, %s149
    %s167 = sphi 0, %s167
    %s169 = sphi 0, %s167
    %s170 = sphi 0, %s169
    %s184 = sphi 0, %s170
    %s188 = sphi 0, %s188
    %s190 = sphi 0, %s188
    %s191 = sphi 0, %s190
    %s205 = sphi 0, %s191
    %s213 = sphi 0, %s215
    %s216 = sphi 0, %s213
    %s217 = sphi 0, %s216
    %s233 = sphi 0, %s217
  $region4: #{tpu_custom_call.1} parent=0 // loop_header_branch
    %17 = sbr.rel (%p15) target = $region8
  $region5: #{tpu_custom_call.1} parent=0 // loop_body
    %s19 = ssub.s32 %s14, 1
    %s20 = ssub.s32 %s14, 2
    %s27 = sadd.s32 1, %s22
    %p28 = scmp.ge.s32.totalorder %s27, 1
    %s29 = scalar_select %p28, 0, %s27
    %s30 = sadd.s32 1, %s21
    %s31 = scalar_select %p28, %s30, %s21
    %p32 = scmp.ge.s32.totalorder %s31, 2
    %s33 = scalar_select %p32, 0, %s31
    %s34 = ssub.s32 %s21, %s33
    %s35 = ssub.s32 %s22, %s29
    %s36 = sor.u32 %s34, %s35
    %p37 = scmp.eq.s32.totalorder %s36, 0
    %s39 = sadd.s32 %s38, 1
    %s40 = scalar_select %p37, %s38, %s39
    %p43 = pneg %p37
    %p44 = scmp.eq.s32.totalorder %s14, 1
    %p45 = por %p43, %p44
    %p46 = scmp.ne.s32.totalorder %s38, %s41
    %p47 = scmp.eq.s32.totalorder %s14, 0
    %p48 = por %p46, %p47
    %p49 = scmp.ne.s32.totalorder %s38, %s41
    %p50 = scmp.eq.s32.totalorder %s19, 1
    %p51 = por %p49, %p50
    %p52 = scmp.ne.s32.totalorder %s41, %s42
    %p53 = scmp.eq.s32.totalorder %s19, 0
    %p54 = por %p52, %p53
    %p55 = scmp.ne.s32.totalorder %s41, %s42
    %p56 = scmp.eq.s32.totalorder %s20, 1
    %p57 = por %p55, %p56
    %p59 = scmp.ne.s32.totalorder %s42, %s58
    %p60 = scmp.eq.s32.totalorder %s20, 0
    %p61 = por %p59, %p60
    %s63 = sadd.s32 %s62, 1
    %p66 = scmp.eq.s32.totalorder %s14, 1
    %p67 = scmp.ne.s32.totalorder %s62, %s64
    %p68 = scmp.eq.s32.totalorder %s14, 0
    %p69 = por %p67, %p68
    %p70 = scmp.ne.s32.totalorder %s62, %s64
    %p71 = scmp.eq.s32.totalorder %s19, 1
    %p72 = por %p70, %p71
    %p73 = scmp.ne.s32.totalorder %s64, %s65
    %p74 = scmp.eq.s32.totalorder %s19, 0
    %p75 = por %p73, %p74
    %p76 = scmp.ne.s32.totalorder %s64, %s65
    %p77 = scmp.eq.s32.totalorder %s20, 1
    %p78 = por %p76, %p77
    %p80 = scmp.ne.s32.totalorder %s65, %s79
    %p81 = scmp.eq.s32.totalorder %s20, 0
    %p82 = por %p80, %p81
    %s84 = sadd.s32 %s83, 1
    %p87 = scmp.eq.s32.totalorder %s14, 1
    %p88 = scmp.ne.s32.totalorder %s83, %s85
    %p89 = scmp.eq.s32.totalorder %s14, 0
    %p90 = por %p88, %p89
    %p91 = scmp.ne.s32.totalorder %s83, %s85
    %p92 = scmp.eq.s32.totalorder %s19, 1
    %p93 = por %p91, %p92
    %p94 = scmp.ne.s32.totalorder %s85, %s86
    %p95 = scmp.eq.s32.totalorder %s19, 0
    %p96 = por %p94, %p95
    %p97 = scmp.ne.s32.totalorder %s85, %s86
    %p98 = scmp.eq.s32.totalorder %s20, 1
    %p99 = por %p97, %p98
    %p101 = scmp.ne.s32.totalorder %s86, %s100
    %p102 = scmp.eq.s32.totalorder %s20, 0
    %p103 = por %p101, %p102
    %s105 = sadd.s32 %s104, 1
    %p108 = scmp.eq.s32.totalorder %s14, 1
    %p109 = scmp.ne.s32.totalorder %s104, %s106
    %p110 = scmp.eq.s32.totalorder %s14, 0
    %p111 = por %p109, %p110
    %p112 = scmp.ne.s32.totalorder %s104, %s106
    %p113 = scmp.eq.s32.totalorder %s19, 1
    %p114 = por %p112, %p113
    %p115 = scmp.ne.s32.totalorder %s106, %s107
    %p116 = scmp.eq.s32.totalorder %s19, 0
    %p117 = por %p115, %p116
    %p118 = scmp.ne.s32.totalorder %s106, %s107
    %p119 = scmp.eq.s32.totalorder %s20, 1
    %p120 = por %p118, %p119
    %p122 = scmp.ne.s32.totalorder %s107, %s121
    %p123 = scmp.eq.s32.totalorder %s20, 0
    %p124 = por %p122, %p123
    %s126 = sadd.s32 %s125, 1
    %p129 = scmp.eq.s32.totalorder %s14, 1
    %p130 = scmp.ne.s32.totalorder %s125, %s127
    %p131 = scmp.eq.s32.totalorder %s14, 0
    %p132 = por %p130, %p131
    %p133 = scmp.ne.s32.totalorder %s125, %s127
    %p134 = scmp.eq.s32.totalorder %s19, 1
    %p135 = por %p133, %p134
    %p136 = scmp.ne.s32.totalorder %s127, %s128
    %p137 = scmp.eq.s32.totalorder %s19, 0
    %p138 = por %p136, %p137
    %p139 = scmp.ne.s32.totalorder %s127, %s128
    %p140 = scmp.eq.s32.totalorder %s20, 1
    %p141 = por %p139, %p140
    %p143 = scmp.ne.s32.totalorder %s128, %s142
    %p144 = scmp.eq.s32.totalorder %s20, 0
    %p145 = por %p143, %p144
    %s147 = sadd.s32 %s146, 1
    %p150 = scmp.eq.s32.totalorder %s14, 1
    %p151 = scmp.ne.s32.totalorder %s146, %s148
    %p152 = scmp.eq.s32.totalorder %s14, 0
    %p153 = por %p151, %p152
    %p154 = scmp.ne.s32.totalorder %s146, %s148
    %p155 = scmp.eq.s32.totalorder %s19, 1
    %p156 = por %p154, %p155
    %p157 = scmp.ne.s32.totalorder %s148, %s149
    %p158 = scmp.eq.s32.totalorder %s19, 0
    %p159 = por %p157, %p158
    %p160 = scmp.ne.s32.totalorder %s148, %s149
    %p161 = scmp.eq.s32.totalorder %s20, 1
    %p162 = por %p160, %p161
    %p164 = scmp.ne.s32.totalorder %s149, %s163
    %p165 = scmp.eq.s32.totalorder %s20, 0
    %p166 = por %p164, %p165
    %s168 = sadd.s32 %s167, 1
    %p171 = scmp.eq.s32.totalorder %s14, 1
    %p172 = scmp.ne.s32.totalorder %s167, %s169
    %p173 = scmp.eq.s32.totalorder %s14, 0
    %p174 = por %p172, %p173
    %p175 = scmp.ne.s32.totalorder %s167, %s169
    %p176 = scmp.eq.s32.totalorder %s19, 1
    %p177 = por %p175, %p176
    %p178 = scmp.ne.s32.totalorder %s169, %s170
    %p179 = scmp.eq.s32.totalorder %s19, 0
    %p180 = por %p178, %p179
    %p181 = scmp.ne.s32.totalorder %s169, %s170
    %p182 = scmp.eq.s32.totalorder %s20, 1
    %p183 = por %p181, %p182
    %p185 = scmp.ne.s32.totalorder %s170, %s184
    %p186 = scmp.eq.s32.totalorder %s20, 0
    %p187 = por %p185, %p186
    %s189 = sadd.s32 %s188, 1
    %p192 = scmp.eq.s32.totalorder %s14, 1
    %p193 = scmp.ne.s32.totalorder %s188, %s190
    %p194 = scmp.eq.s32.totalorder %s14, 0
    %p195 = por %p193, %p194
    %p196 = scmp.ne.s32.totalorder %s188, %s190
    %p197 = scmp.eq.s32.totalorder %s19, 1
    %p198 = por %p196, %p197
    %p199 = scmp.ne.s32.totalorder %s190, %s191
    %p200 = scmp.eq.s32.totalorder %s19, 0
    %p201 = por %p199, %p200
    %p202 = scmp.ne.s32.totalorder %s190, %s191
    %p203 = scmp.eq.s32.totalorder %s20, 1
    %p204 = por %p202, %p203
    %p206 = scmp.ne.s32.totalorder %s191, %s205
    %p207 = scmp.eq.s32.totalorder %s20, 0
    %p208 = por %p206, %p207
    %s209 = ssub.s32 %s21, %s33
    %s210 = ssub.s32 %s22, %s29
    %s211 = sor.u32 %s209, %s210
    %p212 = scmp.eq.s32.totalorder %s211, 0
    %s214 = sadd.s32 %s213, 1
    %s215 = scalar_select %p212, %s213, %s214
    %p218 = pneg %p212
    %p219 = scmp.eq.s32.totalorder %s14, 1
    %p220 = por %p218, %p219
    %p221 = scmp.ne.s32.totalorder %s213, %s216
    %p222 = scmp.eq.s32.totalorder %s14, 0
    %p223 = por %p221, %p222
    %p224 = scmp.ne.s32.totalorder %s213, %s216
    %p225 = scmp.eq.s32.totalorder %s19, 1
    %p226 = por %p224, %p225
    %p227 = scmp.ne.s32.totalorder %s216, %s217
    %p228 = scmp.eq.s32.totalorder %s19, 0
    %p229 = por %p227, %p228
    %p230 = scmp.ne.s32.totalorder %s216, %s217
    %p231 = scmp.eq.s32.totalorder %s20, 1
    %p232 = por %p230, %p231
    %p234 = scmp.ne.s32.totalorder %s217, %s233
    %p235 = scmp.eq.s32.totalorder %s20, 0
    %p236 = por %p234, %p235
    %p237 = scmp.le.s32.totalorder 1, %s14
    %p238 = scmp.lt.s32.totalorder %s14, 3
    %p239 = pnand %p237, %p238
    %p240 = pneg %p239
    // Predicated region
    $region9: #{tpu_custom_call.1} parent=5 // pred_check
      _
    $region10: #{tpu_custom_call.1} parent=5 // pred_check_branch
      %242 = sbr.rel (%p239) target = $region12
    $region11: #{tpu_custom_call.1} parent=5 // pred_region
      %s243 = ssub.s32 %s14, 1
      // Predicated region
      $region13: #{tpu_custom_call.1} parent=11 // pred_check
        %p244 = pneg %p75
      $region14: #{tpu_custom_call.1} parent=11 // pred_check_branch
        %246 = sbr.rel (%p244) target = $region16
      $region15: #{tpu_custom_call.1} parent=11 // pred_region
        _
      $region16: #{tpu_custom_call.1} parent=11 // pred_fallthru
        _
      // Predicated region
      $region17: #{tpu_custom_call.1} parent=11 // pred_check
        %p247 = pneg %p96
      $region18: #{tpu_custom_call.1} parent=11 // pred_check_branch
        %249 = sbr.rel (%p247) target = $region20
      $region19: #{tpu_custom_call.1} parent=11 // pred_region
        _
      $region20: #{tpu_custom_call.1} parent=11 // pred_fallthru
        _
      // Predicated region
      $region21: #{tpu_custom_call.1} parent=11 // pred_check
        %p250 = pneg %p117
      $region22: #{tpu_custom_call.1} parent=11 // pred_check_branch
        %252 = sbr.rel (%p250) target = $region24
      $region23: #{tpu_custom_call.1} parent=11 // pred_region
        _
      $region24: #{tpu_custom_call.1} parent=11 // pred_fallthru
        _
      // Predicated region
      $region25: #{tpu_custom_call.1} parent=11 // pred_check
        %p253 = pneg %p138
      $region26: #{tpu_custom_call.1} parent=11 // pred_check_branch
        %255 = sbr.rel (%p253) target = $region28
      $region27: #{tpu_custom_call.1} parent=11 // pred_region
        _
      $region28: #{tpu_custom_call.1} parent=11 // pred_fallthru
        _
      // Predicated region
      $region29: #{tpu_custom_call.1} parent=11 // pred_check
        %p256 = pneg %p159
      $region30: #{tpu_custom_call.1} parent=11 // pred_check_branch
        %258 = sbr.rel (%p256) target = $region32
      $region31: #{tpu_custom_call.1} parent=11 // pred_region
        _
      $region32: #{tpu_custom_call.1} parent=11 // pred_fallthru
        _
      // Predicated region
      $region33: #{tpu_custom_call.1} parent=11 // pred_check
        %p259 = pneg %p180
      $region34: #{tpu_custom_call.1} parent=11 // pred_check_branch
        %261 = sbr.rel (%p259) target = $region36
      $region35: #{tpu_custom_call.1} parent=11 // pred_region
        _
      $region36: #{tpu_custom_call.1} parent=11 // pred_fallthru
        _
      // Predicated region
      $region37: #{tpu_custom_call.1} parent=11 // pred_check
        %p262 = pneg %p201
      $region38: #{tpu_custom_call.1} parent=11 // pred_check_branch
        %264 = sbr.rel (%p262) target = $region40
      $region39: #{tpu_custom_call.1} parent=11 // pred_region
        _
      $region40: #{tpu_custom_call.1} parent=11 // pred_fallthru
        _
    $region12: #{tpu_custom_call.1} parent=5 // pred_fallthru
      _
    %p265 = scmp.lt.s32.totalorder %s14, 2
    // Predicated region
    $region41: #{tpu_custom_call.1} parent=5 // pred_check
      %p266 = pneg %p265
    $region42: #{tpu_custom_call.1} parent=5 // pred_check_branch
      %268 = sbr.rel (%p266) target = $region44
    $region43: #{tpu_custom_call.1} parent=5 // pred_region
      // Predicated region
      $region45: #{tpu_custom_call.1} parent=43 // pred_check
        %p269 = pneg %p48
      $region46: #{tpu_custom_call.1} parent=43 // pred_check_branch
        %271 = sbr.rel (%p269) target = $region48
      $region47: #{tpu_custom_call.1} parent=43 // pred_region
        %s272 = smul.u32 8, %s22
        %p273 = scmp.lt.s32.totalorder %s21, 1
        %s274 = scalar_select %p273, %s21, 1
        %p275 = scmp.lt.s32.totalorder %s272, 7
        %s276 = scalar_select %p275, %s272, 7
        %s277 = smul.addr %s274, 8
        %s278 = sadd.s32 %s276, %s277
        %s279 = smul.addr %s278, 4
        %s280 = scalar_lea.vmem %s0, %s279
        %s281 = smul.u32 8, %s22
      $region48: #{tpu_custom_call.1} parent=43 // pred_fallthru
        _
    $region44: #{tpu_custom_call.1} parent=5 // pred_fallthru
      _
    %p282 = scmp.le.s32.totalorder 1, %s14
    %p283 = scmp.lt.s32.totalorder %s14, 3
    %p284 = pnand %p282, %p283
    %p285 = pneg %p284
    // Predicated region
    $region49: #{tpu_custom_call.1} parent=5 // pred_check
      _
    $region50: #{tpu_custom_call.1} parent=5 // pred_check_branch
      %287 = sbr.rel (%p284) target = $region52
    $region51: #{tpu_custom_call.1} parent=5 // pred_region
      %s288 = ssub.s32 %s14, 1
      %s289 = smul.u32 8, %s24
      %p290 = scmp.lt.s32.totalorder %s23, 1
      %s291 = scalar_select %p290, %s23, 1
      %p292 = scmp.lt.s32.totalorder %s289, 7
      %s293 = scalar_select %p292, %s289, 7
      %s294 = smul.addr %s291, 8
      %s295 = sadd.s32 %s293, %s294
      %s296 = smul.addr %s295, 4
      %s297 = scalar_lea.vmem %s0, %s296
      %p298 = pneg %p54
      %p299 = pneg %p51
      %p300 = pneg %p75
      %p301 = pneg %p72
      %p302 = pneg %p96
      %p303 = pneg %p93
      %p304 = pneg %p117
      %p305 = pneg %p114
      %p306 = pneg %p138
      %p307 = pneg %p135
      %p308 = pneg %p159
      %p309 = pneg %p156
      %p310 = pneg %p180
      %p311 = pneg %p177
      %p312 = pneg %p201
      %p313 = pneg %p198
      %p314 = pneg %p229
      %p315 = pneg %p226
      %s316 = smul.u32 8, %s24
      %p317 = scmp.lt.s32.totalorder %s23, 1
      %s318 = scalar_select %p317, %s23, 1
      %p319 = scmp.lt.s32.totalorder %s316, 7
      %s320 = scalar_select %p319, %s316, 7
      %s321 = smul.addr %s318, 8
      %s322 = sadd.s32 %s320, %s321
      %s323 = smul.addr %s322, 4
      %s324 = scalar_lea.vmem %s8, %s323
      %s325 = smul.u32 8, %s24
      %p326 = scmp.lt.s32.totalorder %s23, 1
      %s327 = scalar_select %p326, %s23, 1
      %p328 = scmp.lt.s32.totalorder %s325, 7
      %s329 = scalar_select %p328, %s325, 7
      %s330 = smul.addr %s327, 8
      %s331 = sadd.s32 %s329, %s330
      %s332 = smul.addr %s331, 4
      %s333 = scalar_lea.vmem %s0, %s332
      %s334 = smul.u32 8, %s24
      %s335 = smul.u32 8, %s24
      %p336 = scmp.lt.s32.totalorder %s23, 1
      %s337 = scalar_select %p336, %s23, 1
      %p338 = scmp.lt.s32.totalorder %s335, 7
      %s339 = scalar_select %p338, %s335, 7
      %s340 = smul.addr %s337, 8
      %s341 = sadd.s32 %s339, %s340
      %s342 = smul.addr %s341, 4
      %s343 = scalar_lea.vmem %s8, %s342
      %s344 = smul.u32 8, %s24
      %v346 = vld [vmem:[%s1] sm:$0xff]
      %v347 = vld [vmem:[%s1 + $0x8] sm:$0xff]
      %v348 = vld [vmem:[%s5] sm:$0xf]
      %v349 = vld [vmem:[%s5 + $0x4] sm:$0xf]
      %v350 = vld [vmem:[%s5 + $0x8] sm:$0xf]
      %v351 = vld [vmem:[%s5 + $0xc] sm:$0x3]
      %v352 = vld [vmem:[%s2] sm:$0xff]
      %v353 = vld [vmem:[%s2 + $0x8] sm:$0xff]
      %v354 = vld [vmem:[%s3] sm:$0xff]
      %v355 = vld [vmem:[%s3 + $0x8] sm:$0xff]
      %v356 = vld [vmem:[%s4] sm:$0xff]
      %v357 = vld [vmem:[%s4 + $0x8] sm:$0xff]
      %v358 = vld [vmem:[%s6] sm:$0x7]
      %v359 = vld [vmem:[%s333] sm:$0x77]
      %v360 = vld [vmem:[%s333 + $0x8] sm:$0x77]
      %v363 = vcombine.high %v359, %v359
      %v364 = vcombine.high %v360, %v360
      %367 = vrot.lane.b32.xlu0 %v359, 17
      %v368 = vpop.permute.xlu0 %367
      %369 = vrot.lane.b32.xlu0 %v363, 17
      %v370 = vpop.permute.xlu0 %369
      %371 = vrot.lane.b32.xlu0 %v360, 17
      %v372 = vpop.permute.xlu0 %371
      %373 = vrot.lane.b32.xlu0 %v364, 17
      %v374 = vpop.permute.xlu0 %373
      %v375 = vlaneseq
      %v376 = vand.u32 %v375, 127
      %vm377 = vcmp.lt.s32.totalorder %v376, 17
      %v378 = vsel %vm377, %v372, %v374
      %v379 = vsel %vm377, %v370, %v372
      %v380 = vsel %vm377, %v368, %v370
      %v381 = vsel %vm377, %v374, %v368
      %v382 = vld [vmem:[%s7] ss:$8 sm:$0xf]
      %v384 = vlaneseq
      %v385 = vshrl.u32 %v384, 7
      %v386 = vsub.s32 0, %v385
      %v387 = vrot.slane %v382, %v386
      %v388 = vlaneseq
      %v389 = vshrl.u32 %v388, 7
      %v390 = vsub.s32 1, %v389
      %v391 = vrot.slane %v382, %v390
      %v392 = vlaneseq
      %v393 = vshrl.u32 %v392, 7
      %v394 = vsub.s32 2, %v393
      %v395 = vrot.slane %v382, %v394
      %v396 = vlaneseq
      %v397 = vshrl.u32 %v396, 7
      %v398 = vsub.s32 3, %v397
      %v399 = vrot.slane %v382, %v398
      %v404 = vmul.f32 %v381, %v387
      %v405 = vmul.f32 %v380, %v391
      %v406 = vmul.f32 %v379, %v395
      %v407 = vmul.f32 %v378, %v399
      %408 = vst [vmem:[#allocation2] sm:$0x7] %v404
      %409 = vst [vmem:[#allocation2 + $0x8] sm:$0x7] %v405
      %410 = vst [vmem:[#allocation2 + $0x10] sm:$0x7] %v406
      %411 = vst [vmem:[#allocation2 + $0x18] sm:$0x7] %v407
      %412 = vrot.lane.b32.xlu0 %v359, 16
      %v413 = vpop.permute.xlu0 %412
      %414 = vrot.lane.b32.xlu0 %v363, 16
      %v415 = vpop.permute.xlu0 %414
      %416 = vrot.lane.b32.xlu0 %v360, 16
      %v417 = vpop.permute.xlu0 %416
      %418 = vrot.lane.b32.xlu0 %v364, 16
      %v419 = vpop.permute.xlu0 %418
      %vm420 = vcmp.lt.s32.totalorder %v376, 16
      %v421 = vsel %vm420, %v417, %v419
      %v422 = vsel %vm420, %v415, %v417
      %v423 = vsel %vm420, %v413, %v415
      %v424 = vsel %vm420, %v419, %v413
      %s425 = scalar_lea.vmem %s7, 1
      %v426 = vld [vmem:[%s425] ss:$8 sm:$0xf]
      %v428 = vlaneseq
      %v429 = vshrl.u32 %v428, 7
      %v430 = vsub.s32 0, %v429
      %v431 = vrot.slane %v426, %v430
      %v432 = vlaneseq
      %v433 = vshrl.u32 %v432, 7
      %v434 = vsub.s32 1, %v433
      %v435 = vrot.slane %v426, %v434
      %v436 = vlaneseq
      %v437 = vshrl.u32 %v436, 7
      %v438 = vsub.s32 2, %v437
      %v439 = vrot.slane %v426, %v438
      %v440 = vlaneseq
      %v441 = vshrl.u32 %v440, 7
      %v442 = vsub.s32 3, %v441
      %v443 = vrot.slane %v426, %v442
      %v448 = vmul.f32 %v424, %v431
      %v449 = vmul.f32 %v423, %v435
      %v450 = vmul.f32 %v422, %v439
      %v451 = vmul.f32 %v421, %v443
      %v456 = vrot.slane %v448, 5
      %v457 = vrot.slane %v449, 5
      %v458 = vrot.slane %v450, 5
      %v459 = vrot.slane %v451, 5
      %464 = vst [vmem:[#allocation2] sm:$0x38] %v456
      %465 = vst [vmem:[#allocation2 + $0x8] sm:$0x38] %v457
      %466 = vst [vmem:[#allocation2 + $0x10] sm:$0x38] %v458
      %467 = vst [vmem:[#allocation2 + $0x18] sm:$0x38] %v459
      %468 = vrot.lane.b32.xlu0 %v359, 15
      %v469 = vpop.permute.xlu0 %468
      %470 = vrot.lane.b32.xlu0 %v363, 15
      %v471 = vpop.permute.xlu0 %470
      %472 = vrot.lane.b32.xlu0 %v360, 15
      %v473 = vpop.permute.xlu0 %472
      %474 = vrot.lane.b32.xlu0 %v364, 15
      %v475 = vpop.permute.xlu0 %474
      %vm476 = vcmp.lt.s32.totalorder %v376, 15
      %v477 = vsel %vm476, %v473, %v475
      %v478 = vsel %vm476, %v471, %v473
      %v479 = vsel %vm476, %v469, %v471
      %v480 = vsel %vm476, %v475, %v469
      %s481 = scalar_lea.vmem %s7, 2
      %v482 = vld [vmem:[%s481] ss:$8 sm:$0xf]
      %v484 = vlaneseq
      %v485 = vshrl.u32 %v484, 7
      %v486 = vsub.s32 0, %v485
      %v487 = vrot.slane %v482, %v486
      %v488 = vlaneseq
      %v489 = vshrl.u32 %v488, 7
      %v490 = vsub.s32 1, %v489
      %v491 = vrot.slane %v482, %v490
      %v492 = vlaneseq
      %v493 = vshrl.u32 %v492, 7
      %v494 = vsub.s32 2, %v493
      %v495 = vrot.slane %v482, %v494
      %v496 = vlaneseq
      %v497 = vshrl.u32 %v496, 7
      %v498 = vsub.s32 3, %v497
      %v499 = vrot.slane %v482, %v498
      %v504 = vmul.f32 %v480, %v487
      %v505 = vmul.f32 %v479, %v491
      %v506 = vmul.f32 %v478, %v495
      %v507 = vmul.f32 %v477, %v499
      %v512 = vrot.slane %v504, 2
      %v513 = vrot.slane %v505, 2
      %v514 = vrot.slane %v506, 2
      %v515 = vrot.slane %v507, 2
      %520 = vst [vmem:[#allocation2] sm:$0xc0] %v512
      %521 = vst [vmem:[#allocation2 + $0x8] sm:$0xc0] %v513
      %522 = vst [vmem:[#allocation2 + $0x10] sm:$0xc0] %v514
      %523 = vst [vmem:[#allocation2 + $0x18] sm:$0xc0] %v515
      %524 = vst [vmem:[#allocation2 + $0x20] sm:$0x1] %v512
      %525 = vst [vmem:[#allocation2 + $0x28] sm:$0x1] %v513
      %526 = vst [vmem:[#allocation2 + $0x30] sm:$0x1] %v514
      %527 = vst [vmem:[#allocation2 + $0x38] sm:$0x1] %v515
      %528 = vrot.lane.b32.xlu0 %v359, 1
      %v529 = vpop.permute.xlu0 %528
      %530 = vrot.lane.b32.xlu0 %v363, 1
      %v531 = vpop.permute.xlu0 %530
      %532 = vrot.lane.b32.xlu0 %v360, 1
      %v533 = vpop.permute.xlu0 %532
      %534 = vrot.lane.b32.xlu0 %v364, 1
      %v535 = vpop.permute.xlu0 %534
      %vm536 = vcmp.lt.s32.totalorder %v376, 1
      %v537 = vsel %vm536, %v533, %v535
      %v538 = vsel %vm536, %v531, %v533
      %v539 = vsel %vm536, %v529, %v531
      %v540 = vsel %vm536, %v535, %v529
      %s541 = scalar_lea.vmem %s7, 3
      %v542 = vld [vmem:[%s541] ss:$8 sm:$0xf]
      %v544 = vlaneseq
      %v545 = vshrl.u32 %v544, 7
      %v546 = vsub.s32 0, %v545
      %v547 = vrot.slane %v542, %v546
      %v548 = vlaneseq
      %v549 = vshrl.u32 %v548, 7
      %v550 = vsub.s32 1, %v549
      %v551 = vrot.slane %v542, %v550
      %v552 = vlaneseq
      %v553 = vshrl.u32 %v552, 7
      %v554 = vsub.s32 2, %v553
      %v555 = vrot.slane %v542, %v554
      %v556 = vlaneseq
      %v557 = vshrl.u32 %v556, 7
      %v558 = vsub.s32 3, %v557
      %v559 = vrot.slane %v542, %v558
      %v564 = vmul.f32 %v540, %v547
      %v565 = vmul.f32 %v539, %v551
      %v566 = vmul.f32 %v538, %v555
      %v567 = vmul.f32 %v537, %v559
      %v572 = vrot.slane %v564, 7
      %v573 = vrot.slane %v565, 7
      %v574 = vrot.slane %v566, 7
      %v575 = vrot.slane %v567, 7
      %580 = vst [vmem:[#allocation2 + $0x20] sm:$0xe] %v572
      %581 = vst [vmem:[#allocation2 + $0x28] sm:$0xe] %v573
      %582 = vst [vmem:[#allocation2 + $0x30] sm:$0xe] %v574
      %583 = vst [vmem:[#allocation2 + $0x38] sm:$0xe] %v575
      %v584 = vcombine.low %v359, %v359
      %v585 = vcombine.low %v360, %v360
      %588 = vst [vmem:[#allocation2 + $0x20] sm:$0x70] %v584
      %589 = vst [vmem:[#allocation2 + $0x28] sm:$0x70] %v359
      %590 = vst [vmem:[#allocation2 + $0x30] sm:$0x70] %v585
      %591 = vst [vmem:[#allocation2 + $0x38] sm:$0x70] %v360
      %592 = vrot.lane.b32.xlu0 %v359, 127
      %v593 = vpop.permute.xlu0 %592
      %594 = vrot.lane.b32.xlu0 %v363, 127
      %v595 = vpop.permute.xlu0 %594
      %596 = vrot.lane.b32.xlu0 %v360, 127
      %v597 = vpop.permute.xlu0 %596
      %598 = vrot.lane.b32.xlu0 %v364, 127
      %v599 = vpop.permute.xlu0 %598
      %vm600 = vcmp.lt.s32.totalorder %v376, 127
      %v601 = vsel %vm600, %v597, %v599
      %v602 = vsel %vm600, %v595, %v597
      %v603 = vsel %vm600, %v593, %v595
      %v604 = vsel %vm600, %v599, %v593
      %s605 = scalar_lea.vmem %s7, 4
      %v606 = vld [vmem:[%s605] ss:$8 sm:$0xf]
      %v608 = vlaneseq
      %v609 = vshrl.u32 %v608, 7
      %v610 = vsub.s32 0, %v609
      %v611 = vrot.slane %v606, %v610
      %v612 = vlaneseq
      %v613 = vshrl.u32 %v612, 7
      %v614 = vsub.s32 1, %v613
      %v615 = vrot.slane %v606, %v614
      %v616 = vlaneseq
      %v617 = vshrl.u32 %v616, 7
      %v618 = vsub.s32 2, %v617
      %v619 = vrot.slane %v606, %v618
      %v620 = vlaneseq
      %v621 = vshrl.u32 %v620, 7
      %v622 = vsub.s32 3, %v621
      %v623 = vrot.slane %v606, %v622
      %v628 = vmul.f32 %v603, %v611
      %v629 = vmul.f32 %v602, %v615
      %v630 = vmul.f32 %v601, %v619
      %v631 = vmul.f32 %v604, %v623
      %v636 = vrot.slane %v628, 1
      %v637 = vrot.slane %v629, 1
      %v638 = vrot.slane %v630, 1
      %v639 = vrot.slane %v631, 1
      %644 = vst [vmem:[#allocation2 + $0x20] sm:$0x80] %v636
      %645 = vst [vmem:[#allocation2 + $0x28] sm:$0x80] %v637
      %646 = vst [vmem:[#allocation2 + $0x30] sm:$0x80] %v638
      %647 = vst [vmem:[#allocation2 + $0x38] sm:$0x80] %v639
      %648 = vst [vmem:[#allocation2 + $0x40] sm:$0x3] %v636
      %649 = vst [vmem:[#allocation2 + $0x48] sm:$0x3] %v637
      %650 = vst [vmem:[#allocation2 + $0x50] sm:$0x3] %v638
      %651 = vst [vmem:[#allocation2 + $0x58] sm:$0x3] %v639
      %652 = vrot.lane.b32.xlu0 %v359, 113
      %v653 = vpop.permute.xlu0 %652
      %654 = vrot.lane.b32.xlu0 %v363, 113
      %v655 = vpop.permute.xlu0 %654
      %656 = vrot.lane.b32.xlu0 %v360, 113
      %v657 = vpop.permute.xlu0 %656
      %658 = vrot.lane.b32.xlu0 %v364, 113
      %v659 = vpop.permute.xlu0 %658
      %vm660 = vcmp.lt.s32.totalorder %v376, 113
      %v661 = vsel %vm660, %v657, %v659
      %v662 = vsel %vm660, %v655, %v657
      %v663 = vsel %vm660, %v653, %v655
      %v664 = vsel %vm660, %v659, %v653
      %s665 = scalar_lea.vmem %s7, 5
      %v666 = vld [vmem:[%s665] ss:$8 sm:$0xf]
      %v668 = vlaneseq
      %v669 = vshrl.u32 %v668, 7
      %v670 = vsub.s32 0, %v669
      %v671 = vrot.slane %v666, %v670
      %v672 = vlaneseq
      %v673 = vshrl.u32 %v672, 7
      %v674 = vsub.s32 1, %v673
      %v675 = vrot.slane %v666, %v674
      %v676 = vlaneseq
      %v677 = vshrl.u32 %v676, 7
      %v678 = vsub.s32 2, %v677
      %v679 = vrot.slane %v666, %v678
      %v680 = vlaneseq
      %v681 = vshrl.u32 %v680, 7
      %v682 = vsub.s32 3, %v681
      %v683 = vrot.slane %v666, %v682
      %v688 = vmul.f32 %v663, %v671
      %v689 = vmul.f32 %v662, %v675
      %v690 = vmul.f32 %v661, %v679
      %v691 = vmul.f32 %v664, %v683
      %v696 = vrot.slane %v688, 6
      %v697 = vrot.slane %v689, 6
      %v698 = vrot.slane %v690, 6
      %v699 = vrot.slane %v691, 6
      %704 = vst [vmem:[#allocation2 + $0x40] sm:$0x1c] %v696
      %705 = vst [vmem:[#allocation2 + $0x48] sm:$0x1c] %v697
      %706 = vst [vmem:[#allocation2 + $0x50] sm:$0x1c] %v698
      %707 = vst [vmem:[#allocation2 + $0x58] sm:$0x1c] %v699
      %708 = vrot.lane.b32.xlu0 %v359, 112
      %v709 = vpop.permute.xlu0 %708
      %710 = vrot.lane.b32.xlu0 %v363, 112
      %v711 = vpop.permute.xlu0 %710
      %712 = vrot.lane.b32.xlu0 %v360, 112
      %v713 = vpop.permute.xlu0 %712
      %714 = vrot.lane.b32.xlu0 %v364, 112
      %v715 = vpop.permute.xlu0 %714
      %vm716 = vcmp.lt.s32.totalorder %v376, 112
      %v717 = vsel %vm716, %v713, %v715
      %v718 = vsel %vm716, %v711, %v713
      %v719 = vsel %vm716, %v709, %v711
      %v720 = vsel %vm716, %v715, %v709
      %s721 = scalar_lea.vmem %s7, 6
      %v722 = vld [vmem:[%s721] ss:$8 sm:$0xf]
      %v724 = vlaneseq
      %v725 = vshrl.u32 %v724, 7
      %v726 = vsub.s32 0, %v725
      %v727 = vrot.slane %v722, %v726
      %v728 = vlaneseq
      %v729 = vshrl.u32 %v728, 7
      %v730 = vsub.s32 1, %v729
      %v731 = vrot.slane %v722, %v730
      %v732 = vlaneseq
      %v733 = vshrl.u32 %v732, 7
      %v734 = vsub.s32 2, %v733
      %v735 = vrot.slane %v722, %v734
      %v736 = vlaneseq
      %v737 = vshrl.u32 %v736, 7
      %v738 = vsub.s32 3, %v737
      %v739 = vrot.slane %v722, %v738
      %v744 = vmul.f32 %v719, %v727
      %v745 = vmul.f32 %v718, %v731
      %v746 = vmul.f32 %v717, %v735
      %v747 = vmul.f32 %v720, %v739
      %v752 = vrot.slane %v744, 3
      %v753 = vrot.slane %v745, 3
      %v754 = vrot.slane %v746, 3
      %v755 = vrot.slane %v747, 3
      %760 = vst [vmem:[#allocation2 + $0x40] sm:$0xe0] %v752
      %761 = vst [vmem:[#allocation2 + $0x48] sm:$0xe0] %v753
      %762 = vst [vmem:[#allocation2 + $0x50] sm:$0xe0] %v754
      %763 = vst [vmem:[#allocation2 + $0x58] sm:$0xe0] %v755
      %764 = vrot.lane.b32.xlu0 %v359, 111
      %v765 = vpop.permute.xlu0 %764
      %766 = vrot.lane.b32.xlu0 %v363, 111
      %v767 = vpop.permute.xlu0 %766
      %768 = vrot.lane.b32.xlu0 %v360, 111
      %v769 = vpop.permute.xlu0 %768
      %770 = vrot.lane.b32.xlu0 %v364, 111
      %v771 = vpop.permute.xlu0 %770
      %vm772 = vcmp.lt.s32.totalorder %v376, 111
      %v773 = vsel %vm772, %v769, %v771
      %v774 = vsel %vm772, %v767, %v769
      %v775 = vsel %vm772, %v765, %v767
      %v776 = vsel %vm772, %v771, %v765
      %s777 = scalar_lea.vmem %s7, 7
      %v778 = vld [vmem:[%s777] ss:$8 sm:$0xf]
      %v780 = vlaneseq
      %v781 = vshrl.u32 %v780, 7
      %v782 = vsub.s32 0, %v781
      %v783 = vrot.slane %v778, %v782
      %v784 = vlaneseq
      %v785 = vshrl.u32 %v784, 7
      %v786 = vsub.s32 1, %v785
      %v787 = vrot.slane %v778, %v786
      %v788 = vlaneseq
      %v789 = vshrl.u32 %v788, 7
      %v790 = vsub.s32 2, %v789
      %v791 = vrot.slane %v778, %v790
      %v792 = vlaneseq
      %v793 = vshrl.u32 %v792, 7
      %v794 = vsub.s32 3, %v793
      %v795 = vrot.slane %v778, %v794
      %v800 = vmul.f32 %v775, %v783
      %v801 = vmul.f32 %v774, %v787
      %v802 = vmul.f32 %v773, %v791
      %v803 = vmul.f32 %v776, %v795
      %804 = vst [vmem:[#allocation2 + $0x60] sm:$0x7] %v800
      %805 = vst [vmem:[#allocation2 + $0x68] sm:$0x7] %v801
      %806 = vst [vmem:[#allocation2 + $0x70] sm:$0x7] %v802
      %807 = vst [vmem:[#allocation2 + $0x78] sm:$0x7] %v803
      %v808 = vld [vmem:[#allocation2] sm:$0xff]
      %v809 = vld [vmem:[#allocation2 + $0x8] sm:$0xff]
      %v810 = vld [vmem:[#allocation2 + $0x10] sm:$0xff]
      %v811 = vld [vmem:[#allocation2 + $0x18] sm:$0xff]
      %v812 = vld [vmem:[#allocation2 + $0x20] sm:$0xff]
      %v813 = vld [vmem:[#allocation2 + $0x28] sm:$0xff]
      %v814 = vld [vmem:[#allocation2 + $0x30] sm:$0xff]
      %v815 = vld [vmem:[#allocation2 + $0x38] sm:$0xff]
      %v816 = vld [vmem:[#allocation2 + $0x40] sm:$0xff]
      %v817 = vld [vmem:[#allocation2 + $0x48] sm:$0xff]
      %v818 = vld [vmem:[#allocation2 + $0x50] sm:$0xff]
      %v819 = vld [vmem:[#allocation2 + $0x58] sm:$0xff]
      %v820 = vld [vmem:[#allocation2 + $0x60] sm:$0x7]
      %v821 = vld [vmem:[#allocation2 + $0x68] sm:$0x7]
      %v822 = vld [vmem:[#allocation2 + $0x70] sm:$0x7]
      %v823 = vld [vmem:[#allocation2 + $0x78] sm:$0x7]
      %825 = vset.pattern.permute.xlu0 0
      %826 = vperm.xlu0 %825, %v352
      %v827 = vpop.permute.xlu0 %826
      %830 = vset.pattern.permute.xlu0 0
      %831 = vperm.xlu0 %830, %v353
      %v832 = vpop.permute.xlu0 %831
      %vm834 = vcmask 220160
      %v836 = vsel %vm834, %v346, 0
      %v839 = vsel %vm834, %v347, 0
      %vm841 = vcmask 1042432
      %v843 = vsel %vm841, %v820, 0
      %v846 = vsel %vm841, %v821, 0
      %v849 = vsel %vm841, %v822, 0
      %v852 = vsel %vm841, %v823, 0
      %854 = vmatprep.subr.mxu0 %v809
      %855 = vmatpush1.msra.mxu0 %v808
      %856 = vmatprep.subr.mxu0 %v813
      %857 = vmatpush1.msra.mxu0 %v812
      %858 = vmatprep.subr.mxu0 %v817
      %859 = vmatpush1.msra.mxu0 %v816
      %860 = vmatprep.subr.mxu0 %v846
      %861 = vmatpush1.msra.mxu0 %v843
      %862 = vmatprep.subr.mxu0 0.0
      %863 = vmatpush1.msra.mxu0 0.0
      %864 = vmatprep.subr.mxu0 0.0
      %865 = vmatpush1.msra.mxu0 0.0
      %866 = vmatprep.subr.mxu0 0.0
      %867 = vmatpush1.msra.mxu0 0.0
      %868 = vmatprep.subr.mxu0 0.0
      %869 = vmatpush1.msra.mxu0 0.0
      %870 = vmatprep.subr.mxu0 0.0
      %871 = vmatpush1.msra.mxu0 0.0
      %872 = vmatprep.subr.mxu0 0.0
      %873 = vmatpush1.msra.mxu0 0.0
      %874 = vmatprep.subr.mxu0 0.0
      %875 = vmatpush1.msra.mxu0 0.0
      %876 = vmatprep.subr.mxu0 0.0
      %877 = vmatpush1.msra.mxu0 0.0
      %878 = vmatprep.subr.mxu0 0.0
      %879 = vmatpush1.msra.mxu0 0.0
      %880 = vmatprep.subr.mxu0 0.0
      %881 = vmatpush1.msra.mxu0 0.0
      %882 = vmatprep.subr.mxu0 0.0
      %883 = vmatpush1.msra.mxu0 0.0
      %884 = vmatprep.subr.mxu0 0.0
      %885 = vmatpush1.msra.mxu0 0.0
      %886 = vmatprep.subr.mxu0 0.0
      %887 = vmatpush1.msra.mxu0 0.0
      %888 = vmatprep.subr.mxu0 0.0
      %889 = vmatpush1.msra.mxu0 0.0
      %890 = vmatprep.subr.mxu0 0.0
      %891 = vmatpush1.msra.mxu0 0.0
      %892 = vmatprep.subr.mxu0 0.0
      %893 = vmatpush1.msra.mxu0 0.0
      %894 = vmatprep.subr.mxu0 0.0
      %895 = vmatpush1.msra.mxu0 0.0
      %896 = vmatprep.subr.mxu0 0.0
      %897 = vmatpush1.msra.mxu0 0.0
      %898 = vmatprep.subr.mxu0 0.0
      %899 = vmatpush1.msra.mxu0 0.0
      %900 = vmatprep.subr.mxu0 0.0
      %901 = vmatpush1.msra.mxu0 0.0
      %902 = vmatprep.subr.mxu0 0.0
      %903 = vmatpush1.msra.mxu0 0.0
      %904 = vmatprep.subr.mxu0 0.0
      %905 = vmatpush1.msra.mxu0 0.0
      %906 = vmatprep.subr.mxu0 0.0
      %907 = vmatpush1.msra.mxu0 0.0
      %908 = vmatprep.subr.mxu0 0.0
      %909 = vmatpush1.msra.mxu0 0.0
      %910 = vmatprep.subr.mxu0 0.0
      %911 = vmatpush1.msra.mxu0 0.0
      %912 = vmatprep.subr.mxu0 0.0
      %913 = vmatpush1.msra.mxu0 0.0
      %914 = vmatprep.subr.mxu0 0.0
      %915 = vmatpush1.msra.mxu0 0.0
      %916 = vmatprep.subr.mxu0 0.0
      %917 = vmatpush1.msra.mxu0 0.0
      %918 = vmatprep.mubr.f32.mxu0 0.0
      %919 = vmatmul.mubr.f32.gmra.mrb[0].mxu0 %v836
      %v920 = vpop.f32.mrb[0].mxu0
      %v921 = vadd.f32 %v827, %v920
      %v922 = vpop.f32.mrb[0].mxu0
      %v923 = vadd.f32 %v827, %v922
      %924 = vmatprep.mubr.f32.mxu0 0.0
      %925 = vmatmul.mubr.f32.gmra.mrb[0].mxu0 %v839
      %v926 = vpop.f32.mrb[0].mxu0
      %v927 = vadd.f32 %v832, %v926
      %v928 = vpop.f32.mrb[0].mxu0
      %v929 = vadd.f32 %v832, %v928
      %930 = vdwg.mxu0
      %931 = vmatprep.subr.mxu0 %v811
      %932 = vmatpush1.msra.mxu0 %v810
      %933 = vmatprep.subr.mxu0 %v815
      %934 = vmatpush1.msra.mxu0 %v814
      %935 = vmatprep.subr.mxu0 %v819
      %936 = vmatpush1.msra.mxu0 %v818
      %937 = vmatprep.subr.mxu0 %v852
      %938 = vmatpush1.msra.mxu0 %v849
      %939 = vmatprep.subr.mxu0 0.0
      %940 = vmatpush1.msra.mxu0 0.0
      %941 = vmatprep.subr.mxu0 0.0
      %942 = vmatpush1.msra.mxu0 0.0
      %943 = vmatprep.subr.mxu0 0.0
      %944 = vmatpush1.msra.mxu0 0.0
      %945 = vmatprep.subr.mxu0 0.0
      %946 = vmatpush1.msra.mxu0 0.0
      %947 = vmatprep.subr.mxu0 0.0
      %948 = vmatpush1.msra.mxu0 0.0
      %949 = vmatprep.subr.mxu0 0.0
      %950 = vmatpush1.msra.mxu0 0.0
      %951 = vmatprep.subr.mxu0 0.0
      %952 = vmatpush1.msra.mxu0 0.0
      %953 = vmatprep.subr.mxu0 0.0
      %954 = vmatpush1.msra.mxu0 0.0
      %955 = vmatprep.subr.mxu0 0.0
      %956 = vmatpush1.msra.mxu0 0.0
      %957 = vmatprep.subr.mxu0 0.0
      %958 = vmatpush1.msra.mxu0 0.0
      %959 = vmatprep.subr.mxu0 0.0
      %960 = vmatpush1.msra.mxu0 0.0
      %961 = vmatprep.subr.mxu0 0.0
      %962 = vmatpush1.msra.mxu0 0.0
      %963 = vmatprep.subr.mxu0 0.0
      %964 = vmatpush1.msra.mxu0 0.0
      %965 = vmatprep.subr.mxu0 0.0
      %966 = vmatpush1.msra.mxu0 0.0
      %967 = vmatprep.subr.mxu0 0.0
      %968 = vmatpush1.msra.mxu0 0.0
      %969 = vmatprep.subr.mxu0 0.0
      %970 = vmatpush1.msra.mxu0 0.0
      %971 = vmatprep.subr.mxu0 0.0
      %972 = vmatpush1.msra.mxu0 0.0
      %973 = vmatprep.subr.mxu0 0.0
      %974 = vmatpush1.msra.mxu0 0.0
      %975 = vmatprep.subr.mxu0 0.0
      %976 = vmatpush1.msra.mxu0 0.0
      %977 = vmatprep.subr.mxu0 0.0
      %978 = vmatpush1.msra.mxu0 0.0
      %979 = vmatprep.subr.mxu0 0.0
      %980 = vmatpush1.msra.mxu0 0.0
      %981 = vmatprep.subr.mxu0 0.0
      %982 = vmatpush1.msra.mxu0 0.0
      %983 = vmatprep.subr.mxu0 0.0
      %984 = vmatpush1.msra.mxu0 0.0
      %985 = vmatprep.subr.mxu0 0.0
      %986 = vmatpush1.msra.mxu0 0.0
      %987 = vmatprep.subr.mxu0 0.0
      %988 = vmatpush1.msra.mxu0 0.0
      %989 = vmatprep.subr.mxu0 0.0
      %990 = vmatpush1.msra.mxu0 0.0
      %991 = vmatprep.subr.mxu0 0.0
      %992 = vmatpush1.msra.mxu0 0.0
      %993 = vmatprep.subr.mxu0 0.0
      %994 = vmatpush1.msra.mxu0 0.0
      %995 = vmatprep.mubr.f32.mxu0 0.0
      %996 = vmatmul.mubr.f32.gmra.mrb[0].mxu0 %v836
      %v997 = vpop.f32.mrb[0].mxu0
      %v998 = vadd.f32 %v827, %v997
      %v999 = vpop.f32.mrb[0].mxu0
      %v1000 = vadd.f32 %v827, %v999
      %1001 = vmatprep.mubr.f32.mxu0 0.0
      %1002 = vmatmul.mubr.f32.gmra.mrb[0].mxu0 %v839
      %v1003 = vpop.f32.mrb[0].mxu0
      %v1004 = vadd.f32 %v832, %v1003
      %v1005 = vpop.f32.mrb[0].mxu0
      %v1006 = vadd.f32 %v832, %v1005
      %1007 = vdwg.mxu0
      %v1008 = vtanh.pop %v921
      %v1009 = vtanh.pop %v923
      %v1010 = vtanh.pop %v998
      %v1011 = vtanh.pop %v1000
      %v1012 = vtanh.pop %v927
      %v1013 = vtanh.pop %v929
      %v1014 = vtanh.pop %v1004
      %v1015 = vtanh.pop %v1006
      %1017 = vset.pattern.permute.xlu0 0
      %1018 = vperm.xlu0 %1017, %v354
      %v1019 = vpop.permute.xlu0 %1018
      %1022 = vset.pattern.permute.xlu0 0
      %1023 = vperm.xlu0 %1022, %v355
      %v1024 = vpop.permute.xlu0 %1023
      %v1026 = vmul.f32 %v1008, %v1019
      %v1027 = vmul.f32 %v1009, %v1019
      %v1028 = vmul.f32 %v1010, %v1019
      %v1029 = vmul.f32 %v1011, %v1019
      %v1030 = vmul.f32 %v1012, %v1024
      %v1031 = vmul.f32 %v1013, %v1024
      %v1032 = vmul.f32 %v1014, %v1024
      %v1033 = vmul.f32 %v1015, %v1024
      %1035 = vset.pattern.permute.xlu0 0
      %1036 = vperm.xlu0 %1035, %v356
      %v1037 = vpop.permute.xlu0 %1036
      %1040 = vset.pattern.permute.xlu0 0
      %1041 = vperm.xlu0 %1040, %v357
      %v1042 = vpop.permute.xlu0 %1041
      %v1044 = vadd.f32 %v1026, %v1037
      %v1045 = vadd.f32 %v1027, %v1037
      %v1046 = vadd.f32 %v1028, %v1037
      %v1047 = vadd.f32 %v1029, %v1037
      %v1048 = vadd.f32 %v1030, %v1042
      %v1049 = vadd.f32 %v1031, %v1042
      %v1050 = vadd.f32 %v1032, %v1042
      %v1051 = vadd.f32 %v1033, %v1042
      %v1052 = vpack.c.bf16 %v1048, %v1044
      %v1053 = vpack.c.bf16 %v1049, %v1045
      %v1054 = vpack.c.bf16 %v1050, %v1046
      %v1055 = vpack.c.bf16 %v1051, %v1047
      %v1060 = vunpack.c.l.b16 %v348
      %v1061 = vunpack.c.l.b16 %v349
      %v1062 = vunpack.c.l.b16 %v350
      %v1063 = vunpack.c.l.b16 %v351
      %v1064 = vpack.c.b16 %v1061, %v1060
      %v1065 = vpack.c.b16 %v1063, %v1062
      %vm1066 = vcmask 130048
      %v1068 = vsel %vm1066, %v1064, 0
      %v1071 = vsel %vm1066, %v1065, 0
      %1073 = vmatprep.subr.bf16.mxu0 %v1053
      %1074 = vmatpush1.bf16.msra.mxu0 %v1052
      %1075 = vmatprep.subr.bf16.mxu0 0
      %1076 = vmatpush1.bf16.msra.mxu0 0
      %1077 = vmatprep.subr.bf16.mxu0 0
      %1078 = vmatpush1.bf16.msra.mxu0 0
      %1079 = vmatprep.subr.bf16.mxu0 0
      %1080 = vmatpush1.bf16.msra.mxu0 0
      %1081 = vmatprep.subr.bf16.mxu0 0
      %1082 = vmatpush1.bf16.msra.mxu0 0
      %1083 = vmatprep.subr.bf16.mxu0 0
      %1084 = vmatpush1.bf16.msra.mxu0 0
      %1085 = vmatprep.subr.bf16.mxu0 0
      %1086 = vmatpush1.bf16.msra.mxu0 0
      %1087 = vmatprep.subr.bf16.mxu0 0
      %1088 = vmatpush1.bf16.msra.mxu0 0
      %1089 = vmatprep.subr.bf16.mxu0 0
      %1090 = vmatpush1.bf16.msra.mxu0 0
      %1091 = vmatprep.subr.bf16.mxu0 0
      %1092 = vmatpush1.bf16.msra.mxu0 0
      %1093 = vmatprep.subr.bf16.mxu0 0
      %1094 = vmatpush1.bf16.msra.mxu0 0
      %1095 = vmatprep.subr.bf16.mxu0 0
      %1096 = vmatpush1.bf16.msra.mxu0 0
      %1097 = vmatprep.subr.bf16.mxu0 0
      %1098 = vmatpush1.bf16.msra.mxu0 0
      %1099 = vmatprep.subr.bf16.mxu0 0
      %1100 = vmatpush1.bf16.msra.mxu0 0
      %1101 = vmatprep.subr.bf16.mxu0 0
      %1102 = vmatpush1.bf16.msra.mxu0 0
      %1103 = vmatprep.subr.bf16.mxu0 0
      %1104 = vmatpush1.bf16.msra.mxu0 0
      %1105 = vmatprep.mubr.bf16.mxu0 0
      %1106 = vmatmul.mubr.bf16.gmra.mrb[0].mxu0 %v1068
      %v1107 = vpop.f32.mrb[0].mxu0
      %v1108 = vadd.f32 0.0, %v1107
      %v1109 = vpop.f32.mrb[0].mxu0
      %v1110 = vadd.f32 0.0, %v1109
      %v1111 = vpop.f32.mrb[0].mxu0
      %v1112 = vadd.f32 0.0, %v1111
      %v1113 = vpop.f32.mrb[0].mxu0
      %v1114 = vadd.f32 0.0, %v1113
      %1115 = vmatprep.mubr.bf16.mxu0 0
      %1116 = vmatmul.mubr.bf16.gmra.mrb[0].mxu0 %v1071
      %v1117 = vpop.f32.mrb[0].mxu0
      %v1118 = vadd.f32 0.0, %v1117
      %v1119 = vpop.f32.mrb[0].mxu0
      %v1120 = vadd.f32 0.0, %v1119
      %v1121 = vpop.f32.mrb[0].mxu0
      %v1122 = vadd.f32 0.0, %v1121
      %v1123 = vpop.f32.mrb[0].mxu0
      %v1124 = vadd.f32 0.0, %v1123
      %1125 = vdwg.mxu0
      %1126 = vmatprep.subr.bf16.mxu0 %v1055
      %1127 = vmatpush1.bf16.msra.mxu0 %v1054
      %1128 = vmatprep.subr.bf16.mxu0 0
      %1129 = vmatpush1.bf16.msra.mxu0 0
      %1130 = vmatprep.subr.bf16.mxu0 0
      %1131 = vmatpush1.bf16.msra.mxu0 0
      %1132 = vmatprep.subr.bf16.mxu0 0
      %1133 = vmatpush1.bf16.msra.mxu0 0
      %1134 = vmatprep.subr.bf16.mxu0 0
      %1135 = vmatpush1.bf16.msra.mxu0 0
      %1136 = vmatprep.subr.bf16.mxu0 0
      %1137 = vmatpush1.bf16.msra.mxu0 0
      %1138 = vmatprep.subr.bf16.mxu0 0
      %1139 = vmatpush1.bf16.msra.mxu0 0
      %1140 = vmatprep.subr.bf16.mxu0 0
      %1141 = vmatpush1.bf16.msra.mxu0 0
      %1142 = vmatprep.subr.bf16.mxu0 0
      %1143 = vmatpush1.bf16.msra.mxu0 0
      %1144 = vmatprep.subr.bf16.mxu0 0
      %1145 = vmatpush1.bf16.msra.mxu0 0
      %1146 = vmatprep.subr.bf16.mxu0 0
      %1147 = vmatpush1.bf16.msra.mxu0 0
      %1148 = vmatprep.subr.bf16.mxu0 0
      %1149 = vmatpush1.bf16.msra.mxu0 0
      %1150 = vmatprep.subr.bf16.mxu0 0
      %1151 = vmatpush1.bf16.msra.mxu0 0
      %1152 = vmatprep.subr.bf16.mxu0 0
      %1153 = vmatpush1.bf16.msra.mxu0 0
      %1154 = vmatprep.subr.bf16.mxu0 0
      %1155 = vmatpush1.bf16.msra.mxu0 0
      %1156 = vmatprep.subr.bf16.mxu0 0
      %1157 = vmatpush1.bf16.msra.mxu0 0
      %1158 = vmatprep.mubr.bf16.mxu0 0
      %1159 = vmatmul.mubr.bf16.gmra.mrb[0].mxu0 %v1068
      %v1160 = vpop.f32.mrb[0].mxu0
      %v1161 = vadd.f32 0.0, %v1160
      %v1162 = vpop.f32.mrb[0].mxu0
      %v1163 = vadd.f32 0.0, %v1162
      %v1164 = vpop.f32.mrb[0].mxu0
      %v1165 = vadd.f32 0.0, %v1164
      %v1166 = vpop.f32.mrb[0].mxu0
      %v1167 = vadd.f32 0.0, %v1166
      %1168 = vmatprep.mubr.bf16.mxu0 0
      %1169 = vmatmul.mubr.bf16.gmra.mrb[0].mxu0 %v1071
      %v1170 = vpop.f32.mrb[0].mxu0
      %v1171 = vadd.f32 0.0, %v1170
      %v1172 = vpop.f32.mrb[0].mxu0
      %v1173 = vadd.f32 0.0, %v1172
      %v1174 = vpop.f32.mrb[0].mxu0
      %v1175 = vadd.f32 0.0, %v1174
      %v1176 = vpop.f32.mrb[0].mxu0
      %v1177 = vadd.f32 0.0, %v1176
      %1178 = vdwg.mxu0
      %1179 = vrot.lane.b32.xlu0 %v1108, 17
      %v1180 = vpop.permute.xlu0 %1179
      %1181 = vrot.lane.b32.xlu0 %v1110, 17
      %v1182 = vpop.permute.xlu0 %1181
      %1183 = vrot.lane.b32.xlu0 %v1161, 17
      %v1184 = vpop.permute.xlu0 %1183
      %1185 = vrot.lane.b32.xlu0 %v1163, 17
      %v1186 = vpop.permute.xlu0 %1185
      %v1187 = vsel %vm377, %v1184, %v1186
      %v1188 = vsel %vm377, %v1182, %v1184
      %v1189 = vsel %vm377, %v1180, %v1182
      %v1190 = vsel %vm377, %v1186, %v1180
      %v1191 = vld [vmem:[%s7] ss:$8 sm:$0xf]
      %v1193 = vlaneseq
      %v1194 = vshrl.u32 %v1193, 7
      %v1195 = vsub.s32 0, %v1194
      %v1196 = vrot.slane %v1191, %v1195
      %v1197 = vlaneseq
      %v1198 = vshrl.u32 %v1197, 7
      %v1199 = vsub.s32 1, %v1198
      %v1200 = vrot.slane %v1191, %v1199
      %v1201 = vlaneseq
      %v1202 = vshrl.u32 %v1201, 7
      %v1203 = vsub.s32 2, %v1202
      %v1204 = vrot.slane %v1191, %v1203
      %v1205 = vlaneseq
      %v1206 = vshrl.u32 %v1205, 7
      %v1207 = vsub.s32 3, %v1206
      %v1208 = vrot.slane %v1191, %v1207
      %v1213 = vmul.f32 %v1190, %v1196
      %v1214 = vmul.f32 %v1189, %v1200
      %v1215 = vmul.f32 %v1188, %v1204
      %v1216 = vmul.f32 %v1187, %v1208
      %v1221 = vrot.slane %v1213, 4
      %v1222 = vrot.slane %v1214, 4
      %v1223 = vrot.slane %v1215, 4
      %v1224 = vrot.slane %v1216, 4
      %v1229 = vadd.f32 %v1112, %v1221
      %v1230 = vadd.f32 %v1114, %v1222
      %v1231 = vadd.f32 %v1165, %v1223
      %v1232 = vadd.f32 %v1167, %v1224
      %v1237 = vrot.slane %v1108, 3
      %v1238 = vrot.slane %v1110, 3
      %v1239 = vrot.slane %v1161, 3
      %v1240 = vrot.slane %v1163, 3
      %1245 = vrot.lane.b32.xlu0 %v1237, 16
      %v1246 = vpop.permute.xlu0 %1245
      %1247 = vrot.lane.b32.xlu0 %v1238, 16
      %v1248 = vpop.permute.xlu0 %1247
      %1249 = vrot.lane.b32.xlu0 %v1239, 16
      %v1250 = vpop.permute.xlu0 %1249
      %1251 = vrot.lane.b32.xlu0 %v1240, 16
      %v1252 = vpop.permute.xlu0 %1251
      %v1253 = vsel %vm420, %v1250, %v1252
      %v1254 = vsel %vm420, %v1248, %v1250
      %v1255 = vsel %vm420, %v1246, %v1248
      %v1256 = vsel %vm420, %v1252, %v1246
      %v1257 = vld [vmem:[%s425] ss:$8 sm:$0xf]
      %v1259 = vlaneseq
      %v1260 = vshrl.u32 %v1259, 7
      %v1261 = vsub.s32 0, %v1260
      %v1262 = vrot.slane %v1257, %v1261
      %v1263 = vlaneseq
      %v1264 = vshrl.u32 %v1263, 7
      %v1265 = vsub.s32 1, %v1264
      %v1266 = vrot.slane %v1257, %v1265
      %v1267 = vlaneseq
      %v1268 = vshrl.u32 %v1267, 7
      %v1269 = vsub.s32 2, %v1268
      %v1270 = vrot.slane %v1257, %v1269
      %v1271 = vlaneseq
      %v1272 = vshrl.u32 %v1271, 7
      %v1273 = vsub.s32 3, %v1272
      %v1274 = vrot.slane %v1257, %v1273
      %v1279 = vmul.f32 %v1256, %v1262
      %v1280 = vmul.f32 %v1255, %v1266
      %v1281 = vmul.f32 %v1254, %v1270
      %v1282 = vmul.f32 %v1253, %v1274
      %v1287 = vrot.slane %v1279, 4
      %v1288 = vrot.slane %v1280, 4
      %v1289 = vrot.slane %v1281, 4
      %v1290 = vrot.slane %v1282, 4
      %v1295 = vadd.f32 %v1229, %v1287
      %v1296 = vadd.f32 %v1230, %v1288
      %v1297 = vadd.f32 %v1231, %v1289
      %v1298 = vadd.f32 %v1232, %v1290
      %vm1303 = vcmask 1041408
      %v1304 = vrot.slane %v1108, 6
      %v1305 = vrot.slane %v1112, 6
      %v1306 = vsel %vm1303, %v1304, %v1305
      %v1307 = vrot.slane %v1110, 6
      %v1308 = vrot.slane %v1114, 6
      %v1309 = vsel %vm1303, %v1307, %v1308
      %v1310 = vrot.slane %v1161, 6
      %v1311 = vrot.slane %v1165, 6
      %v1312 = vsel %vm1303, %v1310, %v1311
      %v1313 = vrot.slane %v1163, 6
      %v1314 = vrot.slane %v1167, 6
      %v1315 = vsel %vm1303, %v1313, %v1314
      %1320 = vrot.lane.b32.xlu0 %v1306, 15
      %v1321 = vpop.permute.xlu0 %1320
      %1322 = vrot.lane.b32.xlu0 %v1309, 15
      %v1323 = vpop.permute.xlu0 %1322
      %1324 = vrot.lane.b32.xlu0 %v1312, 15
      %v1325 = vpop.permute.xlu0 %1324
      %1326 = vrot.lane.b32.xlu0 %v1315, 15
      %v1327 = vpop.permute.xlu0 %1326
      %v1328 = vsel %vm476, %v1325, %v1327
      %v1329 = vsel %vm476, %v1323, %v1325
      %v1330 = vsel %vm476, %v1321, %v1323
      %v1331 = vsel %vm476, %v1327, %v1321
      %v1332 = vld [vmem:[%s481] ss:$8 sm:$0xf]
      %v1334 = vlaneseq
      %v1335 = vshrl.u32 %v1334, 7
      %v1336 = vsub.s32 0, %v1335
      %v1337 = vrot.slane %v1332, %v1336
      %v1338 = vlaneseq
      %v1339 = vshrl.u32 %v1338, 7
      %v1340 = vsub.s32 1, %v1339
      %v1341 = vrot.slane %v1332, %v1340
      %v1342 = vlaneseq
      %v1343 = vshrl.u32 %v1342, 7
      %v1344 = vsub.s32 2, %v1343
      %v1345 = vrot.slane %v1332, %v1344
      %v1346 = vlaneseq
      %v1347 = vshrl.u32 %v1346, 7
      %v1348 = vsub.s32 3, %v1347
      %v1349 = vrot.slane %v1332, %v1348
      %v1354 = vmul.f32 %v1331, %v1337
      %v1355 = vmul.f32 %v1330, %v1341
      %v1356 = vmul.f32 %v1329, %v1345
      %v1357 = vmul.f32 %v1328, %v1349
      %v1362 = vrot.slane %v1354, 4
      %v1363 = vrot.slane %v1355, 4
      %v1364 = vrot.slane %v1356, 4
      %v1365 = vrot.slane %v1357, 4
      %v1370 = vadd.f32 %v1295, %v1362
      %v1371 = vadd.f32 %v1296, %v1363
      %v1372 = vadd.f32 %v1297, %v1364
      %v1373 = vadd.f32 %v1298, %v1365
      %v1374 = vrot.slane %v1112, 1
      %v1375 = vrot.slane %v1114, 1
      %v1376 = vrot.slane %v1165, 1
      %v1377 = vrot.slane %v1167, 1
      %1382 = vrot.lane.b32.xlu0 %v1374, 1
      %v1383 = vpop.permute.xlu0 %1382
      %1384 = vrot.lane.b32.xlu0 %v1375, 1
      %v1385 = vpop.permute.xlu0 %1384
      %1386 = vrot.lane.b32.xlu0 %v1376, 1
      %v1387 = vpop.permute.xlu0 %1386
      %1388 = vrot.lane.b32.xlu0 %v1377, 1
      %v1389 = vpop.permute.xlu0 %1388
      %v1390 = vsel %vm536, %v1387, %v1389
      %v1391 = vsel %vm536, %v1385, %v1387
      %v1392 = vsel %vm536, %v1383, %v1385
      %v1393 = vsel %vm536, %v1389, %v1383
      %v1394 = vld [vmem:[%s541] ss:$8 sm:$0xf]
      %v1396 = vlaneseq
      %v1397 = vshrl.u32 %v1396, 7
      %v1398 = vsub.s32 0, %v1397
      %v1399 = vrot.slane %v1394, %v1398
      %v1400 = vlaneseq
      %v1401 = vshrl.u32 %v1400, 7
      %v1402 = vsub.s32 1, %v1401
      %v1403 = vrot.slane %v1394, %v1402
      %v1404 = vlaneseq
      %v1405 = vshrl.u32 %v1404, 7
      %v1406 = vsub.s32 2, %v1405
      %v1407 = vrot.slane %v1394, %v1406
      %v1408 = vlaneseq
      %v1409 = vshrl.u32 %v1408, 7
      %v1410 = vsub.s32 3, %v1409
      %v1411 = vrot.slane %v1394, %v1410
      %v1416 = vmul.f32 %v1393, %v1399
      %v1417 = vmul.f32 %v1392, %v1403
      %v1418 = vmul.f32 %v1391, %v1407
      %v1419 = vmul.f32 %v1390, %v1411
      %v1424 = vrot.slane %v1416, 4
      %v1425 = vrot.slane %v1417, 4
      %v1426 = vrot.slane %v1418, 4
      %v1427 = vrot.slane %v1419, 4
      %v1432 = vadd.f32 %v1370, %v1424
      %v1433 = vadd.f32 %v1371, %v1425
      %v1434 = vadd.f32 %v1372, %v1426
      %v1435 = vadd.f32 %v1373, %v1427
      %vm1440 = vcmask 1040384
      %v1441 = vrot.slane %v1112, 7
      %v1442 = vrot.slane %v1118, 7
      %v1443 = vsel %vm1440, %v1441, %v1442
      %v1444 = vrot.slane %v1114, 7
      %v1445 = vrot.slane %v1120, 7
      %v1446 = vsel %vm1440, %v1444, %v1445
      %v1447 = vrot.slane %v1165, 7
      %v1448 = vrot.slane %v1171, 7
      %v1449 = vsel %vm1440, %v1447, %v1448
      %v1450 = vrot.slane %v1167, 7
      %v1451 = vrot.slane %v1173, 7
      %v1452 = vsel %vm1440, %v1450, %v1451
      %1457 = vrot.lane.b32.xlu0 %v1443, 127
      %v1458 = vpop.permute.xlu0 %1457
      %1459 = vrot.lane.b32.xlu0 %v1446, 127
      %v1460 = vpop.permute.xlu0 %1459
      %1461 = vrot.lane.b32.xlu0 %v1449, 127
      %v1462 = vpop.permute.xlu0 %1461
      %1463 = vrot.lane.b32.xlu0 %v1452, 127
      %v1464 = vpop.permute.xlu0 %1463
      %v1465 = vsel %vm600, %v1462, %v1464
      %v1466 = vsel %vm600, %v1460, %v1462
      %v1467 = vsel %vm600, %v1458, %v1460
      %v1468 = vsel %vm600, %v1464, %v1458
      %v1469 = vld [vmem:[%s605] ss:$8 sm:$0xf]
      %v1471 = vlaneseq
      %v1472 = vshrl.u32 %v1471, 7
      %v1473 = vsub.s32 0, %v1472
      %v1474 = vrot.slane %v1469, %v1473
      %v1475 = vlaneseq
      %v1476 = vshrl.u32 %v1475, 7
      %v1477 = vsub.s32 1, %v1476
      %v1478 = vrot.slane %v1469, %v1477
      %v1479 = vlaneseq
      %v1480 = vshrl.u32 %v1479, 7
      %v1481 = vsub.s32 2, %v1480
      %v1482 = vrot.slane %v1469, %v1481
      %v1483 = vlaneseq
      %v1484 = vshrl.u32 %v1483, 7
      %v1485 = vsub.s32 3, %v1484
      %v1486 = vrot.slane %v1469, %v1485
      %v1491 = vmul.f32 %v1467, %v1474
      %v1492 = vmul.f32 %v1466, %v1478
      %v1493 = vmul.f32 %v1465, %v1482
      %v1494 = vmul.f32 %v1468, %v1486
      %v1499 = vrot.slane %v1491, 4
      %v1500 = vrot.slane %v1492, 4
      %v1501 = vrot.slane %v1493, 4
      %v1502 = vrot.slane %v1494, 4
      %v1507 = vadd.f32 %v1432, %v1499
      %v1508 = vadd.f32 %v1433, %v1500
      %v1509 = vadd.f32 %v1434, %v1501
      %v1510 = vadd.f32 %v1435, %v1502
      %v1511 = vrot.slane %v1118, 2
      %v1512 = vrot.slane %v1120, 2
      %v1513 = vrot.slane %v1171, 2
      %v1514 = vrot.slane %v1173, 2
      %1519 = vrot.lane.b32.xlu0 %v1511, 113
      %v1520 = vpop.permute.xlu0 %1519
      %1521 = vrot.lane.b32.xlu0 %v1512, 113
      %v1522 = vpop.permute.xlu0 %1521
      %1523 = vrot.lane.b32.xlu0 %v1513, 113
      %v1524 = vpop.permute.xlu0 %1523
      %1525 = vrot.lane.b32.xlu0 %v1514, 113
      %v1526 = vpop.permute.xlu0 %1525
      %v1527 = vsel %vm660, %v1524, %v1526
      %v1528 = vsel %vm660, %v1522, %v1524
      %v1529 = vsel %vm660, %v1520, %v1522
      %v1530 = vsel %vm660, %v1526, %v1520
      %v1531 = vld [vmem:[%s665] ss:$8 sm:$0xf]
      %v1533 = vlaneseq
      %v1534 = vshrl.u32 %v1533, 7
      %v1535 = vsub.s32 0, %v1534
      %v1536 = vrot.slane %v1531, %v1535
      %v1537 = vlaneseq
      %v1538 = vshrl.u32 %v1537, 7
      %v1539 = vsub.s32 1, %v1538
      %v1540 = vrot.slane %v1531, %v1539
      %v1541 = vlaneseq
      %v1542 = vshrl.u32 %v1541, 7
      %v1543 = vsub.s32 2, %v1542
      %v1544 = vrot.slane %v1531, %v1543
      %v1545 = vlaneseq
      %v1546 = vshrl.u32 %v1545, 7
      %v1547 = vsub.s32 3, %v1546
      %v1548 = vrot.slane %v1531, %v1547
      %v1553 = vmul.f32 %v1529, %v1536
      %v1554 = vmul.f32 %v1528, %v1540
      %v1555 = vmul.f32 %v1527, %v1544
      %v1556 = vmul.f32 %v1530, %v1548
      %v1561 = vrot.slane %v1553, 4
      %v1562 = vrot.slane %v1554, 4
      %v1563 = vrot.slane %v1555, 4
      %v1564 = vrot.slane %v1556, 4
      %v1569 = vadd.f32 %v1507, %v1561
      %v1570 = vadd.f32 %v1508, %v1562
      %v1571 = vadd.f32 %v1509, %v1563
      %v1572 = vadd.f32 %v1510, %v1564
      %v1573 = vrot.slane %v1118, 5
      %v1574 = vrot.slane %v1120, 5
      %v1575 = vrot.slane %v1171, 5
      %v1576 = vrot.slane %v1173, 5
      %1581 = vrot.lane.b32.xlu0 %v1573, 112
      %v1582 = vpop.permute.xlu0 %1581
      %1583 = vrot.lane.b32.xlu0 %v1574, 112
      %v1584 = vpop.permute.xlu0 %1583
      %1585 = vrot.lane.b32.xlu0 %v1575, 112
      %v1586 = vpop.permute.xlu0 %1585
      %1587 = vrot.lane.b32.xlu0 %v1576, 112
      %v1588 = vpop.permute.xlu0 %1587
      %v1589 = vsel %vm716, %v1586, %v1588
      %v1590 = vsel %vm716, %v1584, %v1586
      %v1591 = vsel %vm716, %v1582, %v1584
      %v1592 = vsel %vm716, %v1588, %v1582
      %v1593 = vld [vmem:[%s721] ss:$8 sm:$0xf]
      %v1595 = vlaneseq
      %v1596 = vshrl.u32 %v1595, 7
      %v1597 = vsub.s32 0, %v1596
      %v1598 = vrot.slane %v1593, %v1597
      %v1599 = vlaneseq
      %v1600 = vshrl.u32 %v1599, 7
      %v1601 = vsub.s32 1, %v1600
      %v1602 = vrot.slane %v1593, %v1601
      %v1603 = vlaneseq
      %v1604 = vshrl.u32 %v1603, 7
      %v1605 = vsub.s32 2, %v1604
      %v1606 = vrot.slane %v1593, %v1605
      %v1607 = vlaneseq
      %v1608 = vshrl.u32 %v1607, 7
      %v1609 = vsub.s32 3, %v1608
      %v1610 = vrot.slane %v1593, %v1609
      %v1615 = vmul.f32 %v1591, %v1598
      %v1616 = vmul.f32 %v1590, %v1602
      %v1617 = vmul.f32 %v1589, %v1606
      %v1618 = vmul.f32 %v1592, %v1610
      %v1623 = vrot.slane %v1615, 4
      %v1624 = vrot.slane %v1616, 4
      %v1625 = vrot.slane %v1617, 4
      %v1626 = vrot.slane %v1618, 4
      %v1631 = vadd.f32 %v1569, %v1623
      %v1632 = vadd.f32 %v1570, %v1624
      %v1633 = vadd.f32 %v1571, %v1625
      %v1634 = vadd.f32 %v1572, %v1626
      %1635 = vrot.lane.b32.xlu0 %v1122, 111
      %v1636 = vpop.permute.xlu0 %1635
      %1637 = vrot.lane.b32.xlu0 %v1124, 111
      %v1638 = vpop.permute.xlu0 %1637
      %1639 = vrot.lane.b32.xlu0 %v1175, 111
      %v1640 = vpop.permute.xlu0 %1639
      %1641 = vrot.lane.b32.xlu0 %v1177, 111
      %v1642 = vpop.permute.xlu0 %1641
      %v1643 = vsel %vm772, %v1640, %v1642
      %v1644 = vsel %vm772, %v1638, %v1640
      %v1645 = vsel %vm772, %v1636, %v1638
      %v1646 = vsel %vm772, %v1642, %v1636
      %v1647 = vld [vmem:[%s777] ss:$8 sm:$0xf]
      %v1649 = vlaneseq
      %v1650 = vshrl.u32 %v1649, 7
      %v1651 = vsub.s32 0, %v1650
      %v1652 = vrot.slane %v1647, %v1651
      %v1653 = vlaneseq
      %v1654 = vshrl.u32 %v1653, 7
      %v1655 = vsub.s32 1, %v1654
      %v1656 = vrot.slane %v1647, %v1655
      %v1657 = vlaneseq
      %v1658 = vshrl.u32 %v1657, 7
      %v1659 = vsub.s32 2, %v1658
      %v1660 = vrot.slane %v1647, %v1659
      %v1661 = vlaneseq
      %v1662 = vshrl.u32 %v1661, 7
      %v1663 = vsub.s32 3, %v1662
      %v1664 = vrot.slane %v1647, %v1663
      %v1669 = vmul.f32 %v1645, %v1652
      %v1670 = vmul.f32 %v1644, %v1656
      %v1671 = vmul.f32 %v1643, %v1660
      %v1672 = vmul.f32 %v1646, %v1664
      %v1677 = vrot.slane %v1669, 4
      %v1678 = vrot.slane %v1670, 4
      %v1679 = vrot.slane %v1671, 4
      %v1680 = vrot.slane %v1672, 4
      %v1685 = vadd.f32 %v1631, %v1677
      %v1686 = vadd.f32 %v1632, %v1678
      %v1687 = vadd.f32 %v1633, %v1679
      %v1688 = vadd.f32 %v1634, %v1680
      %1690 = vset.pattern.permute.xlu0 0
      %1691 = vperm.xlu0 %1690, %v358
      %v1692 = vpop.permute.xlu0 %1691
      %v1693 = vrot.slane %v1692, 4
      %v1695 = vadd.f32 %v1685, %v1693
      %v1696 = vadd.f32 %v1686, %v1693
      %v1697 = vadd.f32 %v1687, %v1693
      %v1698 = vadd.f32 %v1688, %v1693
      %v1699 = vtanh.pop %v1695
      %v1700 = vtanh.pop %v1696
      %v1701 = vtanh.pop %v1697
      %v1702 = vtanh.pop %v1698
      %v1703 = vmul.f32 %v1699, 0.05
      %v1704 = vmul.f32 %v1700, 0.05
      %v1705 = vmul.f32 %v1701, 0.05
      %v1706 = vmul.f32 %v1702, 0.05
      %v1711 = vcombine.high %v1703, %v1704
      %v1712 = vcombine.high %v1705, %v1706
      %v1715 = vadd.f32 %v359, %v1711
      %v1716 = vadd.f32 %v360, %v1712
      %1717 = vst [vmem:[%s343] sm:$0x77] %v1715
      %1718 = vst [vmem:[%s343 + $0x8] sm:$0x77] %v1716
      %s1719 = scalar_lea.vmem %s333, 16
      %v1720 = vld [vmem:[%s1719] sm:$0x77]
      %v1721 = vld [vmem:[%s1719 + $0x8] sm:$0x77]
      %v1724 = vcombine.high %v1720, %v1720
      %v1725 = vcombine.high %v1721, %v1721
      %1728 = vrot.lane.b32.xlu0 %v1720, 17
      %v1729 = vpop.permute.xlu0 %1728
      %1730 = vrot.lane.b32.xlu0 %v1724, 17
      %v1731 = vpop.permute.xlu0 %1730
      %1732 = vrot.lane.b32.xlu0 %v1721, 17
      %v1733 = vpop.permute.xlu0 %1732
      %1734 = vrot.lane.b32.xlu0 %v1725, 17
      %v1735 = vpop.permute.xlu0 %1734
      %v1736 = vsel %vm377, %v1733, %v1735
      %v1737 = vsel %vm377, %v1731, %v1733
      %v1738 = vsel %vm377, %v1729, %v1731
      %v1739 = vsel %vm377, %v1735, %v1729
      %v1740 = vld [vmem:[%s7] ss:$8 sm:$0xf]
      %v1742 = vlaneseq
      %v1743 = vshrl.u32 %v1742, 7
      %v1744 = vsub.s32 0, %v1743
      %v1745 = vrot.slane %v1740, %v1744
      %v1746 = vlaneseq
      %v1747 = vshrl.u32 %v1746, 7
      %v1748 = vsub.s32 1, %v1747
      %v1749 = vrot.slane %v1740, %v1748
      %v1750 = vlaneseq
      %v1751 = vshrl.u32 %v1750, 7
      %v1752 = vsub.s32 2, %v1751
      %v1753 = vrot.slane %v1740, %v1752
      %v1754 = vlaneseq
      %v1755 = vshrl.u32 %v1754, 7
      %v1756 = vsub.s32 3, %v1755
      %v1757 = vrot.slane %v1740, %v1756
      %v1762 = vmul.f32 %v1739, %v1745
      %v1763 = vmul.f32 %v1738, %v1749
      %v1764 = vmul.f32 %v1737, %v1753
      %v1765 = vmul.f32 %v1736, %v1757
      %1766 = vst [vmem:[#allocation2] sm:$0x7] %v1762
      %1767 = vst [vmem:[#allocation2 + $0x8] sm:$0x7] %v1763
      %1768 = vst [vmem:[#allocation2 + $0x10] sm:$0x7] %v1764
      %1769 = vst [vmem:[#allocation2 + $0x18] sm:$0x7] %v1765
      %1770 = vrot.lane.b32.xlu0 %v1720, 16
      %v1771 = vpop.permute.xlu0 %1770
      %1772 = vrot.lane.b32.xlu0 %v1724, 16
      %v1773 = vpop.permute.xlu0 %1772
      %1774 = vrot.lane.b32.xlu0 %v1721, 16
      %v1775 = vpop.permute.xlu0 %1774
      %1776 = vrot.lane.b32.xlu0 %v1725, 16
      %v1777 = vpop.permute.xlu0 %1776
      %v1778 = vsel %vm420, %v1775, %v1777
      %v1779 = vsel %vm420, %v1773, %v1775
      %v1780 = vsel %vm420, %v1771, %v1773
      %v1781 = vsel %vm420, %v1777, %v1771
      %v1782 = vld [vmem:[%s425] ss:$8 sm:$0xf]
      %v1784 = vlaneseq
      %v1785 = vshrl.u32 %v1784, 7
      %v1786 = vsub.s32 0, %v1785
      %v1787 = vrot.slane %v1782, %v1786
      %v1788 = vlaneseq
      %v1789 = vshrl.u32 %v1788, 7
      %v1790 = vsub.s32 1, %v1789
      %v1791 = vrot.slane %v1782, %v1790
      %v1792 = vlaneseq
      %v1793 = vshrl.u32 %v1792, 7
      %v1794 = vsub.s32 2, %v1793
      %v1795 = vrot.slane %v1782, %v1794
      %v1796 = vlaneseq
      %v1797 = vshrl.u32 %v1796, 7
      %v1798 = vsub.s32 3, %v1797
      %v1799 = vrot.slane %v1782, %v1798
      %v1804 = vmul.f32 %v1781, %v1787
      %v1805 = vmul.f32 %v1780, %v1791
      %v1806 = vmul.f32 %v1779, %v1795
      %v1807 = vmul.f32 %v1778, %v1799
      %v1812 = vrot.slane %v1804, 5
      %v1813 = vrot.slane %v1805, 5
      %v1814 = vrot.slane %v1806, 5
      %v1815 = vrot.slane %v1807, 5
      %1820 = vst [vmem:[#allocation2] sm:$0x38] %v1812
      %1821 = vst [vmem:[#allocation2 + $0x8] sm:$0x38] %v1813
      %1822 = vst [vmem:[#allocation2 + $0x10] sm:$0x38] %v1814
      %1823 = vst [vmem:[#allocation2 + $0x18] sm:$0x38] %v1815
      %1824 = vrot.lane.b32.xlu0 %v1720, 15
      %v1825 = vpop.permute.xlu0 %1824
      %1826 = vrot.lane.b32.xlu0 %v1724, 15
      %v1827 = vpop.permute.xlu0 %1826
      %1828 = vrot.lane.b32.xlu0 %v1721, 15
      %v1829 = vpop.permute.xlu0 %1828
      %1830 = vrot.lane.b32.xlu0 %v1725, 15
      %v1831 = vpop.permute.xlu0 %1830
      %v1832 = vsel %vm476, %v1829, %v1831
      %v1833 = vsel %vm476, %v1827, %v1829
      %v1834 = vsel %vm476, %v1825, %v1827
      %v1835 = vsel %vm476, %v1831, %v1825
      %v1836 = vld [vmem:[%s481] ss:$8 sm:$0xf]
      %v1838 = vlaneseq
      %v1839 = vshrl.u32 %v1838, 7
      %v1840 = vsub.s32 0, %v1839
      %v1841 = vrot.slane %v1836, %v1840
      %v1842 = vlaneseq
      %v1843 = vshrl.u32 %v1842, 7
      %v1844 = vsub.s32 1, %v1843
      %v1845 = vrot.slane %v1836, %v1844
      %v1846 = vlaneseq
      %v1847 = vshrl.u32 %v1846, 7
      %v1848 = vsub.s32 2, %v1847
      %v1849 = vrot.slane %v1836, %v1848
      %v1850 = vlaneseq
      %v1851 = vshrl.u32 %v1850, 7
      %v1852 = vsub.s32 3, %v1851
      %v1853 = vrot.slane %v1836, %v1852
      %v1858 = vmul.f32 %v1835, %v1841
      %v1859 = vmul.f32 %v1834, %v1845
      %v1860 = vmul.f32 %v1833, %v1849
      %v1861 = vmul.f32 %v1832, %v1853
      %v1866 = vrot.slane %v1858, 2
      %v1867 = vrot.slane %v1859, 2
      %v1868 = vrot.slane %v1860, 2
      %v1869 = vrot.slane %v1861, 2
      %1874 = vst [vmem:[#allocation2] sm:$0xc0] %v1866
      %1875 = vst [vmem:[#allocation2 + $0x8] sm:$0xc0] %v1867
      %1876 = vst [vmem:[#allocation2 + $0x10] sm:$0xc0] %v1868
      %1877 = vst [vmem:[#allocation2 + $0x18] sm:$0xc0] %v1869
      %1878 = vst [vmem:[#allocation2 + $0x20] sm:$0x1] %v1866
      %1879 = vst [vmem:[#allocation2 + $0x28] sm:$0x1] %v1867
      %1880 = vst [vmem:[#allocation2 + $0x30] sm:$0x1] %v1868
      %1881 = vst [vmem:[#allocation2 + $0x38] sm:$0x1] %v1869
      %1882 = vrot.lane.b32.xlu0 %v1720, 1
      %v1883 = vpop.permute.xlu0 %1882
      %1884 = vrot.lane.b32.xlu0 %v1724, 1
      %v1885 = vpop.permute.xlu0 %1884
      %1886 = vrot.lane.b32.xlu0 %v1721, 1
      %v1887 = vpop.permute.xlu0 %1886
      %1888 = vrot.lane.b32.xlu0 %v1725, 1
      %v1889 = vpop.permute.xlu0 %1888
      %v1890 = vsel %vm536, %v1887, %v1889
      %v1891 = vsel %vm536, %v1885, %v1887
      %v1892 = vsel %vm536, %v1883, %v1885
      %v1893 = vsel %vm536, %v1889, %v1883
      %v1894 = vld [vmem:[%s541] ss:$8 sm:$0xf]
      %v1896 = vlaneseq
      %v1897 = vshrl.u32 %v1896, 7
      %v1898 = vsub.s32 0, %v1897
      %v1899 = vrot.slane %v1894, %v1898
      %v1900 = vlaneseq
      %v1901 = vshrl.u32 %v1900, 7
      %v1902 = vsub.s32 1, %v1901
      %v1903 = vrot.slane %v1894, %v1902
      %v1904 = vlaneseq
      %v1905 = vshrl.u32 %v1904, 7
      %v1906 = vsub.s32 2, %v1905
      %v1907 = vrot.slane %v1894, %v1906
      %v1908 = vlaneseq
      %v1909 = vshrl.u32 %v1908, 7
      %v1910 = vsub.s32 3, %v1909
      %v1911 = vrot.slane %v1894, %v1910
      %v1916 = vmul.f32 %v1893, %v1899
      %v1917 = vmul.f32 %v1892, %v1903
      %v1918 = vmul.f32 %v1891, %v1907
      %v1919 = vmul.f32 %v1890, %v1911
      %v1924 = vrot.slane %v1916, 7
      %v1925 = vrot.slane %v1917, 7
      %v1926 = vrot.slane %v1918, 7
      %v1927 = vrot.slane %v1919, 7
      %1932 = vst [vmem:[#allocation2 + $0x20] sm:$0xe] %v1924
      %1933 = vst [vmem:[#allocation2 + $0x28] sm:$0xe] %v1925
      %1934 = vst [vmem:[#allocation2 + $0x30] sm:$0xe] %v1926
      %1935 = vst [vmem:[#allocation2 + $0x38] sm:$0xe] %v1927
      %v1936 = vcombine.low %v1720, %v1720
      %v1937 = vcombine.low %v1721, %v1721
      %1940 = vst [vmem:[#allocation2 + $0x20] sm:$0x70] %v1936
      %1941 = vst [vmem:[#allocation2 + $0x28] sm:$0x70] %v1720
      %1942 = vst [vmem:[#allocation2 + $0x30] sm:$0x70] %v1937
      %1943 = vst [vmem:[#allocation2 + $0x38] sm:$0x70] %v1721
      %1944 = vrot.lane.b32.xlu0 %v1720, 127
      %v1945 = vpop.permute.xlu0 %1944
      %1946 = vrot.lane.b32.xlu0 %v1724, 127
      %v1947 = vpop.permute.xlu0 %1946
      %1948 = vrot.lane.b32.xlu0 %v1721, 127
      %v1949 = vpop.permute.xlu0 %1948
      %1950 = vrot.lane.b32.xlu0 %v1725, 127
      %v1951 = vpop.permute.xlu0 %1950
      %v1952 = vsel %vm600, %v1949, %v1951
      %v1953 = vsel %vm600, %v1947, %v1949
      %v1954 = vsel %vm600, %v1945, %v1947
      %v1955 = vsel %vm600, %v1951, %v1945
      %v1956 = vld [vmem:[%s605] ss:$8 sm:$0xf]
      %v1958 = vlaneseq
      %v1959 = vshrl.u32 %v1958, 7
      %v1960 = vsub.s32 0, %v1959
      %v1961 = vrot.slane %v1956, %v1960
      %v1962 = vlaneseq
      %v1963 = vshrl.u32 %v1962, 7
      %v1964 = vsub.s32 1, %v1963
      %v1965 = vrot.slane %v1956, %v1964
      %v1966 = vlaneseq
      %v1967 = vshrl.u32 %v1966, 7
      %v1968 = vsub.s32 2, %v1967
      %v1969 = vrot.slane %v1956, %v1968
      %v1970 = vlaneseq
      %v1971 = vshrl.u32 %v1970, 7
      %v1972 = vsub.s32 3, %v1971
      %v1973 = vrot.slane %v1956, %v1972
      %v1978 = vmul.f32 %v1954, %v1961
      %v1979 = vmul.f32 %v1953, %v1965
      %v1980 = vmul.f32 %v1952, %v1969
      %v1981 = vmul.f32 %v1955, %v1973
      %v1986 = vrot.slane %v1978, 1
      %v1987 = vrot.slane %v1979, 1
      %v1988 = vrot.slane %v1980, 1
      %v1989 = vrot.slane %v1981, 1
      %1994 = vst [vmem:[#allocation2 + $0x20] sm:$0x80] %v1986
      %1995 = vst [vmem:[#allocation2 + $0x28] sm:$0x80] %v1987
      %1996 = vst [vmem:[#allocation2 + $0x30] sm:$0x80] %v1988
      %1997 = vst [vmem:[#allocation2 + $0x38] sm:$0x80] %v1989
      %1998 = vst [vmem:[#allocation2 + $0x40] sm:$0x3] %v1986
      %1999 = vst [vmem:[#allocation2 + $0x48] sm:$0x3] %v1987
      %2000 = vst [vmem:[#allocation2 + $0x50] sm:$0x3] %v1988
      %2001 = vst [vmem:[#allocation2 + $0x58] sm:$0x3] %v1989
      %2002 = vrot.lane.b32.xlu0 %v1720, 113
      %v2003 = vpop.permute.xlu0 %2002
      %2004 = vrot.lane.b32.xlu0 %v1724, 113
      %v2005 = vpop.permute.xlu0 %2004
      %2006 = vrot.lane.b32.xlu0 %v1721, 113
      %v2007 = vpop.permute.xlu0 %2006
      %2008 = vrot.lane.b32.xlu0 %v1725, 113
      %v2009 = vpop.permute.xlu0 %2008
      %v2010 = vsel %vm660, %v2007, %v2009
      %v2011 = vsel %vm660, %v2005, %v2007
      %v2012 = vsel %vm660, %v2003, %v2005
      %v2013 = vsel %vm660, %v2009, %v2003
      %v2014 = vld [vmem:[%s665] ss:$8 sm:$0xf]
      %v2016 = vlaneseq
      %v2017 = vshrl.u32 %v2016, 7
      %v2018 = vsub.s32 0, %v2017
      %v2019 = vrot.slane %v2014, %v2018
      %v2020 = vlaneseq
      %v2021 = vshrl.u32 %v2020, 7
      %v2022 = vsub.s32 1, %v2021
      %v2023 = vrot.slane %v2014, %v2022
      %v2024 = vlaneseq
      %v2025 = vshrl.u32 %v2024, 7
      %v2026 = vsub.s32 2, %v2025
      %v2027 = vrot.slane %v2014, %v2026
      %v2028 = vlaneseq
      %v2029 = vshrl.u32 %v2028, 7
      %v2030 = vsub.s32 3, %v2029
      %v2031 = vrot.slane %v2014, %v2030
      %v2036 = vmul.f32 %v2012, %v2019
      %v2037 = vmul.f32 %v2011, %v2023
      %v2038 = vmul.f32 %v2010, %v2027
      %v2039 = vmul.f32 %v2013, %v2031
      %v2044 = vrot.slane %v2036, 6
      %v2045 = vrot.slane %v2037, 6
      %v2046 = vrot.slane %v2038, 6
      %v2047 = vrot.slane %v2039, 6
      %2052 = vst [vmem:[#allocation2 + $0x40] sm:$0x1c] %v2044
      %2053 = vst [vmem:[#allocation2 + $0x48] sm:$0x1c] %v2045
      %2054 = vst [vmem:[#allocation2 + $0x50] sm:$0x1c] %v2046
      %2055 = vst [vmem:[#allocation2 + $0x58] sm:$0x1c] %v2047
      %2056 = vrot.lane.b32.xlu0 %v1720, 112
      %v2057 = vpop.permute.xlu0 %2056
      %2058 = vrot.lane.b32.xlu0 %v1724, 112
      %v2059 = vpop.permute.xlu0 %2058
      %2060 = vrot.lane.b32.xlu0 %v1721, 112
      %v2061 = vpop.permute.xlu0 %2060
      %2062 = vrot.lane.b32.xlu0 %v1725, 112
      %v2063 = vpop.permute.xlu0 %2062
      %v2064 = vsel %vm716, %v2061, %v2063
      %v2065 = vsel %vm716, %v2059, %v2061
      %v2066 = vsel %vm716, %v2057, %v2059
      %v2067 = vsel %vm716, %v2063, %v2057
      %v2068 = vld [vmem:[%s721] ss:$8 sm:$0xf]
      %v2070 = vlaneseq
      %v2071 = vshrl.u32 %v2070, 7
      %v2072 = vsub.s32 0, %v2071
      %v2073 = vrot.slane %v2068, %v2072
      %v2074 = vlaneseq
      %v2075 = vshrl.u32 %v2074, 7
      %v2076 = vsub.s32 1, %v2075
      %v2077 = vrot.slane %v2068, %v2076
      %v2078 = vlaneseq
      %v2079 = vshrl.u32 %v2078, 7
      %v2080 = vsub.s32 2, %v2079
      %v2081 = vrot.slane %v2068, %v2080
      %v2082 = vlaneseq
      %v2083 = vshrl.u32 %v2082, 7
      %v2084 = vsub.s32 3, %v2083
      %v2085 = vrot.slane %v2068, %v2084
      %v2090 = vmul.f32 %v2066, %v2073
      %v2091 = vmul.f32 %v2065, %v2077
      %v2092 = vmul.f32 %v2064, %v2081
      %v2093 = vmul.f32 %v2067, %v2085
      %v2098 = vrot.slane %v2090, 3
      %v2099 = vrot.slane %v2091, 3
      %v2100 = vrot.slane %v2092, 3
      %v2101 = vrot.slane %v2093, 3
      %2106 = vst [vmem:[#allocation2 + $0x40] sm:$0xe0] %v2098
      %2107 = vst [vmem:[#allocation2 + $0x48] sm:$0xe0] %v2099
      %2108 = vst [vmem:[#allocation2 + $0x50] sm:$0xe0] %v2100
      %2109 = vst [vmem:[#allocation2 + $0x58] sm:$0xe0] %v2101
      %2110 = vrot.lane.b32.xlu0 %v1720, 111
      %v2111 = vpop.permute.xlu0 %2110
      %2112 = vrot.lane.b32.xlu0 %v1724, 111
      %v2113 = vpop.permute.xlu0 %2112
      %2114 = vrot.lane.b32.xlu0 %v1721, 111
      %v2115 = vpop.permute.xlu0 %2114
      %2116 = vrot.lane.b32.xlu0 %v1725, 111
      %v2117 = vpop.permute.xlu0 %2116
      %v2118 = vsel %vm772, %v2115, %v2117
      %v2119 = vsel %vm772, %v2113, %v2115
      %v2120 = vsel %vm772, %v2111, %v2113
      %v2121 = vsel %vm772, %v2117, %v2111
      %v2122 = vld [vmem:[%s777] ss:$8 sm:$0xf]
      %v2124 = vlaneseq
      %v2125 = vshrl.u32 %v2124, 7
      %v2126 = vsub.s32 0, %v2125
      %v2127 = vrot.slane %v2122, %v2126
      %v2128 = vlaneseq
      %v2129 = vshrl.u32 %v2128, 7
      %v2130 = vsub.s32 1, %v2129
      %v2131 = vrot.slane %v2122, %v2130
      %v2132 = vlaneseq
      %v2133 = vshrl.u32 %v2132, 7
      %v2134 = vsub.s32 2, %v2133
      %v2135 = vrot.slane %v2122, %v2134
      %v2136 = vlaneseq
      %v2137 = vshrl.u32 %v2136, 7
      %v2138 = vsub.s32 3, %v2137
      %v2139 = vrot.slane %v2122, %v2138
      %v2144 = vmul.f32 %v2120, %v2127
      %v2145 = vmul.f32 %v2119, %v2131
      %v2146 = vmul.f32 %v2118, %v2135
      %v2147 = vmul.f32 %v2121, %v2139
      %2148 = vst [vmem:[#allocation2 + $0x60] sm:$0x7] %v2144
      %2149 = vst [vmem:[#allocation2 + $0x68] sm:$0x7] %v2145
      %2150 = vst [vmem:[#allocation2 + $0x70] sm:$0x7] %v2146
      %2151 = vst [vmem:[#allocation2 + $0x78] sm:$0x7] %v2147
      %v2152 = vld [vmem:[#allocation2] sm:$0xff]
      %v2153 = vld [vmem:[#allocation2 + $0x8] sm:$0xff]
      %v2154 = vld [vmem:[#allocation2 + $0x10] sm:$0xff]
      %v2155 = vld [vmem:[#allocation2 + $0x18] sm:$0xff]
      %v2156 = vld [vmem:[#allocation2 + $0x20] sm:$0xff]
      %v2157 = vld [vmem:[#allocation2 + $0x28] sm:$0xff]
      %v2158 = vld [vmem:[#allocation2 + $0x30] sm:$0xff]
      %v2159 = vld [vmem:[#allocation2 + $0x38] sm:$0xff]
      %v2160 = vld [vmem:[#allocation2 + $0x40] sm:$0xff]
      %v2161 = vld [vmem:[#allocation2 + $0x48] sm:$0xff]
      %v2162 = vld [vmem:[#allocation2 + $0x50] sm:$0xff]
      %v2163 = vld [vmem:[#allocation2 + $0x58] sm:$0xff]
      %v2164 = vld [vmem:[#allocation2 + $0x60] sm:$0x7]
      %v2165 = vld [vmem:[#allocation2 + $0x68] sm:$0x7]
      %v2166 = vld [vmem:[#allocation2 + $0x70] sm:$0x7]
      %v2167 = vld [vmem:[#allocation2 + $0x78] sm:$0x7]
      %v2169 = vsel %vm841, %v2164, 0
      %v2172 = vsel %vm841, %v2165, 0
      %v2175 = vsel %vm841, %v2166, 0
      %v2178 = vsel %vm841, %v2167, 0
      %2180 = vmatprep.subr.mxu0 %v2153
      %2181 = vmatpush1.msra.mxu0 %v2152
      %2182 = vmatprep.subr.mxu0 %v2157
      %2183 = vmatpush1.msra.mxu0 %v2156
      %2184 = vmatprep.subr.mxu0 %v2161
      %2185 = vmatpush1.msra.mxu0 %v2160
      %2186 = vmatprep.subr.mxu0 %v2172
      %2187 = vmatpush1.msra.mxu0 %v2169
      %2188 = vmatprep.subr.mxu0 0.0
      %2189 = vmatpush1.msra.mxu0 0.0
      %2190 = vmatprep.subr.mxu0 0.0
      %2191 = vmatpush1.msra.mxu0 0.0
      %2192 = vmatprep.subr.mxu0 0.0
      %2193 = vmatpush1.msra.mxu0 0.0
      %2194 = vmatprep.subr.mxu0 0.0
      %2195 = vmatpush1.msra.mxu0 0.0
      %2196 = vmatprep.subr.mxu0 0.0
      %2197 = vmatpush1.msra.mxu0 0.0
      %2198 = vmatprep.subr.mxu0 0.0
      %2199 = vmatpush1.msra.mxu0 0.0
      %2200 = vmatprep.subr.mxu0 0.0
      %2201 = vmatpush1.msra.mxu0 0.0
      %2202 = vmatprep.subr.mxu0 0.0
      %2203 = vmatpush1.msra.mxu0 0.0
      %2204 = vmatprep.subr.mxu0 0.0
      %2205 = vmatpush1.msra.mxu0 0.0
      %2206 = vmatprep.subr.mxu0 0.0
      %2207 = vmatpush1.msra.mxu0 0.0
      %2208 = vmatprep.subr.mxu0 0.0
      %2209 = vmatpush1.msra.mxu0 0.0
      %2210 = vmatprep.subr.mxu0 0.0
      %2211 = vmatpush1.msra.mxu0 0.0
      %2212 = vmatprep.subr.mxu0 0.0
      %2213 = vmatpush1.msra.mxu0 0.0
      %2214 = vmatprep.subr.mxu0 0.0
      %2215 = vmatpush1.msra.mxu0 0.0
      %2216 = vmatprep.subr.mxu0 0.0
      %2217 = vmatpush1.msra.mxu0 0.0
      %2218 = vmatprep.subr.mxu0 0.0
      %2219 = vmatpush1.msra.mxu0 0.0
      %2220 = vmatprep.subr.mxu0 0.0
      %2221 = vmatpush1.msra.mxu0 0.0
      %2222 = vmatprep.subr.mxu0 0.0
      %2223 = vmatpush1.msra.mxu0 0.0
      %2224 = vmatprep.subr.mxu0 0.0
      %2225 = vmatpush1.msra.mxu0 0.0
      %2226 = vmatprep.subr.mxu0 0.0
      %2227 = vmatpush1.msra.mxu0 0.0
      %2228 = vmatprep.subr.mxu0 0.0
      %2229 = vmatpush1.msra.mxu0 0.0
      %2230 = vmatprep.subr.mxu0 0.0
      %2231 = vmatpush1.msra.mxu0 0.0
      %2232 = vmatprep.subr.mxu0 0.0
      %2233 = vmatpush1.msra.mxu0 0.0
      %2234 = vmatprep.subr.mxu0 0.0
      %2235 = vmatpush1.msra.mxu0 0.0
      %2236 = vmatprep.subr.mxu0 0.0
      %2237 = vmatpush1.msra.mxu0 0.0
      %2238 = vmatprep.subr.mxu0 0.0
      %2239 = vmatpush1.msra.mxu0 0.0
      %2240 = vmatprep.subr.mxu0 0.0
      %2241 = vmatpush1.msra.mxu0 0.0
      %2242 = vmatprep.subr.mxu0 0.0
      %2243 = vmatpush1.msra.mxu0 0.0
      %2244 = vmatprep.mubr.f32.mxu0 0.0
      %2245 = vmatmul.mubr.f32.gmra.mrb[0].mxu0 %v836
      %v2246 = vpop.f32.mrb[0].mxu0
      %v2247 = vadd.f32 %v827, %v2246
      %v2248 = vpop.f32.mrb[0].mxu0
      %v2249 = vadd.f32 %v827, %v2248
      %2250 = vmatprep.mubr.f32.mxu0 0.0
      %2251 = vmatmul.mubr.f32.gmra.mrb[0].mxu0 %v839
      %v2252 = vpop.f32.mrb[0].mxu0
      %v2253 = vadd.f32 %v832, %v2252
      %v2254 = vpop.f32.mrb[0].mxu0
      %v2255 = vadd.f32 %v832, %v2254
      %2256 = vdwg.mxu0
      %2257 = vmatprep.subr.mxu0 %v2155
      %2258 = vmatpush1.msra.mxu0 %v2154
      %2259 = vmatprep.subr.mxu0 %v2159
      %2260 = vmatpush1.msra.mxu0 %v2158
      %2261 = vmatprep.subr.mxu0 %v2163
      %2262 = vmatpush1.msra.mxu0 %v2162
      %2263 = vmatprep.subr.mxu0 %v2178
      %2264 = vmatpush1.msra.mxu0 %v2175
      %2265 = vmatprep.subr.mxu0 0.0
      %2266 = vmatpush1.msra.mxu0 0.0
      %2267 = vmatprep.subr.mxu0 0.0
      %2268 = vmatpush1.msra.mxu0 0.0
      %2269 = vmatprep.subr.mxu0 0.0
      %2270 = vmatpush1.msra.mxu0 0.0
      %2271 = vmatprep.subr.mxu0 0.0
      %2272 = vmatpush1.msra.mxu0 0.0
      %2273 = vmatprep.subr.mxu0 0.0
      %2274 = vmatpush1.msra.mxu0 0.0
      %2275 = vmatprep.subr.mxu0 0.0
      %2276 = vmatpush1.msra.mxu0 0.0
      %2277 = vmatprep.subr.mxu0 0.0
      %2278 = vmatpush1.msra.mxu0 0.0
      %2279 = vmatprep.subr.mxu0 0.0
      %2280 = vmatpush1.msra.mxu0 0.0
      %2281 = vmatprep.subr.mxu0 0.0
      %2282 = vmatpush1.msra.mxu0 0.0
      %2283 = vmatprep.subr.mxu0 0.0
      %2284 = vmatpush1.msra.mxu0 0.0
      %2285 = vmatprep.subr.mxu0 0.0
      %2286 = vmatpush1.msra.mxu0 0.0
      %2287 = vmatprep.subr.mxu0 0.0
      %2288 = vmatpush1.msra.mxu0 0.0
      %2289 = vmatprep.subr.mxu0 0.0
      %2290 = vmatpush1.msra.mxu0 0.0
      %2291 = vmatprep.subr.mxu0 0.0
      %2292 = vmatpush1.msra.mxu0 0.0
      %2293 = vmatprep.subr.mxu0 0.0
      %2294 = vmatpush1.msra.mxu0 0.0
      %2295 = vmatprep.subr.mxu0 0.0
      %2296 = vmatpush1.msra.mxu0 0.0
      %2297 = vmatprep.subr.mxu0 0.0
      %2298 = vmatpush1.msra.mxu0 0.0
      %2299 = vmatprep.subr.mxu0 0.0
      %2300 = vmatpush1.msra.mxu0 0.0
      %2301 = vmatprep.subr.mxu0 0.0
      %2302 = vmatpush1.msra.mxu0 0.0
      %2303 = vmatprep.subr.mxu0 0.0
      %2304 = vmatpush1.msra.mxu0 0.0
      %2305 = vmatprep.subr.mxu0 0.0
      %2306 = vmatpush1.msra.mxu0 0.0
      %2307 = vmatprep.subr.mxu0 0.0
      %2308 = vmatpush1.msra.mxu0 0.0
      %2309 = vmatprep.subr.mxu0 0.0
      %2310 = vmatpush1.msra.mxu0 0.0
      %2311 = vmatprep.subr.mxu0 0.0
      %2312 = vmatpush1.msra.mxu0 0.0
      %2313 = vmatprep.subr.mxu0 0.0
      %2314 = vmatpush1.msra.mxu0 0.0
      %2315 = vmatprep.subr.mxu0 0.0
      %2316 = vmatpush1.msra.mxu0 0.0
      %2317 = vmatprep.subr.mxu0 0.0
      %2318 = vmatpush1.msra.mxu0 0.0
      %2319 = vmatprep.subr.mxu0 0.0
      %2320 = vmatpush1.msra.mxu0 0.0
      %2321 = vmatprep.mubr.f32.mxu0 0.0
      %2322 = vmatmul.mubr.f32.gmra.mrb[0].mxu0 %v836
      %v2323 = vpop.f32.mrb[0].mxu0
      %v2324 = vadd.f32 %v827, %v2323
      %v2325 = vpop.f32.mrb[0].mxu0
      %v2326 = vadd.f32 %v827, %v2325
      %2327 = vmatprep.mubr.f32.mxu0 0.0
      %2328 = vmatmul.mubr.f32.gmra.mrb[0].mxu0 %v839
      %v2329 = vpop.f32.mrb[0].mxu0
      %v2330 = vadd.f32 %v832, %v2329
      %v2331 = vpop.f32.mrb[0].mxu0
      %v2332 = vadd.f32 %v832, %v2331
      %2333 = vdwg.mxu0
      %v2334 = vtanh.pop %v2247
      %v2335 = vtanh.pop %v2249
      %v2336 = vtanh.pop %v2324
      %v2337 = vtanh.pop %v2326
      %v2338 = vtanh.pop %v2253
      %v2339 = vtanh.pop %v2255
      %v2340 = vtanh.pop %v2330
      %v2341 = vtanh.pop %v2332
      %v2342 = vmul.f32 %v2334, %v1019
      %v2343 = vmul.f32 %v2335, %v1019
      %v2344 = vmul.f32 %v2336, %v1019
      %v2345 = vmul.f32 %v2337, %v1019
      %v2346 = vmul.f32 %v2338, %v1024
      %v2347 = vmul.f32 %v2339, %v1024
      %v2348 = vmul.f32 %v2340, %v1024
      %v2349 = vmul.f32 %v2341, %v1024
      %v2350 = vadd.f32 %v2342, %v1037
      %v2351 = vadd.f32 %v2343, %v1037
      %v2352 = vadd.f32 %v2344, %v1037
      %v2353 = vadd.f32 %v2345, %v1037
      %v2354 = vadd.f32 %v2346, %v1042
      %v2355 = vadd.f32 %v2347, %v1042
      %v2356 = vadd.f32 %v2348, %v1042
      %v2357 = vadd.f32 %v2349, %v1042
      %v2358 = vpack.c.bf16 %v2354, %v2350
      %v2359 = vpack.c.bf16 %v2355, %v2351
      %v2360 = vpack.c.bf16 %v2356, %v2352
      %v2361 = vpack.c.bf16 %v2357, %v2353
      %2362 = vmatprep.subr.bf16.mxu0 %v2359
      %2363 = vmatpush1.bf16.msra.mxu0 %v2358
      %2364 = vmatprep.subr.bf16.mxu0 0
      %2365 = vmatpush1.bf16.msra.mxu0 0
      %2366 = vmatprep.subr.bf16.mxu0 0
      %2367 = vmatpush1.bf16.msra.mxu0 0
      %2368 = vmatprep.subr.bf16.mxu0 0
      %2369 = vmatpush1.bf16.msra.mxu0 0
      %2370 = vmatprep.subr.bf16.mxu0 0
      %2371 = vmatpush1.bf16.msra.mxu0 0
      %2372 = vmatprep.subr.bf16.mxu0 0
      %2373 = vmatpush1.bf16.msra.mxu0 0
      %2374 = vmatprep.subr.bf16.mxu0 0
      %2375 = vmatpush1.bf16.msra.mxu0 0
      %2376 = vmatprep.subr.bf16.mxu0 0
      %2377 = vmatpush1.bf16.msra.mxu0 0
      %2378 = vmatprep.subr.bf16.mxu0 0
      %2379 = vmatpush1.bf16.msra.mxu0 0
      %2380 = vmatprep.subr.bf16.mxu0 0
      %2381 = vmatpush1.bf16.msra.mxu0 0
      %2382 = vmatprep.subr.bf16.mxu0 0
      %2383 = vmatpush1.bf16.msra.mxu0 0
      %2384 = vmatprep.subr.bf16.mxu0 0
      %2385 = vmatpush1.bf16.msra.mxu0 0
      %2386 = vmatprep.subr.bf16.mxu0 0
      %2387 = vmatpush1.bf16.msra.mxu0 0
      %2388 = vmatprep.subr.bf16.mxu0 0
      %2389 = vmatpush1.bf16.msra.mxu0 0
      %2390 = vmatprep.subr.bf16.mxu0 0
      %2391 = vmatpush1.bf16.msra.mxu0 0
      %2392 = vmatprep.subr.bf16.mxu0 0
      %2393 = vmatpush1.bf16.msra.mxu0 0
      %2394 = vmatprep.mubr.bf16.mxu0 0
      %2395 = vmatmul.mubr.bf16.gmra.mrb[0].mxu0 %v1068
      %v2396 = vpop.f32.mrb[0].mxu0
      %v2397 = vadd.f32 0.0, %v2396
      %v2398 = vpop.f32.mrb[0].mxu0
      %v2399 = vadd.f32 0.0, %v2398
      %v2400 = vpop.f32.mrb[0].mxu0
      %v2401 = vadd.f32 0.0, %v2400
      %v2402 = vpop.f32.mrb[0].mxu0
      %v2403 = vadd.f32 0.0, %v2402
      %2404 = vmatprep.mubr.bf16.mxu0 0
      %2405 = vmatmul.mubr.bf16.gmra.mrb[0].mxu0 %v1071
      %v2406 = vpop.f32.mrb[0].mxu0
      %v2407 = vadd.f32 0.0, %v2406
      %v2408 = vpop.f32.mrb[0].mxu0
      %v2409 = vadd.f32 0.0, %v2408
      %v2410 = vpop.f32.mrb[0].mxu0
      %v2411 = vadd.f32 0.0, %v2410
      %v2412 = vpop.f32.mrb[0].mxu0
      %v2413 = vadd.f32 0.0, %v2412
      %2414 = vdwg.mxu0
      %2415 = vmatprep.subr.bf16.mxu0 %v2361
      %2416 = vmatpush1.bf16.msra.mxu0 %v2360
      %2417 = vmatprep.subr.bf16.mxu0 0
      %2418 = vmatpush1.bf16.msra.mxu0 0
      %2419 = vmatprep.subr.bf16.mxu0 0
      %2420 = vmatpush1.bf16.msra.mxu0 0
      %2421 = vmatprep.subr.bf16.mxu0 0
      %2422 = vmatpush1.bf16.msra.mxu0 0
      %2423 = vmatprep.subr.bf16.mxu0 0
      %2424 = vmatpush1.bf16.msra.mxu0 0
      %2425 = vmatprep.subr.bf16.mxu0 0
      %2426 = vmatpush1.bf16.msra.mxu0 0
      %2427 = vmatprep.subr.bf16.mxu0 0
      %2428 = vmatpush1.bf16.msra.mxu0 0
      %2429 = vmatprep.subr.bf16.mxu0 0
      %2430 = vmatpush1.bf16.msra.mxu0 0
      %2431 = vmatprep.subr.bf16.mxu0 0
      %2432 = vmatpush1.bf16.msra.mxu0 0
      %2433 = vmatprep.subr.bf16.mxu0 0
      %2434 = vmatpush1.bf16.msra.mxu0 0
      %2435 = vmatprep.subr.bf16.mxu0 0
      %2436 = vmatpush1.bf16.msra.mxu0 0
      %2437 = vmatprep.subr.bf16.mxu0 0
      %2438 = vmatpush1.bf16.msra.mxu0 0
      %2439 = vmatprep.subr.bf16.mxu0 0
      %2440 = vmatpush1.bf16.msra.mxu0 0
      %2441 = vmatprep.subr.bf16.mxu0 0
      %2442 = vmatpush1.bf16.msra.mxu0 0
      %2443 = vmatprep.subr.bf16.mxu0 0
      %2444 = vmatpush1.bf16.msra.mxu0 0
      %2445 = vmatprep.subr.bf16.mxu0 0
      %2446 = vmatpush1.bf16.msra.mxu0 0
      %2447 = vmatprep.mubr.bf16.mxu0 0
      %2448 = vmatmul.mubr.bf16.gmra.mrb[0].mxu0 %v1068
      %v2449 = vpop.f32.mrb[0].mxu0
      %v2450 = vadd.f32 0.0, %v2449
      %v2451 = vpop.f32.mrb[0].mxu0
      %v2452 = vadd.f32 0.0, %v2451
      %v2453 = vpop.f32.mrb[0].mxu0
      %v2454 = vadd.f32 0.0, %v2453
      %v2455 = vpop.f32.mrb[0].mxu0
      %v2456 = vadd.f32 0.0, %v2455
      %2457 = vmatprep.mubr.bf16.mxu0 0
      %2458 = vmatmul.mubr.bf16.gmra.mrb[0].mxu0 %v1071
      %v2459 = vpop.f32.mrb[0].mxu0
      %v2460 = vadd.f32 0.0, %v2459
      %v2461 = vpop.f32.mrb[0].mxu0
      %v2462 = vadd.f32 0.0, %v2461
      %v2463 = vpop.f32.mrb[0].mxu0
      %v2464 = vadd.f32 0.0, %v2463
      %v2465 = vpop.f32.mrb[0].mxu0
      %v2466 = vadd.f32 0.0, %v2465
      %2467 = vdwg.mxu0
      %2468 = vrot.lane.b32.xlu0 %v2397, 17
      %v2469 = vpop.permute.xlu0 %2468
      %2470 = vrot.lane.b32.xlu0 %v2399, 17
      %v2471 = vpop.permute.xlu0 %2470
      %2472 = vrot.lane.b32.xlu0 %v2450, 17
      %v2473 = vpop.permute.xlu0 %2472
      %2474 = vrot.lane.b32.xlu0 %v2452, 17
      %v2475 = vpop.permute.xlu0 %2474
      %v2476 = vsel %vm377, %v2473, %v2475
      %v2477 = vsel %vm377, %v2471, %v2473
      %v2478 = vsel %vm377, %v2469, %v2471
      %v2479 = vsel %vm377, %v2475, %v2469
      %v2480 = vld [vmem:[%s7] ss:$8 sm:$0xf]
      %v2482 = vlaneseq
      %v2483 = vshrl.u32 %v2482, 7
      %v2484 = vsub.s32 0, %v2483
      %v2485 = vrot.slane %v2480, %v2484
      %v2486 = vlaneseq
      %v2487 = vshrl.u32 %v2486, 7
      %v2488 = vsub.s32 1, %v2487
      %v2489 = vrot.slane %v2480, %v2488
      %v2490 = vlaneseq
      %v2491 = vshrl.u32 %v2490, 7
      %v2492 = vsub.s32 2, %v2491
      %v2493 = vrot.slane %v2480, %v2492
      %v2494 = vlaneseq
      %v2495 = vshrl.u32 %v2494, 7
      %v2496 = vsub.s32 3, %v2495
      %v2497 = vrot.slane %v2480, %v2496
      %v2502 = vmul.f32 %v2479, %v2485
      %v2503 = vmul.f32 %v2478, %v2489
      %v2504 = vmul.f32 %v2477, %v2493
      %v2505 = vmul.f32 %v2476, %v2497
      %v2510 = vrot.slane %v2502, 4
      %v2511 = vrot.slane %v2503, 4
      %v2512 = vrot.slane %v2504, 4
      %v2513 = vrot.slane %v2505, 4
      %v2518 = vadd.f32 %v2401, %v2510
      %v2519 = vadd.f32 %v2403, %v2511
      %v2520 = vadd.f32 %v2454, %v2512
      %v2521 = vadd.f32 %v2456, %v2513
      %v2526 = vrot.slane %v2397, 3
      %v2527 = vrot.slane %v2399, 3
      %v2528 = vrot.slane %v2450, 3
      %v2529 = vrot.slane %v2452, 3
      %2534 = vrot.lane.b32.xlu0 %v2526, 16
      %v2535 = vpop.permute.xlu0 %2534
      %2536 = vrot.lane.b32.xlu0 %v2527, 16
      %v2537 = vpop.permute.xlu0 %2536
      %2538 = vrot.lane.b32.xlu0 %v2528, 16
      %v2539 = vpop.permute.xlu0 %2538
      %2540 = vrot.lane.b32.xlu0 %v2529, 16
      %v2541 = vpop.permute.xlu0 %2540
      %v2542 = vsel %vm420, %v2539, %v2541
      %v2543 = vsel %vm420, %v2537, %v2539
      %v2544 = vsel %vm420, %v2535, %v2537
      %v2545 = vsel %vm420, %v2541, %v2535
      %v2546 = vld [vmem:[%s425] ss:$8 sm:$0xf]
      %v2548 = vlaneseq
      %v2549 = vshrl.u32 %v2548, 7
      %v2550 = vsub.s32 0, %v2549
      %v2551 = vrot.slane %v2546, %v2550
      %v2552 = vlaneseq
      %v2553 = vshrl.u32 %v2552, 7
      %v2554 = vsub.s32 1, %v2553
      %v2555 = vrot.slane %v2546, %v2554
      %v2556 = vlaneseq
      %v2557 = vshrl.u32 %v2556, 7
      %v2558 = vsub.s32 2, %v2557
      %v2559 = vrot.slane %v2546, %v2558
      %v2560 = vlaneseq
      %v2561 = vshrl.u32 %v2560, 7
      %v2562 = vsub.s32 3, %v2561
      %v2563 = vrot.slane %v2546, %v2562
      %v2568 = vmul.f32 %v2545, %v2551
      %v2569 = vmul.f32 %v2544, %v2555
      %v2570 = vmul.f32 %v2543, %v2559
      %v2571 = vmul.f32 %v2542, %v2563
      %v2576 = vrot.slane %v2568, 4
      %v2577 = vrot.slane %v2569, 4
      %v2578 = vrot.slane %v2570, 4
      %v2579 = vrot.slane %v2571, 4
      %v2584 = vadd.f32 %v2518, %v2576
      %v2585 = vadd.f32 %v2519, %v2577
      %v2586 = vadd.f32 %v2520, %v2578
      %v2587 = vadd.f32 %v2521, %v2579
      %v2592 = vrot.slane %v2397, 6
      %v2593 = vrot.slane %v2401, 6
      %v2594 = vsel %vm1303, %v2592, %v2593
      %v2595 = vrot.slane %v2399, 6
      %v2596 = vrot.slane %v2403, 6
      %v2597 = vsel %vm1303, %v2595, %v2596
      %v2598 = vrot.slane %v2450, 6
      %v2599 = vrot.slane %v2454, 6
      %v2600 = vsel %vm1303, %v2598, %v2599
      %v2601 = vrot.slane %v2452, 6
      %v2602 = vrot.slane %v2456, 6
      %v2603 = vsel %vm1303, %v2601, %v2602
      %2608 = vrot.lane.b32.xlu0 %v2594, 15
      %v2609 = vpop.permute.xlu0 %2608
      %2610 = vrot.lane.b32.xlu0 %v2597, 15
      %v2611 = vpop.permute.xlu0 %2610
      %2612 = vrot.lane.b32.xlu0 %v2600, 15
      %v2613 = vpop.permute.xlu0 %2612
      %2614 = vrot.lane.b32.xlu0 %v2603, 15
      %v2615 = vpop.permute.xlu0 %2614
      %v2616 = vsel %vm476, %v2613, %v2615
      %v2617 = vsel %vm476, %v2611, %v2613
      %v2618 = vsel %vm476, %v2609, %v2611
      %v2619 = vsel %vm476, %v2615, %v2609
      %v2620 = vld [vmem:[%s481] ss:$8 sm:$0xf]
      %v2622 = vlaneseq
      %v2623 = vshrl.u32 %v2622, 7
      %v2624 = vsub.s32 0, %v2623
      %v2625 = vrot.slane %v2620, %v2624
      %v2626 = vlaneseq
      %v2627 = vshrl.u32 %v2626, 7
      %v2628 = vsub.s32 1, %v2627
      %v2629 = vrot.slane %v2620, %v2628
      %v2630 = vlaneseq
      %v2631 = vshrl.u32 %v2630, 7
      %v2632 = vsub.s32 2, %v2631
      %v2633 = vrot.slane %v2620, %v2632
      %v2634 = vlaneseq
      %v2635 = vshrl.u32 %v2634, 7
      %v2636 = vsub.s32 3, %v2635
      %v2637 = vrot.slane %v2620, %v2636
      %v2642 = vmul.f32 %v2619, %v2625
      %v2643 = vmul.f32 %v2618, %v2629
      %v2644 = vmul.f32 %v2617, %v2633
      %v2645 = vmul.f32 %v2616, %v2637
      %v2650 = vrot.slane %v2642, 4
      %v2651 = vrot.slane %v2643, 4
      %v2652 = vrot.slane %v2644, 4
      %v2653 = vrot.slane %v2645, 4
      %v2658 = vadd.f32 %v2584, %v2650
      %v2659 = vadd.f32 %v2585, %v2651
      %v2660 = vadd.f32 %v2586, %v2652
      %v2661 = vadd.f32 %v2587, %v2653
      %v2662 = vrot.slane %v2401, 1
      %v2663 = vrot.slane %v2403, 1
      %v2664 = vrot.slane %v2454, 1
      %v2665 = vrot.slane %v2456, 1
      %2670 = vrot.lane.b32.xlu0 %v2662, 1
      %v2671 = vpop.permute.xlu0 %2670
      %2672 = vrot.lane.b32.xlu0 %v2663, 1
      %v2673 = vpop.permute.xlu0 %2672
      %2674 = vrot.lane.b32.xlu0 %v2664, 1
      %v2675 = vpop.permute.xlu0 %2674
      %2676 = vrot.lane.b32.xlu0 %v2665, 1
      %v2677 = vpop.permute.xlu0 %2676
      %v2678 = vsel %vm536, %v2675, %v2677
      %v2679 = vsel %vm536, %v2673, %v2675
      %v2680 = vsel %vm536, %v2671, %v2673
      %v2681 = vsel %vm536, %v2677, %v2671
      %v2682 = vld [vmem:[%s541] ss:$8 sm:$0xf]
      %v2684 = vlaneseq
      %v2685 = vshrl.u32 %v2684, 7
      %v2686 = vsub.s32 0, %v2685
      %v2687 = vrot.slane %v2682, %v2686
      %v2688 = vlaneseq
      %v2689 = vshrl.u32 %v2688, 7
      %v2690 = vsub.s32 1, %v2689
      %v2691 = vrot.slane %v2682, %v2690
      %v2692 = vlaneseq
      %v2693 = vshrl.u32 %v2692, 7
      %v2694 = vsub.s32 2, %v2693
      %v2695 = vrot.slane %v2682, %v2694
      %v2696 = vlaneseq
      %v2697 = vshrl.u32 %v2696, 7
      %v2698 = vsub.s32 3, %v2697
      %v2699 = vrot.slane %v2682, %v2698
      %v2704 = vmul.f32 %v2681, %v2687
      %v2705 = vmul.f32 %v2680, %v2691
      %v2706 = vmul.f32 %v2679, %v2695
      %v2707 = vmul.f32 %v2678, %v2699
      %v2712 = vrot.slane %v2704, 4
      %v2713 = vrot.slane %v2705, 4
      %v2714 = vrot.slane %v2706, 4
      %v2715 = vrot.slane %v2707, 4
      %v2720 = vadd.f32 %v2658, %v2712
      %v2721 = vadd.f32 %v2659, %v2713
      %v2722 = vadd.f32 %v2660, %v2714
      %v2723 = vadd.f32 %v2661, %v2715
      %v2728 = vrot.slane %v2401, 7
      %v2729 = vrot.slane %v2407, 7
      %v2730 = vsel %vm1440, %v2728, %v2729
      %v2731 = vrot.slane %v2403, 7
      %v2732 = vrot.slane %v2409, 7
      %v2733 = vsel %vm1440, %v2731, %v2732
      %v2734 = vrot.slane %v2454, 7
      %v2735 = vrot.slane %v2460, 7
      %v2736 = vsel %vm1440, %v2734, %v2735
      %v2737 = vrot.slane %v2456, 7
      %v2738 = vrot.slane %v2462, 7
      %v2739 = vsel %vm1440, %v2737, %v2738
      %2744 = vrot.lane.b32.xlu0 %v2730, 127
      %v2745 = vpop.permute.xlu0 %2744
      %2746 = vrot.lane.b32.xlu0 %v2733, 127
      %v2747 = vpop.permute.xlu0 %2746
      %2748 = vrot.lane.b32.xlu0 %v2736, 127
      %v2749 = vpop.permute.xlu0 %2748
      %2750 = vrot.lane.b32.xlu0 %v2739, 127
      %v2751 = vpop.permute.xlu0 %2750
      %v2752 = vsel %vm600, %v2749, %v2751
      %v2753 = vsel %vm600, %v2747, %v2749
      %v2754 = vsel %vm600, %v2745, %v2747
      %v2755 = vsel %vm600, %v2751, %v2745
      %v2756 = vld [vmem:[%s605] ss:$8 sm:$0xf]
      %v2758 = vlaneseq
      %v2759 = vshrl.u32 %v2758, 7
      %v2760 = vsub.s32 0, %v2759
      %v2761 = vrot.slane %v2756, %v2760
      %v2762 = vlaneseq
      %v2763 = vshrl.u32 %v2762, 7
      %v2764 = vsub.s32 1, %v2763
      %v2765 = vrot.slane %v2756, %v2764
      %v2766 = vlaneseq
      %v2767 = vshrl.u32 %v2766, 7
      %v2768 = vsub.s32 2, %v2767
      %v2769 = vrot.slane %v2756, %v2768
      %v2770 = vlaneseq
      %v2771 = vshrl.u32 %v2770, 7
      %v2772 = vsub.s32 3, %v2771
      %v2773 = vrot.slane %v2756, %v2772
      %v2778 = vmul.f32 %v2754, %v2761
      %v2779 = vmul.f32 %v2753, %v2765
      %v2780 = vmul.f32 %v2752, %v2769
      %v2781 = vmul.f32 %v2755, %v2773
      %v2786 = vrot.slane %v2778, 4
      %v2787 = vrot.slane %v2779, 4
      %v2788 = vrot.slane %v2780, 4
      %v2789 = vrot.slane %v2781, 4
      %v2794 = vadd.f32 %v2720, %v2786
      %v2795 = vadd.f32 %v2721, %v2787
      %v2796 = vadd.f32 %v2722, %v2788
      %v2797 = vadd.f32 %v2723, %v2789
      %v2798 = vrot.slane %v2407, 2
      %v2799 = vrot.slane %v2409, 2
      %v2800 = vrot.slane %v2460, 2
      %v2801 = vrot.slane %v2462, 2
      %2806 = vrot.lane.b32.xlu0 %v2798, 113
      %v2807 = vpop.permute.xlu0 %2806
      %2808 = vrot.lane.b32.xlu0 %v2799, 113
      %v2809 = vpop.permute.xlu0 %2808
      %2810 = vrot.lane.b32.xlu0 %v2800, 113
      %v2811 = vpop.permute.xlu0 %2810
      %2812 = vrot.lane.b32.xlu0 %v2801, 113
      %v2813 = vpop.permute.xlu0 %2812
      %v2814 = vsel %vm660, %v2811, %v2813
      %v2815 = vsel %vm660, %v2809, %v2811
      %v2816 = vsel %vm660, %v2807, %v2809
      %v2817 = vsel %vm660, %v2813, %v2807
      %v2818 = vld [vmem:[%s665] ss:$8 sm:$0xf]
      %v2820 = vlaneseq
      %v2821 = vshrl.u32 %v2820, 7
      %v2822 = vsub.s32 0, %v2821
      %v2823 = vrot.slane %v2818, %v2822
      %v2824 = vlaneseq
      %v2825 = vshrl.u32 %v2824, 7
      %v2826 = vsub.s32 1, %v2825
      %v2827 = vrot.slane %v2818, %v2826
      %v2828 = vlaneseq
      %v2829 = vshrl.u32 %v2828, 7
      %v2830 = vsub.s32 2, %v2829
      %v2831 = vrot.slane %v2818, %v2830
      %v2832 = vlaneseq
      %v2833 = vshrl.u32 %v2832, 7
      %v2834 = vsub.s32 3, %v2833
      %v2835 = vrot.slane %v2818, %v2834
      %v2840 = vmul.f32 %v2816, %v2823
      %v2841 = vmul.f32 %v2815, %v2827
      %v2842 = vmul.f32 %v2814, %v2831
      %v2843 = vmul.f32 %v2817, %v2835
      %v2848 = vrot.slane %v2840, 4
      %v2849 = vrot.slane %v2841, 4
      %v2850 = vrot.slane %v2842, 4
      %v2851 = vrot.slane %v2843, 4
      %v2856 = vadd.f32 %v2794, %v2848
      %v2857 = vadd.f32 %v2795, %v2849
      %v2858 = vadd.f32 %v2796, %v2850
      %v2859 = vadd.f32 %v2797, %v2851
      %v2860 = vrot.slane %v2407, 5
      %v2861 = vrot.slane %v2409, 5
      %v2862 = vrot.slane %v2460, 5
      %v2863 = vrot.slane %v2462, 5
      %2868 = vrot.lane.b32.xlu0 %v2860, 112
      %v2869 = vpop.permute.xlu0 %2868
      %2870 = vrot.lane.b32.xlu0 %v2861, 112
      %v2871 = vpop.permute.xlu0 %2870
      %2872 = vrot.lane.b32.xlu0 %v2862, 112
      %v2873 = vpop.permute.xlu0 %2872
      %2874 = vrot.lane.b32.xlu0 %v2863, 112
      %v2875 = vpop.permute.xlu0 %2874
      %v2876 = vsel %vm716, %v2873, %v2875
      %v2877 = vsel %vm716, %v2871, %v2873
      %v2878 = vsel %vm716, %v2869, %v2871
      %v2879 = vsel %vm716, %v2875, %v2869
      %v2880 = vld [vmem:[%s721] ss:$8 sm:$0xf]
      %v2882 = vlaneseq
      %v2883 = vshrl.u32 %v2882, 7
      %v2884 = vsub.s32 0, %v2883
      %v2885 = vrot.slane %v2880, %v2884
      %v2886 = vlaneseq
      %v2887 = vshrl.u32 %v2886, 7
      %v2888 = vsub.s32 1, %v2887
      %v2889 = vrot.slane %v2880, %v2888
      %v2890 = vlaneseq
      %v2891 = vshrl.u32 %v2890, 7
      %v2892 = vsub.s32 2, %v2891
      %v2893 = vrot.slane %v2880, %v2892
      %v2894 = vlaneseq
      %v2895 = vshrl.u32 %v2894, 7
      %v2896 = vsub.s32 3, %v2895
      %v2897 = vrot.slane %v2880, %v2896
      %v2902 = vmul.f32 %v2878, %v2885
      %v2903 = vmul.f32 %v2877, %v2889
      %v2904 = vmul.f32 %v2876, %v2893
      %v2905 = vmul.f32 %v2879, %v2897
      %v2910 = vrot.slane %v2902, 4
      %v2911 = vrot.slane %v2903, 4
      %v2912 = vrot.slane %v2904, 4
      %v2913 = vrot.slane %v2905, 4
      %v2918 = vadd.f32 %v2856, %v2910
      %v2919 = vadd.f32 %v2857, %v2911
      %v2920 = vadd.f32 %v2858, %v2912
      %v2921 = vadd.f32 %v2859, %v2913
      %2922 = vrot.lane.b32.xlu0 %v2411, 111
      %v2923 = vpop.permute.xlu0 %2922
      %2924 = vrot.lane.b32.xlu0 %v2413, 111
      %v2925 = vpop.permute.xlu0 %2924
      %2926 = vrot.lane.b32.xlu0 %v2464, 111
      %v2927 = vpop.permute.xlu0 %2926
      %2928 = vrot.lane.b32.xlu0 %v2466, 111
      %v2929 = vpop.permute.xlu0 %2928
      %v2930 = vsel %vm772, %v2927, %v2929
      %v2931 = vsel %vm772, %v2925, %v2927
      %v2932 = vsel %vm772, %v2923, %v2925
      %v2933 = vsel %vm772, %v2929, %v2923
      %v2934 = vld [vmem:[%s777] ss:$8 sm:$0xf]
      %v2936 = vlaneseq
      %v2937 = vshrl.u32 %v2936, 7
      %v2938 = vsub.s32 0, %v2937
      %v2939 = vrot.slane %v2934, %v2938
      %v2940 = vlaneseq
      %v2941 = vshrl.u32 %v2940, 7
      %v2942 = vsub.s32 1, %v2941
      %v2943 = vrot.slane %v2934, %v2942
      %v2944 = vlaneseq
      %v2945 = vshrl.u32 %v2944, 7
      %v2946 = vsub.s32 2, %v2945
      %v2947 = vrot.slane %v2934, %v2946
      %v2948 = vlaneseq
      %v2949 = vshrl.u32 %v2948, 7
      %v2950 = vsub.s32 3, %v2949
      %v2951 = vrot.slane %v2934, %v2950
      %v2956 = vmul.f32 %v2932, %v2939
      %v2957 = vmul.f32 %v2931, %v2943
      %v2958 = vmul.f32 %v2930, %v2947
      %v2959 = vmul.f32 %v2933, %v2951
      %v2964 = vrot.slane %v2956, 4
      %v2965 = vrot.slane %v2957, 4
      %v2966 = vrot.slane %v2958, 4
      %v2967 = vrot.slane %v2959, 4
      %v2972 = vadd.f32 %v2918, %v2964
      %v2973 = vadd.f32 %v2919, %v2965
      %v2974 = vadd.f32 %v2920, %v2966
      %v2975 = vadd.f32 %v2921, %v2967
      %v2976 = vadd.f32 %v2972, %v1693
      %v2977 = vadd.f32 %v2973, %v1693
      %v2978 = vadd.f32 %v2974, %v1693
      %v2979 = vadd.f32 %v2975, %v1693
      %v2980 = vtanh.pop %v2976
      %v2981 = vtanh.pop %v2977
      %v2982 = vtanh.pop %v2978
      %v2983 = vtanh.pop %v2979
      %v2984 = vmul.f32 %v2980, 0.05
      %v2985 = vmul.f32 %v2981, 0.05
      %v2986 = vmul.f32 %v2982, 0.05
      %v2987 = vmul.f32 %v2983, 0.05
      %v2992 = vcombine.high %v2984, %v2985
      %v2993 = vcombine.high %v2986, %v2987
      %v2996 = vadd.f32 %v1720, %v2992
      %v2997 = vadd.f32 %v1721, %v2993
      %s2998 = scalar_lea.vmem %s343, 16
      %2999 = vst [vmem:[%s2998] sm:$0x77] %v2996
      %3000 = vst [vmem:[%s2998 + $0x8] sm:$0x77] %v2997
      %s3001 = smul.u32 8, %s24
      %p3002 = scmp.lt.s32.totalorder %s23, 1
      %s3003 = scalar_select %p3002, %s23, 1
      %p3004 = scmp.lt.s32.totalorder %s3001, 7
      %s3005 = scalar_select %p3004, %s3001, 7
      %s3006 = smul.addr %s3003, 8
      %s3007 = sadd.s32 %s3005, %s3006
      %s3008 = smul.addr %s3007, 4
      %s3009 = scalar_lea.vmem %s8, %s3008
      // Predicated region
      $region53: #{tpu_custom_call.1} parent=51 // pred_check
        %p3010 = pneg %p226
      $region54: #{tpu_custom_call.1} parent=51 // pred_check_branch
        %3012 = sbr.rel (%p3010) target = $region56
      $region55: #{tpu_custom_call.1} parent=51 // pred_region
        %s3013 = smul.u32 8, %s24
      $region56: #{tpu_custom_call.1} parent=51 // pred_fallthru
        _
    $region52: #{tpu_custom_call.1} parent=5 // pred_fallthru
      _
    %p3014 = scmp.le.s32.totalorder 2, %s14
    // Predicated region
    $region57: #{tpu_custom_call.1} parent=5 // pred_check
      %p3015 = pneg %p3014
    $region58: #{tpu_custom_call.1} parent=5 // pred_check_branch
      %3017 = sbr.rel (%p3015) target = $region60
    $region59: #{tpu_custom_call.1} parent=5 // pred_region
      %s3018 = ssub.s32 %s14, 2
      // Predicated region
      $region61: #{tpu_custom_call.1} parent=59 // pred_check
        %p3019 = pneg %p232
      $region62: #{tpu_custom_call.1} parent=59 // pred_check_branch
        %3021 = sbr.rel (%p3019) target = $region64
      $region63: #{tpu_custom_call.1} parent=59 // pred_region
        %s3022 = smul.u32 8, %s26
        %p3023 = scmp.lt.s32.totalorder %s25, 1
        %s3024 = scalar_select %p3023, %s25, 1
        %p3025 = scmp.lt.s32.totalorder %s3022, 7
        %s3026 = scalar_select %p3025, %s3022, 7
        %s3027 = smul.addr %s3024, 8
        %s3028 = sadd.s32 %s3026, %s3027
        %s3029 = smul.addr %s3028, 4
        %s3030 = scalar_lea.vmem %s8, %s3029
      $region64: #{tpu_custom_call.1} parent=59 // pred_fallthru
        _
    $region60: #{tpu_custom_call.1} parent=5 // pred_fallthru
      _
  $region6: #{tpu_custom_call.1} parent=0 // loop_footer
    %s18 = sadd.s32 1, %s14
  $region7: #{tpu_custom_call.1} parent=0 // loop_footer_branch
    %13 = sbr.rel target = $region3
  $region8: #{tpu_custom_call.1} parent=0 // loop_exit
    _

</llo_original>
